<compile_context>
chip_gen: v7x
topology: tpu7x:2x2x1
jax: 0.10.0
libtpu: 0.0.40
codegen_flags: <defaults>
</compile_context>

<pallas_src>
import numpy as np
import jax
import jax.numpy as jnp
from jax.experimental import pallas as pl
from jax.experimental.pallas import tpu as pltpu

# ---------------- small, module-consistent configuration ----------------
BATCH      = 2
SEQ_LEN    = 8        # max_len (<= 51 so the 51-row positional table covers it)
EMBED_DIM  = 32       # decoder embed_dim (512 in the original)
ENC_DIM    = 64       # encoder feature dim (2048 in the original)
NUM_PIXELS = 16       # num_pixels   (196 in the original)
N_HEADS    = 2
QKV_DIM    = 16       # per-head dim (64 in the original)
D_FF       = 64       # FFN hidden   (2048 in the original)
VOCAB      = 50
VOCAB_PAD  = 128      # lane-dense padded vocab for the final projection store
ATT_PAD    = 128      # lane-dense padded key dim for the attention-weight stores
N_LAYERS   = 2
LN_EPS     = 1e-5
NEG_INF    = -1000000000.0


# ============================ fused Pallas kernel ============================

def _decoder_layer_kernel(
    x0_ref, smask_ref, emask_ref, enc_ref,
    wqkv_s_ref, bqkv_s_ref, wo_s_ref, bo_s_ref,
    wq_e_ref, bq_e_ref, wkv_e_ref, bkv_e_ref, wo_e_ref, bo_e_ref,
    w1_ref, b1_ref, w2_ref, b2_ref, wproj_ref,
    pred_ref, self_attn_ref, enc_attn_ref,
    x_scr,
):
    """grid = (layer,).  One full decoder layer for the WHOLE batch per step.
    Activations are carried as [B*L, E] in VMEM scratch; cross-batch attention
    entries are removed by the masks built in the wrapper."""
    layer = pl.program_id(0)
    H, D, HD = N_HEADS, QKV_DIM, N_HEADS * QKV_DIM
    L, P = SEQ_LEN, NUM_PIXELS
    scale = 1.0 / float(np.sqrt(D))

    @pl.when(layer == 0)
    def _():                                      # seed the carried activation
        x_scr[...] = x0_ref[...]

    x = x_scr[...]                                # [B*L, E], f32

    def bf16(a):
        return a.astype(jnp.bfloat16)

    def layer_norm(y):                            # fresh nn.LayerNorm: gamma=1, beta=0
        m = jnp.mean(y, axis=-1, keepdims=True)
        v = jnp.mean((y - m) ** 2, axis=-1, keepdims=True)
        return (y - m) * jax.lax.rsqrt(v + LN_EPS)

    def mha(q_all, k_all, v_all, wo_bf, bo, mask_f, attn_ref, lk, residual):
        """q_all [B*L, H*D]; k_all/v_all [Rk, H*D]; mask_f [B*L, Rk] (1.0 = masked);
        lk = per-batch key count (L or P) used to cut the diagonal blocks for output."""
        masked = mask_f > 0.5
        attn_heads, ctx_heads = [], []
        for h in range(H):                        # static unroll over heads
            qh = bf16(q_all[:, h * D:(h + 1) * D])
            kh = bf16(k_all[:, h * D:(h + 1) * D])
            vh = bf16(v_all[:, h * D:(h + 1) * D])
            # contract last dims -> no explicit K transpose
            s = jax.lax.dot_general(qh, kh, (((1,), (1,)), ((), ())),
                                    preferred_element_type=jnp.float32) * scale
            s = jnp.where(masked, NEG_INF, s)
            s = s - jnp.max(s, axis=-1, keepdims=True)      # f32 softmax statistics
            e = jnp.exp(s)
            attn = e * pl.reciprocal(jnp.sum(e, axis=-1, keepdims=True), approx=True)
            attn_heads.append(attn)
            ctx_heads.append(jnp.dot(bf16(attn), vh, preferred_element_type=jnp.float32))

        # lane-dense attention store: per-batch diagonal blocks stacked on sublanes,
        # padded to 128 lanes, one store per MHA.
        blocks = []
        for b in range(BATCH):
            for h in range(H):
                blocks.append(attn_heads[h][b * L:(b + 1) * L, b * lk:(b + 1) * lk])
        blk = jnp.concatenate(blocks, axis=0)               # [B*H*L, lk]
        pad = jnp.zeros((BATCH * H * L, ATT_PAD - lk), jnp.float32)
        attn_ref[0] = jnp.concatenate([blk, pad], axis=1)   # [B*H*L, 128]

        # fused output projection: single full-K (H*D) matmul instead of H partial-K ones
        ctx = jnp.concatenate(ctx_heads, axis=1)            # [B*L, H*D], f32
        out = jnp.dot(bf16(ctx), wo_bf, preferred_element_type=jnp.float32) + bo
        # dropout = identity (eval); residual + fresh LayerNorm as epilogue (f32)
        return layer_norm(out + residual)

    # ---- masked self attention (causal + key padding + cross-batch mask) ----
    qkv = jnp.dot(bf16(x), wqkv_s_ref[0],
                  preferred_element_type=jnp.float32) + bqkv_s_ref[0]
    x = mha(qkv[:, 0 * HD:1 * HD], qkv[:, 1 * HD:2 * HD], qkv[:, 2 * HD:3 * HD],
            wo_s_ref[0], bo_s_ref[0], smask_ref[...], self_attn_ref, L, x)

    # ---- encoder-decoder attention (module mask is all-False; only cross-batch mask) ----
    q_e = jnp.dot(bf16(x), wq_e_ref[0],
                  preferred_element_type=jnp.float32) + bq_e_ref[0]
    kv = jnp.dot(enc_ref[...], wkv_e_ref[0],
                 preferred_element_type=jnp.float32) + bkv_e_ref[0]
    x = mha(q_e, kv[:, 0 * HD:1 * HD], kv[:, 1 * HD:2 * HD],
            wo_e_ref[0], bo_e_ref[0], emask_ref[...], enc_attn_ref, P, x)

    # ---- position-wise FFN (Conv1d kernel_size=1 == per-position matmul) ----
    h1 = jnp.maximum(
        jnp.dot(bf16(x), w1_ref[0], preferred_element_type=jnp.float32) + b1_ref[0], 0.0)
    ff = jnp.dot(bf16(h1), w2_ref[0], preferred_element_type=jnp.float32) + b2_ref[0]
    x = layer_norm(ff + x)                        # dropout identity; residual + LN (f32)

    x_scr[...] = x                                # carry to the next layer

    # ---- vocab projection fused into the last layer (lane-dense 128-wide store).
    # pred's out_spec index is constant, so the buffer is resident across the grid and
    # written back exactly once at grid end, after this write -> safe accumulator pattern.
    @pl.when(layer == pl.num_programs(0) - 1)
    def _():
        pred_ref[...] = jnp.dot(bf16(x), wproj_ref[...],
                                preferred_element_type=jnp.float32)


# ============================ wrapper / parameter packing ============================

def _pack_params(params):
    """Stack per-layer weights along a leading layer axis; fuse QKV / KV projections;
    cast matmul weights to bf16 (biases stay f32 — added to f32 accumulators)."""
    layers = params['layers']
    bf = jnp.bfloat16

    def stack_w(fn):
        return jnp.stack([fn(lp) for lp in layers], axis=0).astype(bf)

    def stack_b(fn):
        return jnp.stack([fn(lp).reshape(1, -1) for lp in layers], axis=0)

    wqkv_s = stack_w(lambda lp: jnp.concatenate(
        [lp['self_attn']['wq'], lp['self_attn']['wk'], lp['self_attn']['wv']], axis=1))
    bqkv_s = stack_b(lambda lp: jnp.concatenate(
        [lp['self_attn']['bq'], lp['self_attn']['bk'], lp['self_attn']['bv']], axis=0))
    wo_s = stack_w(lambda lp: lp['self_attn']['wo'])
    bo_s = stack_b(lambda lp: lp['self_attn']['bo'])

    wq_e = stack_w(lambda lp: lp['enc_attn']['wq'])
    bq_e = stack_b(lambda lp: lp['enc_attn']['bq'])
    wkv_e = stack_w(lambda lp: jnp.concatenate(
        [lp['enc_attn']['wk'], lp['enc_attn']['wv']], axis=1))
    bkv_e = stack_b(lambda lp: jnp.concatenate(
        [lp['enc_attn']['bk'], lp['enc_attn']['bv']], axis=0))
    wo_e = stack_w(lambda lp: lp['enc_attn']['wo'])
    bo_e = stack_b(lambda lp: lp['enc_attn']['bo'])

    w1 = stack_w(lambda lp: lp['ffn']['w1'])
    b1 = stack_b(lambda lp: lp['ffn']['b1'])
    w2 = stack_w(lambda lp: lp['ffn']['w2'])
    b2 = stack_b(lambda lp: lp['ffn']['b2'])

    wproj_pad = jnp.zeros((EMBED_DIM, VOCAB_PAD), jnp.float32).at[:, :VOCAB].set(
        params['w_proj']).astype(bf)
    return (wqkv_s, bqkv_s, wo_s, bo_s, wq_e, bq_e, wkv_e, bkv_e, wo_e, bo_e,
            w1, b1, w2, b2, wproj_pad)


def decoder_forward(params, encoder_out, encoded_captions):
    B, L = encoded_captions.shape
    P = encoder_out.shape[1]
    E, H, HD = EMBED_DIM, N_HEADS, N_HEADS * QKV_DIM
    R, RK = B * L, B * P
    decode_lengths = L - 1

    # --- JAX-side glue (embedding gathers + masks), mirrors Decoder.forward pre-loop ---
    x0 = params['tgt_emb'][encoded_captions] + params['pos_emb'][jnp.arange(L)][None, :, :]
    x0_flat = x0.reshape(R, E)                               # batch folded into sublanes

    batch_of_q = jnp.repeat(jnp.arange(B), L)                # [B*L]
    pos_of_q = jnp.tile(jnp.arange(L), B)                    # [B*L]
    pad_key = (encoded_captions.reshape(-1) == 0)            # [B*L]
    allowed = ((batch_of_q[:, None] == batch_of_q[None, :])
               & (pos_of_q[None, :] <= pos_of_q[:, None])
               & jnp.logical_not(pad_key)[None, :])
    self_mask_f = jnp.logical_not(allowed).astype(jnp.float32)          # [B*L, B*L]
    batch_of_k = jnp.repeat(jnp.arange(B), P)
    enc_mask_f = (batch_of_q[:, None] != batch_of_k[None, :]).astype(jnp.float32)  # [B*L, B*P]

    enc_flat = encoder_out.astype(jnp.bfloat16).reshape(RK, ENC_DIM)
    packed = _pack_params(params)

    const2 = lambda l: (0, 0)
    layer3 = lambda l: (l, 0, 0)

    grid_spec = pltpu.PrefetchScalarGridSpec(
        num_scalar_prefetch=0,
        grid=(N_LAYERS,),          # layer axis only: every weight is DMA'd exactly once
        in_specs=[
            pl.BlockSpec((R, E), const2),                    # x0 (rows = B*L)
            pl.BlockSpec((R, R), const2),                    # self-attn mask
            pl.BlockSpec((R, RK), const2),                   # enc-attn (cross-batch) mask
            pl.BlockSpec((RK, ENC_DIM), const2),             # encoder features (bf16)
            pl.BlockSpec((1, E, 3 * HD), layer3),            # wqkv_self (bf16)
            pl.BlockSpec((1, 1, 3 * HD), layer3),            # bqkv_self
            pl.BlockSpec((1, HD, E), layer3),                # wo_self (bf16)
            pl.BlockSpec((1, 1, E), layer3),                 # bo_self
            pl.BlockSpec((1, E, HD), layer3),                # wq_enc (bf16)
            pl.BlockSpec((1, 1, HD), layer3),                # bq_enc
            pl.BlockSpec((1, ENC_DIM, 2 * HD), layer3),      # wkv_enc (bf16)
            pl.BlockSpec((1, 1, 2 * HD), layer3),            # bkv_enc
            pl.BlockSpec((1, HD, E), layer3),                # wo_enc (bf16)
            pl.BlockSpec((1, 1, E), layer3),                 # bo_enc
            pl.BlockSpec((1, E, D_FF), layer3),              # ffn w1 (bf16)
            pl.BlockSpec((1, 1, D_FF), layer3),              # ffn b1
            pl.BlockSpec((1, D_FF, E), layer3),              # ffn w2 (bf16)
            pl.BlockSpec((1, 1, E), layer3),                 # ffn b2
            pl.BlockSpec((E, VOCAB_PAD), const2),            # padded vocab projection (bf16)
        ],
        out_specs=(
            pl.BlockSpec((R, VOCAB_PAD), const2),            # predictions (resident)
            pl.BlockSpec((1, B * H * L, ATT_PAD), layer3),   # self-attn weights
            pl.BlockSpec((1, B * H * L, ATT_PAD), layer3),   # enc-attn weights
        ),
        scratch_shapes=[pltpu.VMEM((R, E), jnp.float32)],    # carried activation (f32)
    )

    pred_flat, self_st, enc_st = pl.pallas_call(
        _decoder_layer_kernel,
        grid_spec=grid_spec,
        out_shape=(
            jax.ShapeDtypeStruct((R, VOCAB_PAD), jnp.float32),
            jax.ShapeDtypeStruct((N_LAYERS, B * H * L, ATT_PAD), jnp.float32),
            jax.ShapeDtypeStruct((N_LAYERS, B * H * L, ATT_PAD), jnp.float32),
        ),
        compiler_params=pltpu.CompilerParams(
            dimension_semantics=("arbitrary",),              # layer carry is sequential
            vmem_limit_bytes=64 * 1024 * 1024),              # explicit VMEM budget (v7x)
    )(x0_flat, self_mask_f, enc_mask_f, enc_flat, *packed)

    predictions = pred_flat.reshape(B, L, VOCAB_PAD)[:, :, :VOCAB]
    self_r = self_st.reshape(N_LAYERS, B, H, L, ATT_PAD)[..., :L]
    enc_r = enc_st.reshape(N_LAYERS, B, H, L, ATT_PAD)[..., :P]
    self_attns = [self_r[i] for i in range(N_LAYERS)]
    enc_attns = [enc_r[i] for i in range(N_LAYERS)]
    return predictions, encoded_captions, decode_lengths, self_attns, enc_attns


# ============================ deterministic parameter init ============================

def _init_linear(key, fan_in, fan_out, scale=0.02):
    kw, kb = jax.random.split(key)
    return (scale * jax.random.normal(kw, (fan_in, fan_out), jnp.float32),
            scale * jax.random.normal(kb, (fan_out,), jnp.float32))


def _init_mha(key, q_dim, k_dim):
    ks = jax.random.split(key, 4)
    wq, bq = _init_linear(ks[0], q_dim, N_HEADS * QKV_DIM)
    wk, bk = _init_linear(ks[1], k_dim, N_HEADS * QKV_DIM)
    wv, bv = _init_linear(ks[2], k_dim, N_HEADS * QKV_DIM)
    wo, bo = _init_linear(ks[3], N_HEADS * QKV_DIM, q_dim)
    return dict(wq=wq, bq=bq, wk=wk, bk=bk, wv=wv, bv=bv, wo=wo, bo=bo)


def _position_embedding_table(embed_dim, n_pos=51):
    pos = np.arange(n_pos)[:, None].astype(np.float64)
    hid = np.arange(embed_dim)[None, :]
    table = pos / np.power(10000.0, 2 * (hid // 2) / embed_dim)
    table[:, 0::2] = np.sin(table[:, 0::2])
    table[:, 1::2] = np.cos(table[:, 1::2])
    return jnp.asarray(table, dtype=jnp.float32)


def init_decoder_params(key):
    keys = jax.random.split(key, N_LAYERS + 2)
    tgt_emb = 0.02 * jax.random.normal(keys[0], (VOCAB, EMBED_DIM), jnp.float32)
    tgt_emb = tgt_emb.at[0].set(0.0)                                 # padding_idx=0
    layers = []
    for i in range(N_LAYERS):
        k1, k2, k3, k4 = jax.random.split(keys[1 + i], 4)
        w1, b1 = _init_linear(k3, EMBED_DIM, D_FF)
        w2, b2 = _init_linear(k4, D_FF, EMBED_DIM)
        layers.append(dict(self_attn=_init_mha(k1, EMBED_DIM, EMBED_DIM),
                           enc_attn=_init_mha(k2, EMBED_DIM, ENC_DIM),
                           ffn=dict(w1=w1, b1=b1, w2=w2, b2=b2)))
    w_proj, _ = _init_linear(keys[-1], EMBED_DIM, VOCAB)             # bias=False
    return dict(tgt_emb=tgt_emb, pos_emb=_position_embedding_table(EMBED_DIM),
                layers=layers, w_proj=w_proj)


# ============================ pure-JAX reference (sanity check) ============================

def _ref_ln(x):
    m = jnp.mean(x, -1, keepdims=True)
    v = jnp.mean((x - m) ** 2, -1, keepdims=True)
    return (x - m) / jnp.sqrt(v + LN_EPS)


def _ref_mha(Q, K, V, mask_bool, p):
    B, Lq, _ = Q.shape
    Lk = K.shape[1]
    H, D = N_HEADS, QKV_DIM
    q = (Q @ p['wq'] + p['bq']).reshape(B, Lq, H, D).transpose(0, 2, 1, 3)
    k = (K @ p['wk'] + p['bk']).reshape(B, Lk, H, D).transpose(0, 2, 1, 3)
    v = (V @ p['wv'] + p['bv']).reshape(B, Lk, H, D).transpose(0, 2, 1, 3)
    s = q @ jnp.swapaxes(k, -1, -2) / np.sqrt(D)
    s = jnp.where(mask_bool[:, None, :, :], -1e9, s)
    a = jax.nn.softmax(s, axis=-1)
    ctx = (a @ v).transpose(0, 2, 1, 3).reshape(B, Lq, H * D)
    return _ref_ln(ctx @ p['wo'] + p['bo'] + Q)


def decoder_forward_ref(params, encoder_out, encoded_captions):
    B, L = encoded_captions.shape
    x = params['tgt_emb'][encoded_captions] + params['pos_emb'][jnp.arange(L)][None]
    pad_mask = jnp.broadcast_to((encoded_captions == 0)[:, None, :], (B, L, L))
    sub_mask = jnp.triu(jnp.ones((L, L)), k=1)[None].astype(bool)
    self_mask = pad_mask | sub_mask
    enc_mask = jnp.zeros((B, L, encoder_out.shape[1]), bool)
    for lp in params['layers']:
        x = _ref_mha(x, x, x, self_mask, lp['self_attn'])
        x = _ref_mha(x, encoder_out, encoder_out, enc_mask, lp['enc_attn'])
        f = lp['ffn']
        x = _ref_ln(jnp.maximum(x @ f['w1'] + f['b1'], 0.0) @ f['w2'] + f['b2'] + x)
    return x @ params['w_proj']


# ============================ main ============================

if __name__ == "__main__":
    key = jax.random.PRNGKey(0)
    k_enc, k_tok, k_par = jax.random.split(key, 3)
    encoder_out = jax.random.normal(k_enc, (BATCH, NUM_PIXELS, ENC_DIM), jnp.float32)
    encoded_captions = jax.random.randint(k_tok, (BATCH, SEQ_LEN), 1, VOCAB)
    encoded_captions = encoded_captions.at[:, -2:].set(0)   # some padding tokens
    params = init_decoder_params(k_par)

    fwd = jax.jit(decoder_forward)
    preds, caps, dec_len, self_attns, enc_attns = fwd(params, encoder_out, encoded_captions)
    jax.block_until_ready(preds)

    # sanity checks vs a plain-JAX f32 reference (kernel uses bf16 matmul operands)
    ref = decoder_forward_ref(params, encoder_out, encoded_captions)
    np.testing.assert_allclose(np.asarray(preds), np.asarray(ref), rtol=2e-2, atol=2e-2)
    assert preds.shape == (BATCH, SEQ_LEN, VOCAB)
    assert self_attns[0].shape == (BATCH, N_HEADS, SEQ_LEN, SEQ_LEN)
    assert enc_attns[0].shape == (BATCH, N_HEADS, SEQ_LEN, NUM_PIXELS)
    np.testing.assert_allclose(np.asarray(self_attns[0]).sum(-1), 1.0, rtol=2e-3, atol=2e-3)
    np.testing.assert_allclose(np.asarray(enc_attns[-1]).sum(-1), 1.0, rtol=2e-3, atol=2e-3)
    assert int(dec_len) == SEQ_LEN - 1
    print("KERNEL_OK")
</pallas_src>

<mosaic_0001>
module attributes {stable_mosaic.version = 11 : i64} {
  func.func @_decoder_layer_kernel(%arg0: i32, %arg1: memref<16x32xf32, #tpu.memory_space<vmem>>, %arg2: memref<16x16xf32, #tpu.memory_space<vmem>>, %arg3: memref<16x32xf32, #tpu.memory_space<vmem>>, %arg4: memref<32x64xbf16, #tpu.memory_space<vmem>>, %arg5: memref<1x32x96xbf16, #tpu.memory_space<vmem>>, %arg6: memref<1x1x96xf32, #tpu.memory_space<vmem>>, %arg7: memref<1x32x32xbf16, #tpu.memory_space<vmem>>, %arg8: memref<1x1x32xf32, #tpu.memory_space<vmem>>, %arg9: memref<1x32x32xbf16, #tpu.memory_space<vmem>>, %arg10: memref<1x1x32xf32, #tpu.memory_space<vmem>>, %arg11: memref<1x64x64xbf16, #tpu.memory_space<vmem>>, %arg12: memref<1x1x64xf32, #tpu.memory_space<vmem>>, %arg13: memref<1x32x32xbf16, #tpu.memory_space<vmem>>, %arg14: memref<1x1x32xf32, #tpu.memory_space<vmem>>, %arg15: memref<1x32x64xbf16, #tpu.memory_space<vmem>>, %arg16: memref<1x1x64xf32, #tpu.memory_space<vmem>>, %arg17: memref<1x64x32xbf16, #tpu.memory_space<vmem>>, %arg18: memref<1x1x32xf32, #tpu.memory_space<vmem>>, %arg19: memref<32x128xbf16, #tpu.memory_space<vmem>>, %arg20: memref<16x128xf32, #tpu.memory_space<vmem>>, %arg21: memref<1x32x128xf32, #tpu.memory_space<vmem>>, %arg22: memref<1x32x128xf32, #tpu.memory_space<vmem>>, %arg23: memref<16x32xf32, #tpu.memory_space<vmem>>) attributes {dimension_semantics = [#tpu.dimension_semantics<arbitrary>], iteration_bounds = array<i64: 2>, scalar_prefetch = 0 : i64, scratch_operands = 1 : i64, tpu.core_type = #tpu.core_type<tc>, window_params = [{pipeline_mode = #tpu.pipeline_mode<synchronous>, transform_indices = @transform_0, window_bounds = array<i64: 16, 32>}, {pipeline_mode = #tpu.pipeline_mode<synchronous>, transform_indices = @transform_1, window_bounds = array<i64: 16, 16>}, {pipeline_mode = #tpu.pipeline_mode<synchronous>, transform_indices = @transform_2, window_bounds = array<i64: 16, 32>}, {pipeline_mode = #tpu.pipeline_mode<synchronous>, transform_indices = @transform_3, window_bounds = array<i64: 32, 64>}, {transform_indices = @transform_4, window_bounds = array<i64: 1, 32, 96>}, {transform_indices = @transform_5, window_bounds = array<i64: 1, 1, 96>}, {transform_indices = @transform_6, window_bounds = array<i64: 1, 32, 32>}, {transform_indices = @transform_7, window_bounds = array<i64: 1, 1, 32>}, {transform_indices = @transform_8, window_bounds = array<i64: 1, 32, 32>}, {transform_indices = @transform_9, window_bounds = array<i64: 1, 1, 32>}, {transform_indices = @transform_10, window_bounds = array<i64: 1, 64, 64>}, {transform_indices = @transform_11, window_bounds = array<i64: 1, 1, 64>}, {transform_indices = @transform_12, window_bounds = array<i64: 1, 32, 32>}, {transform_indices = @transform_13, window_bounds = array<i64: 1, 1, 32>}, {transform_indices = @transform_14, window_bounds = array<i64: 1, 32, 64>}, {transform_indices = @transform_15, window_bounds = array<i64: 1, 1, 64>}, {transform_indices = @transform_16, window_bounds = array<i64: 1, 64, 32>}, {transform_indices = @transform_17, window_bounds = array<i64: 1, 1, 32>}, {pipeline_mode = #tpu.pipeline_mode<synchronous>, transform_indices = @transform_18, window_bounds = array<i64: 32, 128>}, {pipeline_mode = #tpu.pipeline_mode<synchronous>, transform_indices = @transform_19, window_bounds = array<i64: 16, 128>}, {transform_indices = @transform_20, window_bounds = array<i64: 1, 32, 128>}, {transform_indices = @transform_21, window_bounds = array<i64: 1, 32, 128>}]} {
    %c0_i32 = arith.constant 0 : i32
    %0 = arith.cmpi eq, %arg0, %c0_i32 : i32
    %1 = arith.extui %0 : i1 to i32
    %c0_i32_0 = arith.constant 0 : i32
    %2 = arith.cmpi ne, %1, %c0_i32_0 : i32
    scf.if %2 {
      %c0_109 = arith.constant 0 : index
      %c0_110 = arith.constant 0 : index
      %248 = vector.load %arg1[%c0_109, %c0_110] : memref<16x32xf32, #tpu.memory_space<vmem>>, vector<16x32xf32>
      %c0_111 = arith.constant 0 : index
      %c0_112 = arith.constant 0 : index
      %249 = vector.load %arg23[%c0_111, %c0_112] : memref<16x32xf32, #tpu.memory_space<vmem>>, vector<16x32xf32>
      tpu.vector_store %arg23[%c0_111, %c0_112], %248 {strides = array<i32>} : memref<16x32xf32, #tpu.memory_space<vmem>>, vector<16x32xf32>,
    } else {
    }
    %c0 = arith.constant 0 : index
    %c0_1 = arith.constant 0 : index
    %3 = vector.load %arg23[%c0, %c0_1] : memref<16x32xf32, #tpu.memory_space<vmem>>, vector<16x32xf32>
    %4 = arith.truncf %3 : vector<16x32xf32> to vector<16x32xbf16>
    %c0_2 = arith.constant 0 : index
    %c0_3 = arith.constant 0 : index
    %c0_4 = arith.constant 0 : index
    %5 = vector.load %arg5[%c0_2, %c0_3, %c0_4] : memref<1x32x96xbf16, #tpu.memory_space<vmem>>, vector<1x32x96xbf16>
    %6 = vector.shape_cast %5 : vector<1x32x96xbf16> to vector<32x96xbf16>
    %cst = arith.constant dense<0.000000e+00> : vector<16x96xf32>
    %7 = tpu.matmul %4, %6, %cst {dimension_numbers = #tpu.dot_dimension_numbers<[1], [0], [0], [1], [0, 0, 1, 1], [], []>} : vector<16x32xbf16>, vector<32x96xbf16>, vector<16x96xf32> -> vector<16x96xf32>
    %c0_5 = arith.constant 0 : index
    %c0_6 = arith.constant 0 : index
    %c0_7 = arith.constant 0 : index
    %8 = vector.load %arg6[%c0_5, %c0_6, %c0_7] : memref<1x1x96xf32, #tpu.memory_space<vmem>>, vector<1x1x96xf32>
    %9 = vector.shape_cast %8 : vector<1x1x96xf32> to vector<1x96xf32>
    %10 = vector.broadcast %9 : vector<1x96xf32> to vector<16x96xf32>
    %11 = arith.addf %7, %10 : vector<16x96xf32>
    %12 = vector.extract_strided_slice %11 {offsets = [0, 0], sizes = [16, 32], strides = [1, 1]} : vector<16x96xf32> to vector<16x32xf32>
    %13 = vector.extract_strided_slice %11 {offsets = [0, 32], sizes = [16, 32], strides = [1, 1]} : vector<16x96xf32> to vector<16x32xf32>
    %14 = vector.extract_strided_slice %11 {offsets = [0, 64], sizes = [16, 32], strides = [1, 1]} : vector<16x96xf32> to vector<16x32xf32>
    %c0_8 = arith.constant 0 : index
    %c0_9 = arith.constant 0 : index
    %c0_10 = arith.constant 0 : index
    %15 = vector.load %arg7[%c0_8, %c0_9, %c0_10] : memref<1x32x32xbf16, #tpu.memory_space<vmem>>, vector<1x32x32xbf16>
    %16 = vector.shape_cast %15 : vector<1x32x32xbf16> to vector<32x32xbf16>
    %c0_11 = arith.constant 0 : index
    %c0_12 = arith.constant 0 : index
    %c0_13 = arith.constant 0 : index
    %17 = vector.load %arg8[%c0_11, %c0_12, %c0_13] : memref<1x1x32xf32, #tpu.memory_space<vmem>>, vector<1x1x32xf32>
    %18 = vector.shape_cast %17 : vector<1x1x32xf32> to vector<1x32xf32>
    %c0_14 = arith.constant 0 : index
    %c0_15 = arith.constant 0 : index
    %19 = vector.load %arg2[%c0_14, %c0_15] : memref<16x16xf32, #tpu.memory_space<vmem>>, vector<16x16xf32>
    %cst_16 = arith.constant 5.000000e-01 : f32
    %20 = vector.broadcast %cst_16 : f32 to vector<16x16xf32>
    %21 = arith.cmpf ogt, %19, %20 : vector<16x16xf32>
    %22 = vector.extract_strided_slice %12 {offsets = [0, 0], sizes = [16, 16], strides = [1, 1]} : vector<16x32xf32> to vector<16x16xf32>
    %23 = arith.truncf %22 : vector<16x16xf32> to vector<16x16xbf16>
    %24 = vector.extract_strided_slice %13 {offsets = [0, 0], sizes = [16, 16], strides = [1, 1]} : vector<16x32xf32> to vector<16x16xf32>
    %25 = arith.truncf %24 : vector<16x16xf32> to vector<16x16xbf16>
    %26 = vector.extract_strided_slice %14 {offsets = [0, 0], sizes = [16, 16], strides = [1, 1]} : vector<16x32xf32> to vector<16x16xf32>
    %27 = arith.truncf %26 : vector<16x16xf32> to vector<16x16xbf16>
    %cst_17 = arith.constant dense<0.000000e+00> : vector<16x16xf32>
    %28 = tpu.matmul %23, %25, %cst_17 {dimension_numbers = #tpu.dot_dimension_numbers<[1], [1], [0], [0], [0, 0, 1, 0], [], []>} : vector<16x16xbf16>, vector<16x16xbf16>, vector<16x16xf32> -> vector<16x16xf32>
    %cst_18 = arith.constant 2.500000e-01 : f32
    %29 = vector.broadcast %cst_18 : f32 to vector<16x16xf32>
    %30 = arith.mulf %28, %29 : vector<16x16xf32>
    %cst_19 = arith.constant -1.000000e+09 : f32
    %31 = vector.broadcast %cst_19 : f32 to vector<16x16xf32>
    %32 = arith.select %21, %31, %30 : vector<16x16xi1>, vector<16x16xf32>
    %cst_20 = arith.constant dense<0xFF800000> : vector<16xf32>
    %33 = vector.multi_reduction <maximumf>, %32, %cst_20 [1] : vector<16x16xf32> to vector<16xf32>
    %34 = vector.shape_cast %33 : vector<16xf32> to vector<16x1xf32>
    %35 = vector.broadcast %34 : vector<16x1xf32> to vector<16x16xf32>
    %36 = arith.subf %32, %35 : vector<16x16xf32>
    %37 = math.exp %36 : vector<16x16xf32>
    %cst_21 = arith.constant dense<0.000000e+00> : vector<16xf32>
    %38 = vector.multi_reduction <add>, %37, %cst_21 [1] : vector<16x16xf32> to vector<16xf32>
    %39 = vector.shape_cast %38 : vector<16xf32> to vector<16x1xf32>
    %40 = tpu.reciprocal %39 {approx = true} : vector<16x1xf32> -> vector<16x1xf32>
    %41 = vector.broadcast %40 : vector<16x1xf32> to vector<16x16xf32>
    %42 = arith.mulf %37, %41 : vector<16x16xf32>
    %43 = arith.truncf %42 : vector<16x16xf32> to vector<16x16xbf16>
    %cst_22 = arith.constant dense<0.000000e+00> : vector<16x16xf32>
    %44 = tpu.matmul %43, %27, %cst_22 {dimension_numbers = #tpu.dot_dimension_numbers<[1], [0], [0], [1], [0, 0, 1, 1], [], []>} : vector<16x16xbf16>, vector<16x16xbf16>, vector<16x16xf32> -> vector<16x16xf32>
    %45 = vector.extract_strided_slice %12 {offsets = [0, 16], sizes = [16, 16], strides = [1, 1]} : vector<16x32xf32> to vector<16x16xf32>
    %46 = arith.truncf %45 : vector<16x16xf32> to vector<16x16xbf16>
    %47 = vector.extract_strided_slice %13 {offsets = [0, 16], sizes = [16, 16], strides = [1, 1]} : vector<16x32xf32> to vector<16x16xf32>
    %48 = arith.truncf %47 : vector<16x16xf32> to vector<16x16xbf16>
    %49 = vector.extract_strided_slice %14 {offsets = [0, 16], sizes = [16, 16], strides = [1, 1]} : vector<16x32xf32> to vector<16x16xf32>
    %50 = arith.truncf %49 : vector<16x16xf32> to vector<16x16xbf16>
    %cst_23 = arith.constant dense<0.000000e+00> : vector<16x16xf32>
    %51 = tpu.matmul %46, %48, %cst_23 {dimension_numbers = #tpu.dot_dimension_numbers<[1], [1], [0], [0], [0, 0, 1, 0], [], []>} : vector<16x16xbf16>, vector<16x16xbf16>, vector<16x16xf32> -> vector<16x16xf32>
    %cst_24 = arith.constant 2.500000e-01 : f32
    %52 = vector.broadcast %cst_24 : f32 to vector<16x16xf32>
    %53 = arith.mulf %51, %52 : vector<16x16xf32>
    %cst_25 = arith.constant -1.000000e+09 : f32
    %54 = vector.broadcast %cst_25 : f32 to vector<16x16xf32>
    %55 = arith.select %21, %54, %53 : vector<16x16xi1>, vector<16x16xf32>
    %cst_26 = arith.constant dense<0xFF800000> : vector<16xf32>
    %56 = vector.multi_reduction <maximumf>, %55, %cst_26 [1] : vector<16x16xf32> to vector<16xf32>
    %57 = vector.shape_cast %56 : vector<16xf32> to vector<16x1xf32>
    %58 = vector.broadcast %57 : vector<16x1xf32> to vector<16x16xf32>
    %59 = arith.subf %55, %58 : vector<16x16xf32>
    %60 = math.exp %59 : vector<16x16xf32>
    %cst_27 = arith.constant dense<0.000000e+00> : vector<16xf32>
    %61 = vector.multi_reduction <add>, %60, %cst_27 [1] : vector<16x16xf32> to vector<16xf32>
    %62 = vector.shape_cast %61 : vector<16xf32> to vector<16x1xf32>
    %63 = tpu.reciprocal %62 {approx = true} : vector<16x1xf32> -> vector<16x1xf32>
    %64 = vector.broadcast %63 : vector<16x1xf32> to vector<16x16xf32>
    %65 = arith.mulf %60, %64 : vector<16x16xf32>
    %66 = arith.truncf %65 : vector<16x16xf32> to vector<16x16xbf16>
    %cst_28 = arith.constant dense<0.000000e+00> : vector<16x16xf32>
    %67 = tpu.matmul %66, %50, %cst_28 {dimension_numbers = #tpu.dot_dimension_numbers<[1], [0], [0], [1], [0, 0, 1, 1], [], []>} : vector<16x16xbf16>, vector<16x16xbf16>, vector<16x16xf32> -> vector<16x16xf32>
    %68 = vector.extract_strided_slice %42 {offsets = [0, 0], sizes = [8, 8], strides = [1, 1]} : vector<16x16xf32> to vector<8x8xf32>
    %69 = vector.extract_strided_slice %65 {offsets = [0, 0], sizes = [8, 8], strides = [1, 1]} : vector<16x16xf32> to vector<8x8xf32>
    %70 = vector.extract_strided_slice %42 {offsets = [8, 8], sizes = [8, 8], strides = [1, 1]} : vector<16x16xf32> to vector<8x8xf32>
    %71 = vector.extract_strided_slice %65 {offsets = [8, 8], sizes = [8, 8], strides = [1, 1]} : vector<16x16xf32> to vector<8x8xf32>
    %72 = tpu.concatenate %68, %69, %70, %71 in 0 : vector<8x8xf32>, vector<8x8xf32>, vector<8x8xf32>, vector<8x8xf32> -> vector<32x8xf32>
    %cst_29 = arith.constant 0.000000e+00 : f32
    %73 = vector.broadcast %cst_29 : f32 to vector<32x120xf32>
    %74 = tpu.concatenate %72, %73 in 1 : vector<32x8xf32>, vector<32x120xf32> -> vector<32x128xf32>
    %c0_30 = arith.constant 0 : index
    %c0_31 = arith.constant 0 : index
    %c0_32 = arith.constant 0 : index
    %75 = vector.load %arg21[%c0_30, %c0_31, %c0_32] : memref<1x32x128xf32, #tpu.memory_space<vmem>>, vector<1x32x128xf32>
    %76 = vector.shape_cast %75 : vector<1x32x128xf32> to vector<32x128xf32>
    %77 = vector.shape_cast %74 : vector<32x128xf32> to vector<1x32x128xf32>
    tpu.vector_store %arg21[%c0_30, %c0_31, %c0_32], %77 {strides = array<i32>} : memref<1x32x128xf32, #tpu.memory_space<vmem>>, vector<1x32x128xf32>,
    %78 = tpu.concatenate %44, %67 in 1 : vector<16x16xf32>, vector<16x16xf32> -> vector<16x32xf32>
    %79 = arith.truncf %78 : vector<16x32xf32> to vector<16x32xbf16>
    %cst_33 = arith.constant dense<0.000000e+00> : vector<16x32xf32>
    %80 = tpu.matmul %79, %16, %cst_33 {dimension_numbers = #tpu.dot_dimension_numbers<[1], [0], [0], [1], [0, 0, 1, 1], [], []>} : vector<16x32xbf16>, vector<32x32xbf16>, vector<16x32xf32> -> vector<16x32xf32>
    %81 = vector.broadcast %18 : vector<1x32xf32> to vector<16x32xf32>
    %82 = arith.addf %80, %81 : vector<16x32xf32>
    %83 = arith.addf %82, %3 : vector<16x32xf32>
    %cst_34 = arith.constant dense<0.000000e+00> : vector<16xf32>
    %84 = vector.multi_reduction <add>, %83, %cst_34 [1] : vector<16x32xf32> to vector<16xf32>
    %85 = vector.shape_cast %84 : vector<16xf32> to vector<16x1xf32>
    %cst_35 = arith.constant 3.200000e+01 : f32
    %86 = vector.broadcast %cst_35 : f32 to vector<16x1xf32>
    %87 = arith.divf %85, %86 : vector<16x1xf32>
    %88 = vector.broadcast %87 : vector<16x1xf32> to vector<16x32xf32>
    %89 = arith.subf %83, %88 : vector<16x32xf32>
    %90 = arith.mulf %89, %89 : vector<16x32xf32>
    %cst_36 = arith.constant dense<0.000000e+00> : vector<16xf32>
    %91 = vector.multi_reduction <add>, %90, %cst_36 [1] : vector<16x32xf32> to vector<16xf32>
    %92 = vector.shape_cast %91 : vector<16xf32> to vector<16x1xf32>
    %cst_37 = arith.constant 3.200000e+01 : f32
    %93 = vector.broadcast %cst_37 : f32 to vector<16x1xf32>
    %94 = arith.divf %92, %93 : vector<16x1xf32>
    %95 = vector.broadcast %87 : vector<16x1xf32> to vector<16x32xf32>
    %96 = arith.subf %83, %95 : vector<16x32xf32>
    %cst_38 = arith.constant 9.99999974E-6 : f32
    %97 = vector.broadcast %cst_38 : f32 to vector<16x1xf32>
    %98 = arith.addf %94, %97 : vector<16x1xf32>
    %99 = math.rsqrt %98 : vector<16x1xf32>
    %100 = vector.broadcast %99 : vector<16x1xf32> to vector<16x32xf32>
    %101 = arith.mulf %96, %100 : vector<16x32xf32>
    %102 = arith.truncf %101 : vector<16x32xf32> to vector<16x32xbf16>
    %c0_39 = arith.constant 0 : index
    %c0_40 = arith.constant 0 : index
    %c0_41 = arith.constant 0 : index
    %103 = vector.load %arg9[%c0_39, %c0_40, %c0_41] : memref<1x32x32xbf16, #tpu.memory_space<vmem>>, vector<1x32x32xbf16>
    %104 = vector.shape_cast %103 : vector<1x32x32xbf16> to vector<32x32xbf16>
    %cst_42 = arith.constant dense<0.000000e+00> : vector<16x32xf32>
    %105 = tpu.matmul %102, %104, %cst_42 {dimension_numbers = #tpu.dot_dimension_numbers<[1], [0], [0], [1], [0, 0, 1, 1], [], []>} : vector<16x32xbf16>, vector<32x32xbf16>, vector<16x32xf32> -> vector<16x32xf32>
    %c0_43 = arith.constant 0 : index
    %c0_44 = arith.constant 0 : index
    %c0_45 = arith.constant 0 : index
    %106 = vector.load %arg10[%c0_43, %c0_44, %c0_45] : memref<1x1x32xf32, #tpu.memory_space<vmem>>, vector<1x1x32xf32>
    %107 = vector.shape_cast %106 : vector<1x1x32xf32> to vector<1x32xf32>
    %108 = vector.broadcast %107 : vector<1x32xf32> to vector<16x32xf32>
    %109 = arith.addf %105, %108 : vector<16x32xf32>
    %c0_46 = arith.constant 0 : index
    %c0_47 = arith.constant 0 : index
    %110 = vector.load %arg4[%c0_46, %c0_47] : memref<32x64xbf16, #tpu.memory_space<vmem>>, vector<32x64xbf16>
    %c0_48 = arith.constant 0 : index
    %c0_49 = arith.constant 0 : index
    %c0_50 = arith.constant 0 : index
    %111 = vector.load %arg11[%c0_48, %c0_49, %c0_50] : memref<1x64x64xbf16, #tpu.memory_space<vmem>>, vector<1x64x64xbf16>
    %112 = vector.shape_cast %111 : vector<1x64x64xbf16> to vector<64x64xbf16>
    %cst_51 = arith.constant dense<0.000000e+00> : vector<32x64xf32>
    %113 = tpu.matmul %110, %112, %cst_51 {dimension_numbers = #tpu.dot_dimension_numbers<[1], [0], [0], [1], [0, 0, 1, 1], [], []>} : vector<32x64xbf16>, vector<64x64xbf16>, vector<32x64xf32> -> vector<32x64xf32>
    %c0_52 = arith.constant 0 : index
    %c0_53 = arith.constant 0 : index
    %c0_54 = arith.constant 0 : index
    %114 = vector.load %arg12[%c0_52, %c0_53, %c0_54] : memref<1x1x64xf32, #tpu.memory_space<vmem>>, vector<1x1x64xf32>
    %115 = vector.shape_cast %114 : vector<1x1x64xf32> to vector<1x64xf32>
    %116 = vector.broadcast %115 : vector<1x64xf32> to vector<32x64xf32>
    %117 = arith.addf %113, %116 : vector<32x64xf32>
    %118 = vector.extract_strided_slice %117 {offsets = [0, 0], sizes = [32, 32], strides = [1, 1]} : vector<32x64xf32> to vector<32x32xf32>
    %119 = vector.extract_strided_slice %117 {offsets = [0, 32], sizes = [32, 32], strides = [1, 1]} : vector<32x64xf32> to vector<32x32xf32>
    %c0_55 = arith.constant 0 : index
    %c0_56 = arith.constant 0 : index
    %c0_57 = arith.constant 0 : index
    %120 = vector.load %arg13[%c0_55, %c0_56, %c0_57] : memref<1x32x32xbf16, #tpu.memory_space<vmem>>, vector<1x32x32xbf16>
    %121 = vector.shape_cast %120 : vector<1x32x32xbf16> to vector<32x32xbf16>
    %c0_58 = arith.constant 0 : index
    %c0_59 = arith.constant 0 : index
    %c0_60 = arith.constant 0 : index
    %122 = vector.load %arg14[%c0_58, %c0_59, %c0_60] : memref<1x1x32xf32, #tpu.memory_space<vmem>>, vector<1x1x32xf32>
    %123 = vector.shape_cast %122 : vector<1x1x32xf32> to vector<1x32xf32>
    %c0_61 = arith.constant 0 : index
    %c0_62 = arith.constant 0 : index
    %124 = vector.load %arg3[%c0_61, %c0_62] : memref<16x32xf32, #tpu.memory_space<vmem>>, vector<16x32xf32>
    %cst_63 = arith.constant 5.000000e-01 : f32
    %125 = vector.broadcast %cst_63 : f32 to vector<16x32xf32>
    %126 = arith.cmpf ogt, %124, %125 : vector<16x32xf32>
    %127 = vector.extract_strided_slice %109 {offsets = [0, 0], sizes = [16, 16], strides = [1, 1]} : vector<16x32xf32> to vector<16x16xf32>
    %128 = arith.truncf %127 : vector<16x16xf32> to vector<16x16xbf16>
    %129 = vector.extract_strided_slice %118 {offsets = [0, 0], sizes = [32, 16], strides = [1, 1]} : vector<32x32xf32> to vector<32x16xf32>
    %130 = arith.truncf %129 : vector<32x16xf32> to vector<32x16xbf16>
    %131 = vector.extract_strided_slice %119 {offsets = [0, 0], sizes = [32, 16], strides = [1, 1]} : vector<32x32xf32> to vector<32x16xf32>
    %132 = arith.truncf %131 : vector<32x16xf32> to vector<32x16xbf16>
    %cst_64 = arith.constant dense<0.000000e+00> : vector<16x32xf32>
    %133 = tpu.matmul %128, %130, %cst_64 {dimension_numbers = #tpu.dot_dimension_numbers<[1], [1], [0], [0], [0, 0, 1, 0], [], []>} : vector<16x16xbf16>, vector<32x16xbf16>, vector<16x32xf32> -> vector<16x32xf32>
    %cst_65 = arith.constant 2.500000e-01 : f32
    %134 = vector.broadcast %cst_65 : f32 to vector<16x32xf32>
    %135 = arith.mulf %133, %134 : vector<16x32xf32>
    %cst_66 = arith.constant -1.000000e+09 : f32
    %136 = vector.broadcast %cst_66 : f32 to vector<16x32xf32>
    %137 = arith.select %126, %136, %135 : vector<16x32xi1>, vector<16x32xf32>
    %cst_67 = arith.constant dense<0xFF800000> : vector<16xf32>
    %138 = vector.multi_reduction <maximumf>, %137, %cst_67 [1] : vector<16x32xf32> to vector<16xf32>
    %139 = vector.shape_cast %138 : vector<16xf32> to vector<16x1xf32>
    %140 = vector.broadcast %139 : vector<16x1xf32> to vector<16x32xf32>
    %141 = arith.subf %137, %140 : vector<16x32xf32>
    %142 = math.exp %141 : vector<16x32xf32>
    %cst_68 = arith.constant dense<0.000000e+00> : vector<16xf32>
    %143 = vector.multi_reduction <add>, %142, %cst_68 [1] : vector<16x32xf32> to vector<16xf32>
    %144 = vector.shape_cast %143 : vector<16xf32> to vector<16x1xf32>
    %145 = tpu.reciprocal %144 {approx = true} : vector<16x1xf32> -> vector<16x1xf32>
    %146 = vector.broadcast %145 : vector<16x1xf32> to vector<16x32xf32>
    %147 = arith.mulf %142, %146 : vector<16x32xf32>
    %148 = arith.truncf %147 : vector<16x32xf32> to vector<16x32xbf16>
    %cst_69 = arith.constant dense<0.000000e+00> : vector<16x16xf32>
    %149 = tpu.matmul %148, %132, %cst_69 {dimension_numbers = #tpu.dot_dimension_numbers<[1], [0], [0], [1], [0, 0, 1, 1], [], []>} : vector<16x32xbf16>, vector<32x16xbf16>, vector<16x16xf32> -> vector<16x16xf32>
    %150 = vector.extract_strided_slice %109 {offsets = [0, 16], sizes = [16, 16], strides = [1, 1]} : vector<16x32xf32> to vector<16x16xf32>
    %151 = arith.truncf %150 : vector<16x16xf32> to vector<16x16xbf16>
    %152 = vector.extract_strided_slice %118 {offsets = [0, 16], sizes = [32, 16], strides = [1, 1]} : vector<32x32xf32> to vector<32x16xf32>
    %153 = arith.truncf %152 : vector<32x16xf32> to vector<32x16xbf16>
    %154 = vector.extract_strided_slice %119 {offsets = [0, 16], sizes = [32, 16], strides = [1, 1]} : vector<32x32xf32> to vector<32x16xf32>
    %155 = arith.truncf %154 : vector<32x16xf32> to vector<32x16xbf16>
    %cst_70 = arith.constant dense<0.000000e+00> : vector<16x32xf32>
    %156 = tpu.matmul %151, %153, %cst_70 {dimension_numbers = #tpu.dot_dimension_numbers<[1], [1], [0], [0], [0, 0, 1, 0], [], []>} : vector<16x16xbf16>, vector<32x16xbf16>, vector<16x32xf32> -> vector<16x32xf32>
    %cst_71 = arith.constant 2.500000e-01 : f32
    %157 = vector.broadcast %cst_71 : f32 to vector<16x32xf32>
    %158 = arith.mulf %156, %157 : vector<16x32xf32>
    %cst_72 = arith.constant -1.000000e+09 : f32
    %159 = vector.broadcast %cst_72 : f32 to vector<16x32xf32>
    %160 = arith.select %126, %159, %158 : vector<16x32xi1>, vector<16x32xf32>
    %cst_73 = arith.constant dense<0xFF800000> : vector<16xf32>
    %161 = vector.multi_reduction <maximumf>, %160, %cst_73 [1] : vector<16x32xf32> to vector<16xf32>
    %162 = vector.shape_cast %161 : vector<16xf32> to vector<16x1xf32>
    %163 = vector.broadcast %162 : vector<16x1xf32> to vector<16x32xf32>
    %164 = arith.subf %160, %163 : vector<16x32xf32>
    %165 = math.exp %164 : vector<16x32xf32>
    %cst_74 = arith.constant dense<0.000000e+00> : vector<16xf32>
    %166 = vector.multi_reduction <add>, %165, %cst_74 [1] : vector<16x32xf32> to vector<16xf32>
    %167 = vector.shape_cast %166 : vector<16xf32> to vector<16x1xf32>
    %168 = tpu.reciprocal %167 {approx = true} : vector<16x1xf32> -> vector<16x1xf32>
    %169 = vector.broadcast %168 : vector<16x1xf32> to vector<16x32xf32>
    %170 = arith.mulf %165, %169 : vector<16x32xf32>
    %171 = arith.truncf %170 : vector<16x32xf32> to vector<16x32xbf16>
    %cst_75 = arith.constant dense<0.000000e+00> : vector<16x16xf32>
    %172 = tpu.matmul %171, %155, %cst_75 {dimension_numbers = #tpu.dot_dimension_numbers<[1], [0], [0], [1], [0, 0, 1, 1], [], []>} : vector<16x32xbf16>, vector<32x16xbf16>, vector<16x16xf32> -> vector<16x16xf32>
    %173 = vector.extract_strided_slice %147 {offsets = [0, 0], sizes = [8, 16], strides = [1, 1]} : vector<16x32xf32> to vector<8x16xf32>
    %174 = vector.extract_strided_slice %170 {offsets = [0, 0], sizes = [8, 16], strides = [1, 1]} : vector<16x32xf32> to vector<8x16xf32>
    %175 = vector.extract_strided_slice %147 {offsets = [8, 16], sizes = [8, 16], strides = [1, 1]} : vector<16x32xf32> to vector<8x16xf32>
    %176 = vector.extract_strided_slice %170 {offsets = [8, 16], sizes = [8, 16], strides = [1, 1]} : vector<16x32xf32> to vector<8x16xf32>
    %177 = tpu.concatenate %173, %174, %175, %176 in 0 : vector<8x16xf32>, vector<8x16xf32>, vector<8x16xf32>, vector<8x16xf32> -> vector<32x16xf32>
    %cst_76 = arith.constant 0.000000e+00 : f32
    %178 = vector.broadcast %cst_76 : f32 to vector<32x112xf32>
    %179 = tpu.concatenate %177, %178 in 1 : vector<32x16xf32>, vector<32x112xf32> -> vector<32x128xf32>
    %c0_77 = arith.constant 0 : index
    %c0_78 = arith.constant 0 : index
    %c0_79 = arith.constant 0 : index
    %180 = vector.load %arg22[%c0_77, %c0_78, %c0_79] : memref<1x32x128xf32, #tpu.memory_space<vmem>>, vector<1x32x128xf32>
    %181 = vector.shape_cast %180 : vector<1x32x128xf32> to vector<32x128xf32>
    %182 = vector.shape_cast %179 : vector<32x128xf32> to vector<1x32x128xf32>
    tpu.vector_store %arg22[%c0_77, %c0_78, %c0_79], %182 {strides = array<i32>} : memref<1x32x128xf32, #tpu.memory_space<vmem>>, vector<1x32x128xf32>,
    %183 = tpu.concatenate %149, %172 in 1 : vector<16x16xf32>, vector<16x16xf32> -> vector<16x32xf32>
    %184 = arith.truncf %183 : vector<16x32xf32> to vector<16x32xbf16>
    %cst_80 = arith.constant dense<0.000000e+00> : vector<16x32xf32>
    %185 = tpu.matmul %184, %121, %cst_80 {dimension_numbers = #tpu.dot_dimension_numbers<[1], [0], [0], [1], [0, 0, 1, 1], [], []>} : vector<16x32xbf16>, vector<32x32xbf16>, vector<16x32xf32> -> vector<16x32xf32>
    %186 = vector.broadcast %123 : vector<1x32xf32> to vector<16x32xf32>
    %187 = arith.addf %185, %186 : vector<16x32xf32>
    %188 = arith.addf %187, %101 : vector<16x32xf32>
    %cst_81 = arith.constant dense<0.000000e+00> : vector<16xf32>
    %189 = vector.multi_reduction <add>, %188, %cst_81 [1] : vector<16x32xf32> to vector<16xf32>
    %190 = vector.shape_cast %189 : vector<16xf32> to vector<16x1xf32>
    %cst_82 = arith.constant 3.200000e+01 : f32
    %191 = vector.broadcast %cst_82 : f32 to vector<16x1xf32>
    %192 = arith.divf %190, %191 : vector<16x1xf32>
    %193 = vector.broadcast %192 : vector<16x1xf32> to vector<16x32xf32>
    %194 = arith.subf %188, %193 : vector<16x32xf32>
    %195 = arith.mulf %194, %194 : vector<16x32xf32>
    %cst_83 = arith.constant dense<0.000000e+00> : vector<16xf32>
    %196 = vector.multi_reduction <add>, %195, %cst_83 [1] : vector<16x32xf32> to vector<16xf32>
    %197 = vector.shape_cast %196 : vector<16xf32> to vector<16x1xf32>
    %cst_84 = arith.constant 3.200000e+01 : f32
    %198 = vector.broadcast %cst_84 : f32 to vector<16x1xf32>
    %199 = arith.divf %197, %198 : vector<16x1xf32>
    %200 = vector.broadcast %192 : vector<16x1xf32> to vector<16x32xf32>
    %201 = arith.subf %188, %200 : vector<16x32xf32>
    %cst_85 = arith.constant 9.99999974E-6 : f32
    %202 = vector.broadcast %cst_85 : f32 to vector<16x1xf32>
    %203 = arith.addf %199, %202 : vector<16x1xf32>
    %204 = math.rsqrt %203 : vector<16x1xf32>
    %205 = vector.broadcast %204 : vector<16x1xf32> to vector<16x32xf32>
    %206 = arith.mulf %201, %205 : vector<16x32xf32>
    %207 = arith.truncf %206 : vector<16x32xf32> to vector<16x32xbf16>
    %c0_86 = arith.constant 0 : index
    %c0_87 = arith.constant 0 : index
    %c0_88 = arith.constant 0 : index
    %208 = vector.load %arg15[%c0_86, %c0_87, %c0_88] : memref<1x32x64xbf16, #tpu.memory_space<vmem>>, vector<1x32x64xbf16>
    %209 = vector.shape_cast %208 : vector<1x32x64xbf16> to vector<32x64xbf16>
    %cst_89 = arith.constant dense<0.000000e+00> : vector<16x64xf32>
    %210 = tpu.matmul %207, %209, %cst_89 {dimension_numbers = #tpu.dot_dimension_numbers<[1], [0], [0], [1], [0, 0, 1, 1], [], []>} : vector<16x32xbf16>, vector<32x64xbf16>, vector<16x64xf32> -> vector<16x64xf32>
    %c0_90 = arith.constant 0 : index
    %c0_91 = arith.constant 0 : index
    %c0_92 = arith.constant 0 : index
    %211 = vector.load %arg16[%c0_90, %c0_91, %c0_92] : memref<1x1x64xf32, #tpu.memory_space<vmem>>, vector<1x1x64xf32>
    %212 = vector.shape_cast %211 : vector<1x1x64xf32> to vector<1x64xf32>
    %213 = vector.broadcast %212 : vector<1x64xf32> to vector<16x64xf32>
    %214 = arith.addf %210, %213 : vector<16x64xf32>
    %cst_93 = arith.constant 0.000000e+00 : f32
    %215 = vector.broadcast %cst_93 : f32 to vector<16x64xf32>
    %216 = arith.maximumf %214, %215 : vector<16x64xf32>
    %217 = arith.truncf %216 : vector<16x64xf32> to vector<16x64xbf16>
    %c0_94 = arith.constant 0 : index
    %c0_95 = arith.constant 0 : index
    %c0_96 = arith.constant 0 : index
    %218 = vector.load %arg17[%c0_94, %c0_95, %c0_96] : memref<1x64x32xbf16, #tpu.memory_space<vmem>>, vector<1x64x32xbf16>
    %219 = vector.shape_cast %218 : vector<1x64x32xbf16> to vector<64x32xbf16>
    %cst_97 = arith.constant dense<0.000000e+00> : vector<16x32xf32>
    %220 = tpu.matmul %217, %219, %cst_97 {dimension_numbers = #tpu.dot_dimension_numbers<[1], [0], [0], [1], [0, 0, 1, 1], [], []>} : vector<16x64xbf16>, vector<64x32xbf16>, vector<16x32xf32> -> vector<16x32xf32>
    %c0_98 = arith.constant 0 : index
    %c0_99 = arith.constant 0 : index
    %c0_100 = arith.constant 0 : index
    %221 = vector.load %arg18[%c0_98, %c0_99, %c0_100] : memref<1x1x32xf32, #tpu.memory_space<vmem>>, vector<1x1x32xf32>
    %222 = vector.shape_cast %221 : vector<1x1x32xf32> to vector<1x32xf32>
    %223 = vector.broadcast %222 : vector<1x32xf32> to vector<16x32xf32>
    %224 = arith.addf %220, %223 : vector<16x32xf32>
    %225 = arith.addf %224, %206 : vector<16x32xf32>
    %cst_101 = arith.constant dense<0.000000e+00> : vector<16xf32>
    %226 = vector.multi_reduction <add>, %225, %cst_101 [1] : vector<16x32xf32> to vector<16xf32>
    %227 = vector.shape_cast %226 : vector<16xf32> to vector<16x1xf32>
    %cst_102 = arith.constant 3.200000e+01 : f32
    %228 = vector.broadcast %cst_102 : f32 to vector<16x1xf32>
    %229 = arith.divf %227, %228 : vector<16x1xf32>
    %230 = vector.broadcast %229 : vector<16x1xf32> to vector<16x32xf32>
    %231 = arith.subf %225, %230 : vector<16x32xf32>
    %232 = arith.mulf %231, %231 : vector<16x32xf32>
    %cst_103 = arith.constant dense<0.000000e+00> : vector<16xf32>
    %233 = vector.multi_reduction <add>, %232, %cst_103 [1] : vector<16x32xf32> to vector<16xf32>
    %234 = vector.shape_cast %233 : vector<16xf32> to vector<16x1xf32>
    %cst_104 = arith.constant 3.200000e+01 : f32
    %235 = vector.broadcast %cst_104 : f32 to vector<16x1xf32>
    %236 = arith.divf %234, %235 : vector<16x1xf32>
    %237 = vector.broadcast %229 : vector<16x1xf32> to vector<16x32xf32>
    %238 = arith.subf %225, %237 : vector<16x32xf32>
    %cst_105 = arith.constant 9.99999974E-6 : f32
    %239 = vector.broadcast %cst_105 : f32 to vector<16x1xf32>
    %240 = arith.addf %236, %239 : vector<16x1xf32>
    %241 = math.rsqrt %240 : vector<16x1xf32>
    %242 = vector.broadcast %241 : vector<16x1xf32> to vector<16x32xf32>
    %243 = arith.mulf %238, %242 : vector<16x32xf32>
    %c0_106 = arith.constant 0 : index
    %c0_107 = arith.constant 0 : index
    %244 = vector.load %arg23[%c0_106, %c0_107] : memref<16x32xf32, #tpu.memory_space<vmem>>, vector<16x32xf32>
    tpu.vector_store %arg23[%c0_106, %c0_107], %243 {strides = array<i32>} : memref<16x32xf32, #tpu.memory_space<vmem>>, vector<16x32xf32>,
    %c1_i32 = arith.constant 1 : i32
    %245 = arith.cmpi eq, %arg0, %c1_i32 : i32
    %246 = arith.extui %245 : i1 to i32
    %c0_i32_108 = arith.constant 0 : i32
    %247 = arith.cmpi ne, %246, %c0_i32_108 : i32
    scf.if %247 {
      %248 = arith.truncf %243 : vector<16x32xf32> to vector<16x32xbf16>
      %c0_109 = arith.constant 0 : index
      %c0_110 = arith.constant 0 : index
      %249 = vector.load %arg19[%c0_109, %c0_110] : memref<32x128xbf16, #tpu.memory_space<vmem>>, vector<32x128xbf16>
      %cst_111 = arith.constant dense<0.000000e+00> : vector<16x128xf32>
      %250 = tpu.matmul %248, %249, %cst_111 {dimension_numbers = #tpu.dot_dimension_numbers<[1], [0], [0], [1], [0, 0, 1, 1], [], []>} : vector<16x32xbf16>, vector<32x128xbf16>, vector<16x128xf32> -> vector<16x128xf32>
      %c0_112 = arith.constant 0 : index
      %c0_113 = arith.constant 0 : index
      %251 = vector.load %arg20[%c0_112, %c0_113] : memref<16x128xf32, #tpu.memory_space<vmem>>, vector<16x128xf32>
      tpu.vector_store %arg20[%c0_112, %c0_113], %250 {strides = array<i32>} : memref<16x128xf32, #tpu.memory_space<vmem>>, vector<16x128xf32>,
    } else {
    }
    return
  }
  func.func @transform_0(%arg0: i32) -> (i32, i32) {
    %c0_i32 = arith.constant 0 : i32
    %c0_i32_0 = arith.constant 0 : i32
    %c0_i32_1 = arith.constant 0 : i32
    return %c0_i32, %c0_i32_0 : i32, i32
  }
  func.func @transform_1(%arg0: i32) -> (i32, i32) {
    %c0_i32 = arith.constant 0 : i32
    %c0_i32_0 = arith.constant 0 : i32
    %c0_i32_1 = arith.constant 0 : i32
    return %c0_i32, %c0_i32_0 : i32, i32
  }
  func.func @transform_2(%arg0: i32) -> (i32, i32) {
    %c0_i32 = arith.constant 0 : i32
    %c0_i32_0 = arith.constant 0 : i32
    %c0_i32_1 = arith.constant 0 : i32
    return %c0_i32, %c0_i32_0 : i32, i32
  }
  func.func @transform_3(%arg0: i32) -> (i32, i32) {
    %c0_i32 = arith.constant 0 : i32
    %c0_i32_0 = arith.constant 0 : i32
    %c0_i32_1 = arith.constant 0 : i32
    return %c0_i32, %c0_i32_0 : i32, i32
  }
  func.func @transform_4(%arg0: i32) -> (i32, i32, i32) {
    %c0_i32 = arith.constant 0 : i32
    %c0_i32_0 = arith.constant 0 : i32
    %c0_i32_1 = arith.constant 0 : i32
    return %arg0, %c0_i32, %c0_i32_0 : i32, i32, i32
  }
  func.func @transform_5(%arg0: i32) -> (i32, i32, i32) {
    %c0_i32 = arith.constant 0 : i32
    %c0_i32_0 = arith.constant 0 : i32
    %c0_i32_1 = arith.constant 0 : i32
    return %arg0, %c0_i32, %c0_i32_0 : i32, i32, i32
  }
  func.func @transform_6(%arg0: i32) -> (i32, i32, i32) {
    %c0_i32 = arith.constant 0 : i32
    %c0_i32_0 = arith.constant 0 : i32
    %c0_i32_1 = arith.constant 0 : i32
    return %arg0, %c0_i32, %c0_i32_0 : i32, i32, i32
  }
  func.func @transform_7(%arg0: i32) -> (i32, i32, i32) {
    %c0_i32 = arith.constant 0 : i32
    %c0_i32_0 = arith.constant 0 : i32
    %c0_i32_1 = arith.constant 0 : i32
    return %arg0, %c0_i32, %c0_i32_0 : i32, i32, i32
  }
  func.func @transform_8(%arg0: i32) -> (i32, i32, i32) {
    %c0_i32 = arith.constant 0 : i32
    %c0_i32_0 = arith.constant 0 : i32
    %c0_i32_1 = arith.constant 0 : i32
    return %arg0, %c0_i32, %c0_i32_0 : i32, i32, i32
  }
  func.func @transform_9(%arg0: i32) -> (i32, i32, i32) {
    %c0_i32 = arith.constant 0 : i32
    %c0_i32_0 = arith.constant 0 : i32
    %c0_i32_1 = arith.constant 0 : i32
    return %arg0, %c0_i32, %c0_i32_0 : i32, i32, i32
  }
  func.func @transform_10(%arg0: i32) -> (i32, i32, i32) {
    %c0_i32 = arith.constant 0 : i32
    %c0_i32_0 = arith.constant 0 : i32
    %c0_i32_1 = arith.constant 0 : i32
    return %arg0, %c0_i32, %c0_i32_0 : i32, i32, i32
  }
  func.func @transform_11(%arg0: i32) -> (i32, i32, i32) {
    %c0_i32 = arith.constant 0 : i32
    %c0_i32_0 = arith.constant 0 : i32
    %c0_i32_1 = arith.constant 0 : i32
    return %arg0, %c0_i32, %c0_i32_0 : i32, i32, i32
  }
  func.func @transform_12(%arg0: i32) -> (i32, i32, i32) {
    %c0_i32 = arith.constant 0 : i32
    %c0_i32_0 = arith.constant 0 : i32
    %c0_i32_1 = arith.constant 0 : i32
    return %arg0, %c0_i32, %c0_i32_0 : i32, i32, i32
  }
  func.func @transform_13(%arg0: i32) -> (i32, i32, i32) {
    %c0_i32 = arith.constant 0 : i32
    %c0_i32_0 = arith.constant 0 : i32
    %c0_i32_1 = arith.constant 0 : i32
    return %arg0, %c0_i32, %c0_i32_0 : i32, i32, i32
  }
  func.func @transform_14(%arg0: i32) -> (i32, i32, i32) {
    %c0_i32 = arith.constant 0 : i32
    %c0_i32_0 = arith.constant 0 : i32
    %c0_i32_1 = arith.constant 0 : i32
    return %arg0, %c0_i32, %c0_i32_0 : i32, i32, i32
  }
  func.func @transform_15(%arg0: i32) -> (i32, i32, i32) {
    %c0_i32 = arith.constant 0 : i32
    %c0_i32_0 = arith.constant 0 : i32
    %c0_i32_1 = arith.constant 0 : i32
    return %arg0, %c0_i32, %c0_i32_0 : i32, i32, i32
  }
  func.func @transform_16(%arg0: i32) -> (i32, i32, i32) {
    %c0_i32 = arith.constant 0 : i32
    %c0_i32_0 = arith.constant 0 : i32
    %c0_i32_1 = arith.constant 0 : i32
    return %arg0, %c0_i32, %c0_i32_0 : i32, i32, i32
  }
  func.func @transform_17(%arg0: i32) -> (i32, i32, i32) {
    %c0_i32 = arith.constant 0 : i32
    %c0_i32_0 = arith.constant 0 : i32
    %c0_i32_1 = arith.constant 0 : i32
    return %arg0, %c0_i32, %c0_i32_0 : i32, i32, i32
  }
  func.func @transform_18(%arg0: i32) -> (i32, i32) {
    %c0_i32 = arith.constant 0 : i32
    %c0_i32_0 = arith.constant 0 : i32
    %c0_i32_1 = arith.constant 0 : i32
    return %c0_i32, %c0_i32_0 : i32, i32
  }
  func.func @transform_19(%arg0: i32) -> (i32, i32) {
    %c0_i32 = arith.constant 0 : i32
    %c0_i32_0 = arith.constant 0 : i32
    %c0_i32_1 = arith.constant 0 : i32
    return %c0_i32, %c0_i32_0 : i32, i32
  }
  func.func @transform_20(%arg0: i32) -> (i32, i32, i32) {
    %c0_i32 = arith.constant 0 : i32
    %c0_i32_0 = arith.constant 0 : i32
    %c0_i32_1 = arith.constant 0 : i32
    return %arg0, %c0_i32, %c0_i32_0 : i32, i32, i32
  }
  func.func @transform_21(%arg0: i32) -> (i32, i32, i32) {
    %c0_i32 = arith.constant 0 : i32
    %c0_i32_0 = arith.constant 0 : i32
    %c0_i32_1 = arith.constant 0 : i32
    return %arg0, %c0_i32, %c0_i32_0 : i32, i32, i32
  }
}

</mosaic_0001>

<llo_original>
// kernel: eq.10
$region0: #{eq.10}
  %s0 = inlined_call_operand.vmem [shape: s32[2,8], index: 0, kind: input, shape index: {}]
  %s1 = inlined_call_operand.vmem [shape: s32[16], index: 1, kind: output, shape index: {}]
  $region1: #{eq.10} parent=0
    #allocation0 [shape = 'u8[4096]{0}', space=vmem, size = 0x1000, scoped, tag = 'scoped mem for output reshape']
    #allocation1 [shape = 'u8[4096]{0}', space=vmem, size = 0x1000, scoped, tag = 'scoped mem for input reshape']
    %s3 = sshllo.u32 0, 2
    %v4 = vld [vmem:[%s0] sm:%s3]
    %5 = vst [vmem:[#allocation1] sm:%s3] %v4
    %v6 = vld [vmem:[#allocation1] sm:$0x1]
    %vm7 = vcmask 64512
    %8 = vst.msk [vmem:[#allocation0] sm:$0x1] %vm7, %v6
    %s9 = scalar_lea.vmem [#allocation1], 1
    %v10 = vld [vmem:[%s9] sm:$0x1]
    %11 = vrot.lane.b32.xlu0 %v10, 8
    %v12 = vpop.permute.xlu0 %11
    %vm13 = vcmask 130112
    %14 = vst.msk [vmem:[#allocation0] sm:$0x1] %vm13, %v12
    %s16 = sshllo.u32 0, 1
    %v18 = vld [vmem:[#allocation0] sm:%s16]
    %s19 = sshllo.u32 0, 1
    %20 = vst [vmem:[%s1] sm:%s19] %v18

// kernel: ne.11
$region0: #{ne.11}
  %s0 = inlined_call_operand.vmem [shape: s32[2,16], index: 0, kind: input, shape index: {}]
  %s1 = inlined_call_operand.vmem [shape: s32[32], index: 1, kind: output, shape index: {}]
  $region1: #{ne.11} parent=0
    #allocation0 [shape = 'u8[4096]{0}', space=vmem, size = 0x1000, scoped, tag = 'scoped mem for output reshape']
    #allocation1 [shape = 'u8[4096]{0}', space=vmem, size = 0x1000, scoped, tag = 'scoped mem for input reshape']
    %s3 = sshllo.u32 0, 2
    %v4 = vld [vmem:[%s0] sm:%s3]
    %5 = vst [vmem:[#allocation1] sm:%s3] %v4
    %v6 = vld [vmem:[#allocation1] sm:$0x1]
    %vm7 = vcmask 130048
    %8 = vst.msk [vmem:[#allocation0] sm:$0x1] %vm7, %v6
    %s9 = scalar_lea.vmem [#allocation1], 1
    %v10 = vld [vmem:[%s9] sm:$0x1]
    %11 = vrot.lane.b32.xlu0 %v10, 16
    %v12 = vpop.permute.xlu0 %11
    %vm13 = vcmask 261248
    %14 = vst.msk [vmem:[#allocation0] sm:$0x1] %vm13, %v12
    %s16 = sshllo.u32 0, 1
    %v18 = vld [vmem:[#allocation0] sm:%s16]
    %s19 = sshllo.u32 0, 1
    %20 = vst [vmem:[%s1] sm:%s19] %v18

// kernel: decoder_forward.1
$region0: #{decoder_forward.1}
  #allocation0 [shape = 'u32[]', space=smem, size = 0x4, offset = 0x4, fixed_abs, tag = 'smem constant byte address 0x4 - core index']
  #allocation1 [shape = 'u32[144,128]{1,0:T(1,128)}', space=vmem, size = 0x12000, scoped, tag = 'internal scratch']
  #allocation2 [shape = 'f32[16,32]{1,0:T(8,128)}', space=vmem, size = 0x2000, scoped, tag = 'scratch operand']
  %s0 = inlined_call_operand.hbm [shape: f32[16,32], index: 0, kind: input, shape index: {}]
  %s1 = inlined_call_operand.hbm [shape: f32[16,16], index: 1, kind: input, shape index: {}]
  %s2 = inlined_call_operand.hbm [shape: f32[16,32], index: 2, kind: input, shape index: {}]
  %s3 = inlined_call_operand.hbm [shape: bf16[32,64], index: 3, kind: input, shape index: {}]
  %s4 = inlined_call_operand.hbm [shape: bf16[2,32,96], index: 4, kind: input, shape index: {}]
  %s5 = inlined_call_operand.hbm [shape: f32[2,1,96], index: 5, kind: input, shape index: {}]
  %s6 = inlined_call_operand.hbm [shape: bf16[2,32,32], index: 6, kind: input, shape index: {}]
  %s7 = inlined_call_operand.hbm [shape: f32[2,1,32], index: 7, kind: input, shape index: {}]
  %s8 = inlined_call_operand.hbm [shape: bf16[2,32,32], index: 8, kind: input, shape index: {}]
  %s9 = inlined_call_operand.hbm [shape: f32[2,1,32], index: 9, kind: input, shape index: {}]
  %s10 = inlined_call_operand.hbm [shape: bf16[2,64,64], index: 10, kind: input, shape index: {}]
  %s11 = inlined_call_operand.hbm [shape: f32[2,1,64], index: 11, kind: input, shape index: {}]
  %s12 = inlined_call_operand.hbm [shape: bf16[2,32,32], index: 12, kind: input, shape index: {}]
  %s13 = inlined_call_operand.hbm [shape: f32[2,1,32], index: 13, kind: input, shape index: {}]
  %s14 = inlined_call_operand.hbm [shape: bf16[2,32,64], index: 14, kind: input, shape index: {}]
  %s15 = inlined_call_operand.hbm [shape: f32[2,1,64], index: 15, kind: input, shape index: {}]
  %s16 = inlined_call_operand.hbm [shape: bf16[2,64,32], index: 16, kind: input, shape index: {}]
  %s17 = inlined_call_operand.hbm [shape: f32[2,1,32], index: 17, kind: input, shape index: {}]
  %s18 = inlined_call_operand.hbm [shape: bf16[32,128], index: 18, kind: input, shape index: {}]
  %s19 = inlined_call_operand.hbm [shape: f32[16,128], index: 19, kind: output, shape index: {0}]
  %s20 = inlined_call_operand.hbm [shape: f32[2,32,128], index: 20, kind: output, shape index: {1}]
  %s21 = inlined_call_operand.hbm [shape: f32[2,32,128], index: 21, kind: output, shape index: {2}]
  %22 = xla_tuple %s19, %s20, %s21
  %s23 = sld [smem:[#allocation0]]
  $region209: #{decoder_forward.1} parent=0
    _
  %s25 = ssub.s32 1, %s23
  %s26 = scalar_select 0, %s25, %s23
  $region1: #{decoder_forward.1} parent=0
    #allocation3 [shape = 'u8[8192]{0}', space=vmem, size = 0x2000, scoped, tag = 'input window, operand 0, single buffered']
    #allocation4 [shape = 's32[2]{0}', space=sflag, size = 0x8, scoped, tag = 'scoped memory for decoder_forward.1']
    #allocation5 [shape = 's32[2]{0}', space=sflag, size = 0x8, scoped, tag = 'scoped memory for decoder_forward.1']
    #allocation6 [shape = 'u8[8192]{0}', space=vmem, size = 0x2000, scoped, tag = 'input window, operand 1, single buffered']
    #allocation7 [shape = 's32[1]{0}', space=sflag, size = 0x4, scoped, tag = 'scoped memory for decoder_forward.1']
    #allocation8 [shape = 'u8[8192]{0}', space=vmem, size = 0x2000, scoped, tag = 'input window, operand 2, single buffered']
    #allocation9 [shape = 'u8[8192]{0}', space=vmem, size = 0x2000, scoped, tag = 'input window, operand 3, single buffered']
    #allocation10 [shape = 's32[1]{0}', space=sflag, size = 0x4, scoped, tag = 'scoped memory for decoder_forward.1']
    #allocation11 [shape = 'u8[16384]{0}', space=vmem, size = 0x4000, scoped, tag = 'input window, operand 4']
    #allocation12 [shape = 'u8[1024]{0}', space=vmem, size = 0x400, scoped, tag = 'input window, operand 5']
    #allocation13 [shape = 'u8[16384]{0}', space=vmem, size = 0x4000, scoped, tag = 'input window, operand 6']
    #allocation14 [shape = 'u8[1024]{0}', space=vmem, size = 0x400, scoped, tag = 'input window, operand 7']
    #allocation15 [shape = 'u8[16384]{0}', space=vmem, size = 0x4000, scoped, tag = 'input window, operand 8']
    #allocation16 [shape = 'u8[1024]{0}', space=vmem, size = 0x400, scoped, tag = 'input window, operand 9']
    #allocation17 [shape = 'u8[32768]{0}', space=vmem, size = 0x8000, scoped, tag = 'input window, operand 10']
    #allocation18 [shape = 'u8[1024]{0}', space=vmem, size = 0x400, scoped, tag = 'input window, operand 11']
    #allocation19 [shape = 'u8[16384]{0}', space=vmem, size = 0x4000, scoped, tag = 'input window, operand 12']
    #allocation20 [shape = 'u8[1024]{0}', space=vmem, size = 0x400, scoped, tag = 'input window, operand 13']
    #allocation21 [shape = 'u8[16384]{0}', space=vmem, size = 0x4000, scoped, tag = 'input window, operand 14']
    #allocation22 [shape = 'u8[1024]{0}', space=vmem, size = 0x400, scoped, tag = 'input window, operand 15']
    #allocation23 [shape = 'u8[32768]{0}', space=vmem, size = 0x8000, scoped, tag = 'input window, operand 16']
    #allocation24 [shape = 'u8[1024]{0}', space=vmem, size = 0x400, scoped, tag = 'input window, operand 17']
    #allocation25 [shape = 'u8[8192]{0}', space=vmem, size = 0x2000, scoped, tag = 'input window, operand 18, single buffered']
    #allocation26 [shape = 'u8[8192]{0}', space=vmem, size = 0x2000, scoped, tag = 'output window, operand 0, single buffered']
    #allocation27 [shape = 'u8[32768]{0}', space=vmem, size = 0x8000, scoped, tag = 'output window, operand 1']
    #allocation28 [shape = 's32[2]{0}', space=sflag, size = 0x8, scoped, tag = 'scoped memory for decoder_forward.1']
    #allocation29 [shape = 'u8[32768]{0}', space=vmem, size = 0x8000, scoped, tag = 'output window, operand 2']
    %27 = vsyncpa [#allocation4], 0
    %28 = vsyncpa [#allocation7], 0
    %29 = vsyncpa [#allocation10], 0
    %30 = vsyncpa [#allocation5], 0
    %31 = vsyncpa [#allocation28], 0
    %s32 = scalar_lea.sflag [#allocation28], 1
    %33 = vsyncpa %s32, 0
    loop: start=0, step=1, limit=4
    $region2: #{decoder_forward.1} parent=1 // loop_pre_header
      _
    $region3: #{decoder_forward.1} parent=1 // loop_header
      %s35 = sphi 0, %s39
      %p36 = scmp.ge.s32.totalorder %s35, 4
      %s43 = sphi 0, %s43
      %s45 = sphi 0, %s43
      %s46 = sphi 0, %s45
      %s60 = sphi 0, %s46
      %s64 = sphi 0, %s64
      %s66 = sphi 0, %s64
      %s67 = sphi 0, %s66
      %s81 = sphi 0, %s67
      %s85 = sphi 0, %s85
      %s87 = sphi 0, %s85
      %s88 = sphi 0, %s87
      %s102 = sphi 0, %s88
      %s106 = sphi 0, %s106
      %s108 = sphi 0, %s106
      %s109 = sphi 0, %s108
      %s123 = sphi 0, %s109
      %s129 = sphi 0, %s131
      %s132 = sphi 0, %s129
      %s133 = sphi 0, %s132
      %s149 = sphi 0, %s133
      %s155 = sphi 0, %s157
      %s158 = sphi 0, %s155
      %s159 = sphi 0, %s158
      %s175 = sphi 0, %s159
      %s181 = sphi 0, %s183
      %s184 = sphi 0, %s181
      %s185 = sphi 0, %s184
      %s201 = sphi 0, %s185
      %s207 = sphi 0, %s209
      %s210 = sphi 0, %s207
      %s211 = sphi 0, %s210
      %s227 = sphi 0, %s211
      %s233 = sphi 0, %s235
      %s236 = sphi 0, %s233
      %s237 = sphi 0, %s236
      %s253 = sphi 0, %s237
      %s259 = sphi 0, %s261
      %s262 = sphi 0, %s259
      %s263 = sphi 0, %s262
      %s279 = sphi 0, %s263
      %s285 = sphi 0, %s287
      %s288 = sphi 0, %s285
      %s289 = sphi 0, %s288
      %s305 = sphi 0, %s289
      %s311 = sphi 0, %s313
      %s314 = sphi 0, %s311
      %s315 = sphi 0, %s314
      %s331 = sphi 0, %s315
      %s337 = sphi 0, %s339
      %s340 = sphi 0, %s337
      %s341 = sphi 0, %s340
      %s357 = sphi 0, %s341
      %s363 = sphi 0, %s365
      %s366 = sphi 0, %s363
      %s367 = sphi 0, %s366
      %s383 = sphi 0, %s367
      %s389 = sphi 0, %s391
      %s392 = sphi 0, %s389
      %s393 = sphi 0, %s392
      %s409 = sphi 0, %s393
      %s415 = sphi 0, %s417
      %s418 = sphi 0, %s415
      %s419 = sphi 0, %s418
      %s435 = sphi 0, %s419
      %s441 = sphi 0, %s443
      %s444 = sphi 0, %s441
      %s445 = sphi 0, %s444
      %s461 = sphi 0, %s445
      %s467 = sphi 0, %s469
      %s470 = sphi 0, %s467
      %s471 = sphi 0, %s470
      %s487 = sphi 0, %s471
      %s491 = sphi 0, %s491
      %s493 = sphi 0, %s491
      %s494 = sphi 0, %s493
      %s508 = sphi 0, %s494
      %s512 = sphi 0, %s512
      %s514 = sphi 0, %s512
      %s515 = sphi 0, %s514
      %s529 = sphi 0, %s515
      %s535 = sphi 0, %s537
      %s538 = sphi 0, %s535
      %s539 = sphi 0, %s538
      %s555 = sphi 0, %s539
      %s561 = sphi 0, %s563
      %s564 = sphi 0, %s561
      %s565 = sphi 0, %s564
      %s581 = sphi 0, %s565
    $region4: #{decoder_forward.1} parent=1 // loop_header_branch
      %38 = sbr.rel (%p36) target = $region8
    $region5: #{decoder_forward.1} parent=1 // loop_body
      %s40 = ssub.s32 %s35, 1
      %s41 = ssub.s32 %s35, 2
      %s42 = sadd.s32 %s35, 1
      %s44 = sadd.s32 %s43, 1
      %p47 = scmp.eq.s32.totalorder %s35, 1
      %p48 = scmp.ne.s32.totalorder %s43, %s45
      %p49 = scmp.eq.s32.totalorder %s35, 0
      %p50 = por %p48, %p49
      %p51 = scmp.ne.s32.totalorder %s43, %s45
      %p52 = scmp.eq.s32.totalorder %s40, 1
      %p53 = por %p51, %p52
      %p54 = scmp.ne.s32.totalorder %s45, %s46
      %p55 = scmp.eq.s32.totalorder %s40, 0
      %p56 = por %p54, %p55
      %p57 = scmp.ne.s32.totalorder %s45, %s46
      %p58 = scmp.eq.s32.totalorder %s41, 1
      %p59 = por %p57, %p58
      %p61 = scmp.ne.s32.totalorder %s46, %s60
      %p62 = scmp.eq.s32.totalorder %s41, 0
      %p63 = por %p61, %p62
      %s65 = sadd.s32 %s64, 1
      %p68 = scmp.eq.s32.totalorder %s35, 1
      %p69 = scmp.ne.s32.totalorder %s64, %s66
      %p70 = scmp.eq.s32.totalorder %s35, 0
      %p71 = por %p69, %p70
      %p72 = scmp.ne.s32.totalorder %s64, %s66
      %p73 = scmp.eq.s32.totalorder %s40, 1
      %p74 = por %p72, %p73
      %p75 = scmp.ne.s32.totalorder %s66, %s67
      %p76 = scmp.eq.s32.totalorder %s40, 0
      %p77 = por %p75, %p76
      %p78 = scmp.ne.s32.totalorder %s66, %s67
      %p79 = scmp.eq.s32.totalorder %s41, 1
      %p80 = por %p78, %p79
      %p82 = scmp.ne.s32.totalorder %s67, %s81
      %p83 = scmp.eq.s32.totalorder %s41, 0
      %p84 = por %p82, %p83
      %s86 = sadd.s32 %s85, 1
      %p89 = scmp.eq.s32.totalorder %s35, 1
      %p90 = scmp.ne.s32.totalorder %s85, %s87
      %p91 = scmp.eq.s32.totalorder %s35, 0
      %p92 = por %p90, %p91
      %p93 = scmp.ne.s32.totalorder %s85, %s87
      %p94 = scmp.eq.s32.totalorder %s40, 1
      %p95 = por %p93, %p94
      %p96 = scmp.ne.s32.totalorder %s87, %s88
      %p97 = scmp.eq.s32.totalorder %s40, 0
      %p98 = por %p96, %p97
      %p99 = scmp.ne.s32.totalorder %s87, %s88
      %p100 = scmp.eq.s32.totalorder %s41, 1
      %p101 = por %p99, %p100
      %p103 = scmp.ne.s32.totalorder %s88, %s102
      %p104 = scmp.eq.s32.totalorder %s41, 0
      %p105 = por %p103, %p104
      %s107 = sadd.s32 %s106, 1
      %p110 = scmp.eq.s32.totalorder %s35, 1
      %p111 = scmp.ne.s32.totalorder %s106, %s108
      %p112 = scmp.eq.s32.totalorder %s35, 0
      %p113 = por %p111, %p112
      %p114 = scmp.ne.s32.totalorder %s106, %s108
      %p115 = scmp.eq.s32.totalorder %s40, 1
      %p116 = por %p114, %p115
      %p117 = scmp.ne.s32.totalorder %s108, %s109
      %p118 = scmp.eq.s32.totalorder %s40, 0
      %p119 = por %p117, %p118
      %p120 = scmp.ne.s32.totalorder %s108, %s109
      %p121 = scmp.eq.s32.totalorder %s41, 1
      %p122 = por %p120, %p121
      %p124 = scmp.ne.s32.totalorder %s109, %s123
      %p125 = scmp.eq.s32.totalorder %s41, 0
      %p126 = por %p124, %p125
      %s127 = ssub.s32 %s35, %s42
      %p128 = scmp.eq.s32.totalorder %s127, 0
      %s130 = sadd.s32 %s129, 1
      %s131 = scalar_select %p128, %s129, %s130
      %p134 = pneg %p128
      %p135 = scmp.eq.s32.totalorder %s35, 1
      %p136 = por %p134, %p135
      %p137 = scmp.ne.s32.totalorder %s129, %s132
      %p138 = scmp.eq.s32.totalorder %s35, 0
      %p139 = por %p137, %p138
      %p140 = scmp.ne.s32.totalorder %s129, %s132
      %p141 = scmp.eq.s32.totalorder %s40, 1
      %p142 = por %p140, %p141
      %p143 = scmp.ne.s32.totalorder %s132, %s133
      %p144 = scmp.eq.s32.totalorder %s40, 0
      %p145 = por %p143, %p144
      %p146 = scmp.ne.s32.totalorder %s132, %s133
      %p147 = scmp.eq.s32.totalorder %s41, 1
      %p148 = por %p146, %p147
      %p150 = scmp.ne.s32.totalorder %s133, %s149
      %p151 = scmp.eq.s32.totalorder %s41, 0
      %p152 = por %p150, %p151
      %s153 = ssub.s32 %s35, %s42
      %p154 = scmp.eq.s32.totalorder %s153, 0
      %s156 = sadd.s32 %s155, 1
      %s157 = scalar_select %p154, %s155, %s156
      %p160 = pneg %p154
      %p161 = scmp.eq.s32.totalorder %s35, 1
      %p162 = por %p160, %p161
      %p163 = scmp.ne.s32.totalorder %s155, %s158
      %p164 = scmp.eq.s32.totalorder %s35, 0
      %p165 = por %p163, %p164
      %p166 = scmp.ne.s32.totalorder %s155, %s158
      %p167 = scmp.eq.s32.totalorder %s40, 1
      %p168 = por %p166, %p167
      %p169 = scmp.ne.s32.totalorder %s158, %s159
      %p170 = scmp.eq.s32.totalorder %s40, 0
      %p171 = por %p169, %p170
      %p172 = scmp.ne.s32.totalorder %s158, %s159
      %p173 = scmp.eq.s32.totalorder %s41, 1
      %p174 = por %p172, %p173
      %p176 = scmp.ne.s32.totalorder %s159, %s175
      %p177 = scmp.eq.s32.totalorder %s41, 0
      %p178 = por %p176, %p177
      %s179 = ssub.s32 %s35, %s42
      %p180 = scmp.eq.s32.totalorder %s179, 0
      %s182 = sadd.s32 %s181, 1
      %s183 = scalar_select %p180, %s181, %s182
      %p186 = pneg %p180
      %p187 = scmp.eq.s32.totalorder %s35, 1
      %p188 = por %p186, %p187
      %p189 = scmp.ne.s32.totalorder %s181, %s184
      %p190 = scmp.eq.s32.totalorder %s35, 0
      %p191 = por %p189, %p190
      %p192 = scmp.ne.s32.totalorder %s181, %s184
      %p193 = scmp.eq.s32.totalorder %s40, 1
      %p194 = por %p192, %p193
      %p195 = scmp.ne.s32.totalorder %s184, %s185
      %p196 = scmp.eq.s32.totalorder %s40, 0
      %p197 = por %p195, %p196
      %p198 = scmp.ne.s32.totalorder %s184, %s185
      %p199 = scmp.eq.s32.totalorder %s41, 1
      %p200 = por %p198, %p199
      %p202 = scmp.ne.s32.totalorder %s185, %s201
      %p203 = scmp.eq.s32.totalorder %s41, 0
      %p204 = por %p202, %p203
      %s205 = ssub.s32 %s35, %s42
      %p206 = scmp.eq.s32.totalorder %s205, 0
      %s208 = sadd.s32 %s207, 1
      %s209 = scalar_select %p206, %s207, %s208
      %p212 = pneg %p206
      %p213 = scmp.eq.s32.totalorder %s35, 1
      %p214 = por %p212, %p213
      %p215 = scmp.ne.s32.totalorder %s207, %s210
      %p216 = scmp.eq.s32.totalorder %s35, 0
      %p217 = por %p215, %p216
      %p218 = scmp.ne.s32.totalorder %s207, %s210
      %p219 = scmp.eq.s32.totalorder %s40, 1
      %p220 = por %p218, %p219
      %p221 = scmp.ne.s32.totalorder %s210, %s211
      %p222 = scmp.eq.s32.totalorder %s40, 0
      %p223 = por %p221, %p222
      %p224 = scmp.ne.s32.totalorder %s210, %s211
      %p225 = scmp.eq.s32.totalorder %s41, 1
      %p226 = por %p224, %p225
      %p228 = scmp.ne.s32.totalorder %s211, %s227
      %p229 = scmp.eq.s32.totalorder %s41, 0
      %p230 = por %p228, %p229
      %s231 = ssub.s32 %s35, %s42
      %p232 = scmp.eq.s32.totalorder %s231, 0
      %s234 = sadd.s32 %s233, 1
      %s235 = scalar_select %p232, %s233, %s234
      %p238 = pneg %p232
      %p239 = scmp.eq.s32.totalorder %s35, 1
      %p240 = por %p238, %p239
      %p241 = scmp.ne.s32.totalorder %s233, %s236
      %p242 = scmp.eq.s32.totalorder %s35, 0
      %p243 = por %p241, %p242
      %p244 = scmp.ne.s32.totalorder %s233, %s236
      %p245 = scmp.eq.s32.totalorder %s40, 1
      %p246 = por %p244, %p245
      %p247 = scmp.ne.s32.totalorder %s236, %s237
      %p248 = scmp.eq.s32.totalorder %s40, 0
      %p249 = por %p247, %p248
      %p250 = scmp.ne.s32.totalorder %s236, %s237
      %p251 = scmp.eq.s32.totalorder %s41, 1
      %p252 = por %p250, %p251
      %p254 = scmp.ne.s32.totalorder %s237, %s253
      %p255 = scmp.eq.s32.totalorder %s41, 0
      %p256 = por %p254, %p255
      %s257 = ssub.s32 %s35, %s42
      %p258 = scmp.eq.s32.totalorder %s257, 0
      %s260 = sadd.s32 %s259, 1
      %s261 = scalar_select %p258, %s259, %s260
      %p264 = pneg %p258
      %p265 = scmp.eq.s32.totalorder %s35, 1
      %p266 = por %p264, %p265
      %p267 = scmp.ne.s32.totalorder %s259, %s262
      %p268 = scmp.eq.s32.totalorder %s35, 0
      %p269 = por %p267, %p268
      %p270 = scmp.ne.s32.totalorder %s259, %s262
      %p271 = scmp.eq.s32.totalorder %s40, 1
      %p272 = por %p270, %p271
      %p273 = scmp.ne.s32.totalorder %s262, %s263
      %p274 = scmp.eq.s32.totalorder %s40, 0
      %p275 = por %p273, %p274
      %p276 = scmp.ne.s32.totalorder %s262, %s263
      %p277 = scmp.eq.s32.totalorder %s41, 1
      %p278 = por %p276, %p277
      %p280 = scmp.ne.s32.totalorder %s263, %s279
      %p281 = scmp.eq.s32.totalorder %s41, 0
      %p282 = por %p280, %p281
      %s283 = ssub.s32 %s35, %s42
      %p284 = scmp.eq.s32.totalorder %s283, 0
      %s286 = sadd.s32 %s285, 1
      %s287 = scalar_select %p284, %s285, %s286
      %p290 = pneg %p284
      %p291 = scmp.eq.s32.totalorder %s35, 1
      %p292 = por %p290, %p291
      %p293 = scmp.ne.s32.totalorder %s285, %s288
      %p294 = scmp.eq.s32.totalorder %s35, 0
      %p295 = por %p293, %p294
      %p296 = scmp.ne.s32.totalorder %s285, %s288
      %p297 = scmp.eq.s32.totalorder %s40, 1
      %p298 = por %p296, %p297
      %p299 = scmp.ne.s32.totalorder %s288, %s289
      %p300 = scmp.eq.s32.totalorder %s40, 0
      %p301 = por %p299, %p300
      %p302 = scmp.ne.s32.totalorder %s288, %s289
      %p303 = scmp.eq.s32.totalorder %s41, 1
      %p304 = por %p302, %p303
      %p306 = scmp.ne.s32.totalorder %s289, %s305
      %p307 = scmp.eq.s32.totalorder %s41, 0
      %p308 = por %p306, %p307
      %s309 = ssub.s32 %s35, %s42
      %p310 = scmp.eq.s32.totalorder %s309, 0
      %s312 = sadd.s32 %s311, 1
      %s313 = scalar_select %p310, %s311, %s312
      %p316 = pneg %p310
      %p317 = scmp.eq.s32.totalorder %s35, 1
      %p318 = por %p316, %p317
      %p319 = scmp.ne.s32.totalorder %s311, %s314
      %p320 = scmp.eq.s32.totalorder %s35, 0
      %p321 = por %p319, %p320
      %p322 = scmp.ne.s32.totalorder %s311, %s314
      %p323 = scmp.eq.s32.totalorder %s40, 1
      %p324 = por %p322, %p323
      %p325 = scmp.ne.s32.totalorder %s314, %s315
      %p326 = scmp.eq.s32.totalorder %s40, 0
      %p327 = por %p325, %p326
      %p328 = scmp.ne.s32.totalorder %s314, %s315
      %p329 = scmp.eq.s32.totalorder %s41, 1
      %p330 = por %p328, %p329
      %p332 = scmp.ne.s32.totalorder %s315, %s331
      %p333 = scmp.eq.s32.totalorder %s41, 0
      %p334 = por %p332, %p333
      %s335 = ssub.s32 %s35, %s42
      %p336 = scmp.eq.s32.totalorder %s335, 0
      %s338 = sadd.s32 %s337, 1
      %s339 = scalar_select %p336, %s337, %s338
      %p342 = pneg %p336
      %p343 = scmp.eq.s32.totalorder %s35, 1
      %p344 = por %p342, %p343
      %p345 = scmp.ne.s32.totalorder %s337, %s340
      %p346 = scmp.eq.s32.totalorder %s35, 0
      %p347 = por %p345, %p346
      %p348 = scmp.ne.s32.totalorder %s337, %s340
      %p349 = scmp.eq.s32.totalorder %s40, 1
      %p350 = por %p348, %p349
      %p351 = scmp.ne.s32.totalorder %s340, %s341
      %p352 = scmp.eq.s32.totalorder %s40, 0
      %p353 = por %p351, %p352
      %p354 = scmp.ne.s32.totalorder %s340, %s341
      %p355 = scmp.eq.s32.totalorder %s41, 1
      %p356 = por %p354, %p355
      %p358 = scmp.ne.s32.totalorder %s341, %s357
      %p359 = scmp.eq.s32.totalorder %s41, 0
      %p360 = por %p358, %p359
      %s361 = ssub.s32 %s35, %s42
      %p362 = scmp.eq.s32.totalorder %s361, 0
      %s364 = sadd.s32 %s363, 1
      %s365 = scalar_select %p362, %s363, %s364
      %p368 = pneg %p362
      %p369 = scmp.eq.s32.totalorder %s35, 1
      %p370 = por %p368, %p369
      %p371 = scmp.ne.s32.totalorder %s363, %s366
      %p372 = scmp.eq.s32.totalorder %s35, 0
      %p373 = por %p371, %p372
      %p374 = scmp.ne.s32.totalorder %s363, %s366
      %p375 = scmp.eq.s32.totalorder %s40, 1
      %p376 = por %p374, %p375
      %p377 = scmp.ne.s32.totalorder %s366, %s367
      %p378 = scmp.eq.s32.totalorder %s40, 0
      %p379 = por %p377, %p378
      %p380 = scmp.ne.s32.totalorder %s366, %s367
      %p381 = scmp.eq.s32.totalorder %s41, 1
      %p382 = por %p380, %p381
      %p384 = scmp.ne.s32.totalorder %s367, %s383
      %p385 = scmp.eq.s32.totalorder %s41, 0
      %p386 = por %p384, %p385
      %s387 = ssub.s32 %s35, %s42
      %p388 = scmp.eq.s32.totalorder %s387, 0
      %s390 = sadd.s32 %s389, 1
      %s391 = scalar_select %p388, %s389, %s390
      %p394 = pneg %p388
      %p395 = scmp.eq.s32.totalorder %s35, 1
      %p396 = por %p394, %p395
      %p397 = scmp.ne.s32.totalorder %s389, %s392
      %p398 = scmp.eq.s32.totalorder %s35, 0
      %p399 = por %p397, %p398
      %p400 = scmp.ne.s32.totalorder %s389, %s392
      %p401 = scmp.eq.s32.totalorder %s40, 1
      %p402 = por %p400, %p401
      %p403 = scmp.ne.s32.totalorder %s392, %s393
      %p404 = scmp.eq.s32.totalorder %s40, 0
      %p405 = por %p403, %p404
      %p406 = scmp.ne.s32.totalorder %s392, %s393
      %p407 = scmp.eq.s32.totalorder %s41, 1
      %p408 = por %p406, %p407
      %p410 = scmp.ne.s32.totalorder %s393, %s409
      %p411 = scmp.eq.s32.totalorder %s41, 0
      %p412 = por %p410, %p411
      %s413 = ssub.s32 %s35, %s42
      %p414 = scmp.eq.s32.totalorder %s413, 0
      %s416 = sadd.s32 %s415, 1
      %s417 = scalar_select %p414, %s415, %s416
      %p420 = pneg %p414
      %p421 = scmp.eq.s32.totalorder %s35, 1
      %p422 = por %p420, %p421
      %p423 = scmp.ne.s32.totalorder %s415, %s418
      %p424 = scmp.eq.s32.totalorder %s35, 0
      %p425 = por %p423, %p424
      %p426 = scmp.ne.s32.totalorder %s415, %s418
      %p427 = scmp.eq.s32.totalorder %s40, 1
      %p428 = por %p426, %p427
      %p429 = scmp.ne.s32.totalorder %s418, %s419
      %p430 = scmp.eq.s32.totalorder %s40, 0
      %p431 = por %p429, %p430
      %p432 = scmp.ne.s32.totalorder %s418, %s419
      %p433 = scmp.eq.s32.totalorder %s41, 1
      %p434 = por %p432, %p433
      %p436 = scmp.ne.s32.totalorder %s419, %s435
      %p437 = scmp.eq.s32.totalorder %s41, 0
      %p438 = por %p436, %p437
      %s439 = ssub.s32 %s35, %s42
      %p440 = scmp.eq.s32.totalorder %s439, 0
      %s442 = sadd.s32 %s441, 1
      %s443 = scalar_select %p440, %s441, %s442
      %p446 = pneg %p440
      %p447 = scmp.eq.s32.totalorder %s35, 1
      %p448 = por %p446, %p447
      %p449 = scmp.ne.s32.totalorder %s441, %s444
      %p450 = scmp.eq.s32.totalorder %s35, 0
      %p451 = por %p449, %p450
      %p452 = scmp.ne.s32.totalorder %s441, %s444
      %p453 = scmp.eq.s32.totalorder %s40, 1
      %p454 = por %p452, %p453
      %p455 = scmp.ne.s32.totalorder %s444, %s445
      %p456 = scmp.eq.s32.totalorder %s40, 0
      %p457 = por %p455, %p456
      %p458 = scmp.ne.s32.totalorder %s444, %s445
      %p459 = scmp.eq.s32.totalorder %s41, 1
      %p460 = por %p458, %p459
      %p462 = scmp.ne.s32.totalorder %s445, %s461
      %p463 = scmp.eq.s32.totalorder %s41, 0
      %p464 = por %p462, %p463
      %s465 = ssub.s32 %s35, %s42
      %p466 = scmp.eq.s32.totalorder %s465, 0
      %s468 = sadd.s32 %s467, 1
      %s469 = scalar_select %p466, %s467, %s468
      %p472 = pneg %p466
      %p473 = scmp.eq.s32.totalorder %s35, 1
      %p474 = por %p472, %p473
      %p475 = scmp.ne.s32.totalorder %s467, %s470
      %p476 = scmp.eq.s32.totalorder %s35, 0
      %p477 = por %p475, %p476
      %p478 = scmp.ne.s32.totalorder %s467, %s470
      %p479 = scmp.eq.s32.totalorder %s40, 1
      %p480 = por %p478, %p479
      %p481 = scmp.ne.s32.totalorder %s470, %s471
      %p482 = scmp.eq.s32.totalorder %s40, 0
      %p483 = por %p481, %p482
      %p484 = scmp.ne.s32.totalorder %s470, %s471
      %p485 = scmp.eq.s32.totalorder %s41, 1
      %p486 = por %p484, %p485
      %p488 = scmp.ne.s32.totalorder %s471, %s487
      %p489 = scmp.eq.s32.totalorder %s41, 0
      %p490 = por %p488, %p489
      %s492 = sadd.s32 %s491, 1
      %p495 = scmp.eq.s32.totalorder %s35, 1
      %p496 = scmp.ne.s32.totalorder %s491, %s493
      %p497 = scmp.eq.s32.totalorder %s35, 0
      %p498 = por %p496, %p497
      %p499 = scmp.ne.s32.totalorder %s491, %s493
      %p500 = scmp.eq.s32.totalorder %s40, 1
      %p501 = por %p499, %p500
      %p502 = scmp.ne.s32.totalorder %s493, %s494
      %p503 = scmp.eq.s32.totalorder %s40, 0
      %p504 = por %p502, %p503
      %p505 = scmp.ne.s32.totalorder %s493, %s494
      %p506 = scmp.eq.s32.totalorder %s41, 1
      %p507 = por %p505, %p506
      %p509 = scmp.ne.s32.totalorder %s494, %s508
      %p510 = scmp.eq.s32.totalorder %s41, 0
      %p511 = por %p509, %p510
      %s513 = sadd.s32 %s512, 1
      %p516 = scmp.eq.s32.totalorder %s35, 1
      %p517 = scmp.ne.s32.totalorder %s512, %s514
      %p518 = scmp.eq.s32.totalorder %s35, 0
      %p519 = por %p517, %p518
      %p520 = scmp.ne.s32.totalorder %s512, %s514
      %p521 = scmp.eq.s32.totalorder %s40, 1
      %p522 = por %p520, %p521
      %p523 = scmp.ne.s32.totalorder %s514, %s515
      %p524 = scmp.eq.s32.totalorder %s40, 0
      %p525 = por %p523, %p524
      %p526 = scmp.ne.s32.totalorder %s514, %s515
      %p527 = scmp.eq.s32.totalorder %s41, 1
      %p528 = por %p526, %p527
      %p530 = scmp.ne.s32.totalorder %s515, %s529
      %p531 = scmp.eq.s32.totalorder %s41, 0
      %p532 = por %p530, %p531
      %s533 = ssub.s32 %s35, %s42
      %p534 = scmp.eq.s32.totalorder %s533, 0
      %s536 = sadd.s32 %s535, 1
      %s537 = scalar_select %p534, %s535, %s536
      %p540 = pneg %p534
      %p541 = scmp.eq.s32.totalorder %s35, 1
      %p542 = por %p540, %p541
      %p543 = scmp.ne.s32.totalorder %s535, %s538
      %p544 = scmp.eq.s32.totalorder %s35, 0
      %p545 = por %p543, %p544
      %p546 = scmp.ne.s32.totalorder %s535, %s538
      %p547 = scmp.eq.s32.totalorder %s40, 1
      %p548 = por %p546, %p547
      %p549 = scmp.ne.s32.totalorder %s538, %s539
      %p550 = scmp.eq.s32.totalorder %s40, 0
      %p551 = por %p549, %p550
      %p552 = scmp.ne.s32.totalorder %s538, %s539
      %p553 = scmp.eq.s32.totalorder %s41, 1
      %p554 = por %p552, %p553
      %p556 = scmp.ne.s32.totalorder %s539, %s555
      %p557 = scmp.eq.s32.totalorder %s41, 0
      %p558 = por %p556, %p557
      %s559 = ssub.s32 %s35, %s42
      %p560 = scmp.eq.s32.totalorder %s559, 0
      %s562 = sadd.s32 %s561, 1
      %s563 = scalar_select %p560, %s561, %s562
      %p566 = pneg %p560
      %p567 = scmp.eq.s32.totalorder %s35, 1
      %p568 = por %p566, %p567
      %p569 = scmp.ne.s32.totalorder %s561, %s564
      %p570 = scmp.eq.s32.totalorder %s35, 0
      %p571 = por %p569, %p570
      %p572 = scmp.ne.s32.totalorder %s561, %s564
      %p573 = scmp.eq.s32.totalorder %s40, 1
      %p574 = por %p572, %p573
      %p575 = scmp.ne.s32.totalorder %s564, %s565
      %p576 = scmp.eq.s32.totalorder %s40, 0
      %p577 = por %p575, %p576
      %p578 = scmp.ne.s32.totalorder %s564, %s565
      %p579 = scmp.eq.s32.totalorder %s41, 1
      %p580 = por %p578, %p579
      %p582 = scmp.ne.s32.totalorder %s565, %s581
      %p583 = scmp.eq.s32.totalorder %s41, 0
      %p584 = por %p582, %p583
      %p585 = scmp.le.s32.totalorder 1, %s35
      %p586 = scmp.lt.s32.totalorder %s35, 3
      %p587 = pnand %p585, %p586
      %p588 = pneg %p587
      // Predicated region
      $region9: #{decoder_forward.1} parent=5 // pred_check
        _
      $region10: #{decoder_forward.1} parent=5 // pred_check_branch
        %590 = sbr.rel (%p587) target = $region12
      $region11: #{decoder_forward.1} parent=5 // pred_region
        %s591 = ssub.s32 %s35, 1
        // Predicated region
        $region13: #{decoder_forward.1} parent=11 // pred_check
          %p592 = pneg %p56
        $region14: #{decoder_forward.1} parent=11 // pred_check_branch
          %594 = sbr.rel (%p592) target = $region16
        $region15: #{decoder_forward.1} parent=11 // pred_region
          %s596 = ssub.s32 256, 256
          %597 = vsyncadd [#allocation4], %s596
          %s598 = sshll.u32 [#allocation3], 4
          %s599 = int_to_ptr.vmem [resolvable:$true] %s598
          %604 = dma.hbm_to_vmem [thread:$0]  %s0, 256, %s599, [#allocation4], 128, 128, 8
        $region16: #{decoder_forward.1} parent=11 // pred_fallthru
          _
        // Predicated region
        $region17: #{decoder_forward.1} parent=11 // pred_check
          %p605 = pneg %p77
        $region18: #{decoder_forward.1} parent=11 // pred_check_branch
          %607 = sbr.rel (%p605) target = $region20
        $region19: #{decoder_forward.1} parent=11 // pred_region
          %s609 = ssub.s32 256, 256
          %610 = vsyncadd [#allocation7], %s609
          %s611 = sshll.u32 [#allocation6], 4
          %s612 = int_to_ptr.vmem [resolvable:$true] %s611
          %617 = dma.hbm_to_vmem [thread:$0]  %s1, 256, %s612, [#allocation7], 128, 128, 8
        $region20: #{decoder_forward.1} parent=11 // pred_fallthru
          _
        // Predicated region
        $region21: #{decoder_forward.1} parent=11 // pred_check
          %p618 = pneg %p98
        $region22: #{decoder_forward.1} parent=11 // pred_check_branch
          %620 = sbr.rel (%p618) target = $region24
        $region23: #{decoder_forward.1} parent=11 // pred_region
          %s622 = ssub.s32 256, 256
          %623 = vsyncadd [#allocation7], %s622
          %s624 = sshll.u32 [#allocation8], 4
          %s625 = int_to_ptr.vmem [resolvable:$true] %s624
          %630 = dma.hbm_to_vmem [thread:$0]  %s2, 256, %s625, [#allocation7], 128, 128, 8
        $region24: #{decoder_forward.1} parent=11 // pred_fallthru
          _
        // Predicated region
        $region25: #{decoder_forward.1} parent=11 // pred_check
          %p631 = pneg %p119
        $region26: #{decoder_forward.1} parent=11 // pred_check_branch
          %633 = sbr.rel (%p631) target = $region28
        $region27: #{decoder_forward.1} parent=11 // pred_region
          %s635 = ssub.s32 256, 256
          %636 = vsyncadd [#allocation10], %s635
          %s637 = sshll.u32 [#allocation9], 4
          %s638 = int_to_ptr.vmem [resolvable:$true] %s637
          %643 = dma.hbm_to_vmem [thread:$0]  %s3, 256, %s638, [#allocation10], 64, 64, 4
        $region28: #{decoder_forward.1} parent=11 // pred_fallthru
          _
        // Predicated region
        $region29: #{decoder_forward.1} parent=11 // pred_check
          %p644 = pneg %p504
        $region30: #{decoder_forward.1} parent=11 // pred_check_branch
          %646 = sbr.rel (%p644) target = $region32
        $region31: #{decoder_forward.1} parent=11 // pred_region
          %s648 = ssub.s32 256, 256
          %649 = vsyncadd [#allocation7], %s648
          %s650 = sshll.u32 [#allocation25], 4
          %s651 = int_to_ptr.vmem [resolvable:$true] %s650
          %656 = dma.hbm_to_vmem [thread:$0]  %s18, 256, %s651, [#allocation7], 64, 64, 4
        $region32: #{decoder_forward.1} parent=11 // pred_fallthru
          _
      $region12: #{decoder_forward.1} parent=5 // pred_fallthru
        _
      %p657 = scmp.lt.s32.totalorder %s35, 2
      // Predicated region
      $region33: #{decoder_forward.1} parent=5 // pred_check
        %p658 = pneg %p657
      $region34: #{decoder_forward.1} parent=5 // pred_check_branch
        %660 = sbr.rel (%p658) target = $region36
      $region35: #{decoder_forward.1} parent=5 // pred_region
        // Predicated region
        $region37: #{decoder_forward.1} parent=35 // pred_check
          %p661 = pneg %p139
        $region38: #{decoder_forward.1} parent=35 // pred_check_branch
          %663 = sbr.rel (%p661) target = $region40
        $region39: #{decoder_forward.1} parent=35 // pred_region
          %s664 = sand.u32 %s35, 1
          %s665 = scalar_lea.sflag [#allocation4], %s664
          %s666 = sand.u32 %s129, 1
          %s667 = smul.addr %s666, 16
          %s668 = scalar_lea.vmem [#allocation11], %s667
          %s670 = ssub.s32 256, 256
          %671 = vsyncadd %s665, %s670
          %s672 = smul.addr %s35, 4
          %s673 = smul.addr %s672, 64
          %s674 = scalar_lea.hbm %s4, %s673
          %s675 = sshll.u32 %s668, 4
          %s676 = int_to_ptr.vmem [resolvable:$true] %s675
          %681 = dma.hbm_to_vmem [thread:$0]  %s674, 256, %s676, %s665, 64, 64, 4
        $region40: #{decoder_forward.1} parent=35 // pred_fallthru
          _
        // Predicated region
        $region41: #{decoder_forward.1} parent=35 // pred_check
          %p682 = pneg %p165
        $region42: #{decoder_forward.1} parent=35 // pred_check_branch
          %684 = sbr.rel (%p682) target = $region44
        $region43: #{decoder_forward.1} parent=35 // pred_region
          %s685 = sand.u32 %s35, 1
          %s686 = scalar_lea.sflag [#allocation4], %s685
          %s687 = sand.u32 %s155, 1
          %s688 = scalar_lea.vmem [#allocation12], %s687
          %s690 = ssub.s32 16, 16
          %691 = vsyncadd %s686, %s690
          %s692 = smul.addr %s35, 16
          %s693 = scalar_lea.hbm %s5, %s692
          %s695 = sshll.u32 %s688, 4
          %s696 = int_to_ptr.vmem [resolvable:$true] %s695
          %698 = dma.hbm_to_vmem [thread:$0]  %s693, 16, %s696, %s686
        $region44: #{decoder_forward.1} parent=35 // pred_fallthru
          _
        // Predicated region
        $region45: #{decoder_forward.1} parent=35 // pred_check
          %p699 = pneg %p191
        $region46: #{decoder_forward.1} parent=35 // pred_check_branch
          %701 = sbr.rel (%p699) target = $region48
        $region47: #{decoder_forward.1} parent=35 // pred_region
          %s702 = sand.u32 %s35, 1
          %s703 = scalar_lea.sflag [#allocation4], %s702
          %s704 = sand.u32 %s181, 1
          %s705 = smul.addr %s704, 16
          %s706 = scalar_lea.vmem [#allocation13], %s705
          %s708 = ssub.s32 256, 256
          %709 = vsyncadd %s703, %s708
          %s710 = smul.addr %s35, 4
          %s711 = smul.addr %s710, 64
          %s712 = scalar_lea.hbm %s6, %s711
          %s713 = sshll.u32 %s706, 4
          %s714 = int_to_ptr.vmem [resolvable:$true] %s713
          %719 = dma.hbm_to_vmem [thread:$0]  %s712, 256, %s714, %s703, 64, 64, 4
        $region48: #{decoder_forward.1} parent=35 // pred_fallthru
          _
        // Predicated region
        $region49: #{decoder_forward.1} parent=35 // pred_check
          %p720 = pneg %p217
        $region50: #{decoder_forward.1} parent=35 // pred_check_branch
          %722 = sbr.rel (%p720) target = $region52
        $region51: #{decoder_forward.1} parent=35 // pred_region
          %s723 = sand.u32 %s35, 1
          %s724 = scalar_lea.sflag [#allocation4], %s723
          %s725 = sand.u32 %s207, 1
          %s726 = scalar_lea.vmem [#allocation14], %s725
          %s728 = ssub.s32 16, 16
          %729 = vsyncadd %s724, %s728
          %s730 = smul.addr %s35, 16
          %s731 = scalar_lea.hbm %s7, %s730
          %s733 = sshll.u32 %s726, 4
          %s734 = int_to_ptr.vmem [resolvable:$true] %s733
          %736 = dma.hbm_to_vmem [thread:$0]  %s731, 16, %s734, %s724
        $region52: #{decoder_forward.1} parent=35 // pred_fallthru
          _
        // Predicated region
        $region53: #{decoder_forward.1} parent=35 // pred_check
          %p737 = pneg %p243
        $region54: #{decoder_forward.1} parent=35 // pred_check_branch
          %739 = sbr.rel (%p737) target = $region56
        $region55: #{decoder_forward.1} parent=35 // pred_region
          %s740 = sand.u32 %s35, 1
          %s741 = scalar_lea.sflag [#allocation4], %s740
          %s742 = sand.u32 %s233, 1
          %s743 = smul.addr %s742, 16
          %s744 = scalar_lea.vmem [#allocation15], %s743
          %s746 = ssub.s32 256, 256
          %747 = vsyncadd %s741, %s746
          %s748 = smul.addr %s35, 4
          %s749 = smul.addr %s748, 64
          %s750 = scalar_lea.hbm %s8, %s749
          %s751 = sshll.u32 %s744, 4
          %s752 = int_to_ptr.vmem [resolvable:$true] %s751
          %757 = dma.hbm_to_vmem [thread:$0]  %s750, 256, %s752, %s741, 64, 64, 4
        $region56: #{decoder_forward.1} parent=35 // pred_fallthru
          _
        // Predicated region
        $region57: #{decoder_forward.1} parent=35 // pred_check
          %p758 = pneg %p269
        $region58: #{decoder_forward.1} parent=35 // pred_check_branch
          %760 = sbr.rel (%p758) target = $region60
        $region59: #{decoder_forward.1} parent=35 // pred_region
          %s761 = sand.u32 %s35, 1
          %s762 = scalar_lea.sflag [#allocation4], %s761
          %s763 = sand.u32 %s259, 1
          %s764 = scalar_lea.vmem [#allocation16], %s763
          %s766 = ssub.s32 16, 16
          %767 = vsyncadd %s762, %s766
          %s768 = smul.addr %s35, 16
          %s769 = scalar_lea.hbm %s9, %s768
          %s771 = sshll.u32 %s764, 4
          %s772 = int_to_ptr.vmem [resolvable:$true] %s771
          %774 = dma.hbm_to_vmem [thread:$0]  %s769, 16, %s772, %s762
        $region60: #{decoder_forward.1} parent=35 // pred_fallthru
          _
        // Predicated region
        $region61: #{decoder_forward.1} parent=35 // pred_check
          %p775 = pneg %p295
        $region62: #{decoder_forward.1} parent=35 // pred_check_branch
          %777 = sbr.rel (%p775) target = $region64
        $region63: #{decoder_forward.1} parent=35 // pred_region
          %s778 = sand.u32 %s35, 1
          %s779 = scalar_lea.sflag [#allocation4], %s778
          %s780 = sand.u32 %s285, 1
          %s781 = smul.addr %s780, 32
          %s782 = scalar_lea.vmem [#allocation17], %s781
          %s784 = ssub.s32 512, 512
          %785 = vsyncadd %s779, %s784
          %s786 = smul.addr %s35, 8
          %s787 = smul.addr %s786, 64
          %s788 = scalar_lea.hbm %s10, %s787
          %s789 = sshll.u32 %s782, 4
          %s790 = int_to_ptr.vmem [resolvable:$true] %s789
          %795 = dma.hbm_to_vmem [thread:$0]  %s788, 512, %s790, %s779, 64, 64, 4
        $region64: #{decoder_forward.1} parent=35 // pred_fallthru
          _
        // Predicated region
        $region65: #{decoder_forward.1} parent=35 // pred_check
          %p796 = pneg %p321
        $region66: #{decoder_forward.1} parent=35 // pred_check_branch
          %798 = sbr.rel (%p796) target = $region68
        $region67: #{decoder_forward.1} parent=35 // pred_region
          %s799 = sand.u32 %s35, 1
          %s800 = scalar_lea.sflag [#allocation4], %s799
          %s801 = sand.u32 %s311, 1
          %s802 = scalar_lea.vmem [#allocation18], %s801
          %s804 = ssub.s32 16, 16
          %805 = vsyncadd %s800, %s804
          %s806 = smul.addr %s35, 16
          %s807 = scalar_lea.hbm %s11, %s806
          %s809 = sshll.u32 %s802, 4
          %s810 = int_to_ptr.vmem [resolvable:$true] %s809
          %812 = dma.hbm_to_vmem [thread:$0]  %s807, 16, %s810, %s800
        $region68: #{decoder_forward.1} parent=35 // pred_fallthru
          _
        // Predicated region
        $region69: #{decoder_forward.1} parent=35 // pred_check
          %p813 = pneg %p347
        $region70: #{decoder_forward.1} parent=35 // pred_check_branch
          %815 = sbr.rel (%p813) target = $region72
        $region71: #{decoder_forward.1} parent=35 // pred_region
          %s816 = sand.u32 %s35, 1
          %s817 = scalar_lea.sflag [#allocation4], %s816
          %s818 = sand.u32 %s337, 1
          %s819 = smul.addr %s818, 16
          %s820 = scalar_lea.vmem [#allocation19], %s819
          %s822 = ssub.s32 256, 256
          %823 = vsyncadd %s817, %s822
          %s824 = smul.addr %s35, 4
          %s825 = smul.addr %s824, 64
          %s826 = scalar_lea.hbm %s12, %s825
          %s827 = sshll.u32 %s820, 4
          %s828 = int_to_ptr.vmem [resolvable:$true] %s827
          %833 = dma.hbm_to_vmem [thread:$0]  %s826, 256, %s828, %s817, 64, 64, 4
        $region72: #{decoder_forward.1} parent=35 // pred_fallthru
          _
        // Predicated region
        $region73: #{decoder_forward.1} parent=35 // pred_check
          %p834 = pneg %p373
        $region74: #{decoder_forward.1} parent=35 // pred_check_branch
          %836 = sbr.rel (%p834) target = $region76
        $region75: #{decoder_forward.1} parent=35 // pred_region
          %s837 = sand.u32 %s35, 1
          %s838 = scalar_lea.sflag [#allocation4], %s837
          %s839 = sand.u32 %s363, 1
          %s840 = scalar_lea.vmem [#allocation20], %s839
          %s842 = ssub.s32 16, 16
          %843 = vsyncadd %s838, %s842
          %s844 = smul.addr %s35, 16
          %s845 = scalar_lea.hbm %s13, %s844
          %s847 = sshll.u32 %s840, 4
          %s848 = int_to_ptr.vmem [resolvable:$true] %s847
          %850 = dma.hbm_to_vmem [thread:$0]  %s845, 16, %s848, %s838
        $region76: #{decoder_forward.1} parent=35 // pred_fallthru
          _
        // Predicated region
        $region77: #{decoder_forward.1} parent=35 // pred_check
          %p851 = pneg %p399
        $region78: #{decoder_forward.1} parent=35 // pred_check_branch
          %853 = sbr.rel (%p851) target = $region80
        $region79: #{decoder_forward.1} parent=35 // pred_region
          %s854 = sand.u32 %s35, 1
          %s855 = scalar_lea.sflag [#allocation4], %s854
          %s856 = sand.u32 %s389, 1
          %s857 = smul.addr %s856, 16
          %s858 = scalar_lea.vmem [#allocation21], %s857
          %s860 = ssub.s32 256, 256
          %861 = vsyncadd %s855, %s860
          %s862 = smul.addr %s35, 4
          %s863 = smul.addr %s862, 64
          %s864 = scalar_lea.hbm %s14, %s863
          %s865 = sshll.u32 %s858, 4
          %s866 = int_to_ptr.vmem [resolvable:$true] %s865
          %871 = dma.hbm_to_vmem [thread:$0]  %s864, 256, %s866, %s855, 64, 64, 4
        $region80: #{decoder_forward.1} parent=35 // pred_fallthru
          _
        // Predicated region
        $region81: #{decoder_forward.1} parent=35 // pred_check
          %p872 = pneg %p425
        $region82: #{decoder_forward.1} parent=35 // pred_check_branch
          %874 = sbr.rel (%p872) target = $region84
        $region83: #{decoder_forward.1} parent=35 // pred_region
          %s875 = sand.u32 %s35, 1
          %s876 = scalar_lea.sflag [#allocation4], %s875
          %s877 = sand.u32 %s415, 1
          %s878 = scalar_lea.vmem [#allocation22], %s877
          %s880 = ssub.s32 16, 16
          %881 = vsyncadd %s876, %s880
          %s882 = smul.addr %s35, 16
          %s883 = scalar_lea.hbm %s15, %s882
          %s885 = sshll.u32 %s878, 4
          %s886 = int_to_ptr.vmem [resolvable:$true] %s885
          %888 = dma.hbm_to_vmem [thread:$0]  %s883, 16, %s886, %s876
        $region84: #{decoder_forward.1} parent=35 // pred_fallthru
          _
        // Predicated region
        $region85: #{decoder_forward.1} parent=35 // pred_check
          %p889 = pneg %p451
        $region86: #{decoder_forward.1} parent=35 // pred_check_branch
          %891 = sbr.rel (%p889) target = $region88
        $region87: #{decoder_forward.1} parent=35 // pred_region
          %s892 = sand.u32 %s35, 1
          %s893 = scalar_lea.sflag [#allocation4], %s892
          %s894 = sand.u32 %s441, 1
          %s895 = smul.addr %s894, 32
          %s896 = scalar_lea.vmem [#allocation23], %s895
          %s898 = ssub.s32 512, 512
          %899 = vsyncadd %s893, %s898
          %s900 = smul.addr %s35, 8
          %s901 = smul.addr %s900, 64
          %s902 = scalar_lea.hbm %s16, %s901
          %s903 = sshll.u32 %s896, 4
          %s904 = int_to_ptr.vmem [resolvable:$true] %s903
          %909 = dma.hbm_to_vmem [thread:$0]  %s902, 512, %s904, %s893, 64, 64, 4
        $region88: #{decoder_forward.1} parent=35 // pred_fallthru
          _
        // Predicated region
        $region89: #{decoder_forward.1} parent=35 // pred_check
          %p910 = pneg %p477
        $region90: #{decoder_forward.1} parent=35 // pred_check_branch
          %912 = sbr.rel (%p910) target = $region92
        $region91: #{decoder_forward.1} parent=35 // pred_region
          %s913 = sand.u32 %s35, 1
          %s914 = scalar_lea.sflag [#allocation4], %s913
          %s915 = sand.u32 %s467, 1
          %s916 = scalar_lea.vmem [#allocation24], %s915
          %s918 = ssub.s32 16, 16
          %919 = vsyncadd %s914, %s918
          %s920 = smul.addr %s35, 16
          %s921 = scalar_lea.hbm %s17, %s920
          %s923 = sshll.u32 %s916, 4
          %s924 = int_to_ptr.vmem [resolvable:$true] %s923
          %926 = dma.hbm_to_vmem [thread:$0]  %s921, 16, %s924, %s914
        $region92: #{decoder_forward.1} parent=35 // pred_fallthru
          _
      $region36: #{decoder_forward.1} parent=5 // pred_fallthru
        _
      %p927 = scmp.le.s32.totalorder 1, %s35
      %p928 = scmp.lt.s32.totalorder %s35, 3
      %p929 = pnand %p927, %p928
      %p930 = pneg %p929
      // Predicated region
      $region93: #{decoder_forward.1} parent=5 // pred_check
        _
      $region94: #{decoder_forward.1} parent=5 // pred_check_branch
        %932 = sbr.rel (%p929) target = $region96
      $region95: #{decoder_forward.1} parent=5 // pred_region
        %s933 = ssub.s32 %s35, 1
        // Predicated region
        $region97: #{decoder_forward.1} parent=95 // pred_check
          %p934 = pneg %p56
        $region98: #{decoder_forward.1} parent=95 // pred_check_branch
          %936 = sbr.rel (%p934) target = $region100
        $region99: #{decoder_forward.1} parent=95 // pred_region
          %937 = dma.done [#allocation4], 256
        $region100: #{decoder_forward.1} parent=95 // pred_fallthru
          _
        // Predicated region
        $region101: #{decoder_forward.1} parent=95 // pred_check
          %p938 = pneg %p77
        $region102: #{decoder_forward.1} parent=95 // pred_check_branch
          %940 = sbr.rel (%p938) target = $region104
        $region103: #{decoder_forward.1} parent=95 // pred_region
          %941 = dma.done [#allocation7], 256
        $region104: #{decoder_forward.1} parent=95 // pred_fallthru
          _
        // Predicated region
        $region105: #{decoder_forward.1} parent=95 // pred_check
          %p942 = pneg %p98
        $region106: #{decoder_forward.1} parent=95 // pred_check_branch
          %944 = sbr.rel (%p942) target = $region108
        $region107: #{decoder_forward.1} parent=95 // pred_region
          %945 = dma.done [#allocation7], 256
        $region108: #{decoder_forward.1} parent=95 // pred_fallthru
          _
        // Predicated region
        $region109: #{decoder_forward.1} parent=95 // pred_check
          %p946 = pneg %p119
        $region110: #{decoder_forward.1} parent=95 // pred_check_branch
          %948 = sbr.rel (%p946) target = $region112
        $region111: #{decoder_forward.1} parent=95 // pred_region
          %949 = dma.done [#allocation10], 256
        $region112: #{decoder_forward.1} parent=95 // pred_fallthru
          _
        %s950 = sand.u32 %s40, 1
        %s951 = scalar_lea.sflag [#allocation4], %s950
        %s952 = sand.u32 %s132, 1
        %s953 = smul.addr %s952, 16
        %s954 = scalar_lea.vmem [#allocation11], %s953
        // Predicated region
        $region113: #{decoder_forward.1} parent=95 // pred_check
          %p955 = pneg %p145
        $region114: #{decoder_forward.1} parent=95 // pred_check_branch
          %957 = sbr.rel (%p955) target = $region116
        $region115: #{decoder_forward.1} parent=95 // pred_region
          %958 = dma.done %s951, 256
        $region116: #{decoder_forward.1} parent=95 // pred_fallthru
          _
        %s959 = sand.u32 %s40, 1
        %s960 = scalar_lea.sflag [#allocation4], %s959
        %s961 = sand.u32 %s158, 1
        %s962 = scalar_lea.vmem [#allocation12], %s961
        // Predicated region
        $region117: #{decoder_forward.1} parent=95 // pred_check
          %p963 = pneg %p171
        $region118: #{decoder_forward.1} parent=95 // pred_check_branch
          %965 = sbr.rel (%p963) target = $region120
        $region119: #{decoder_forward.1} parent=95 // pred_region
          %966 = dma.done %s960, 16
        $region120: #{decoder_forward.1} parent=95 // pred_fallthru
          _
        %s967 = sand.u32 %s40, 1
        %s968 = scalar_lea.sflag [#allocation4], %s967
        %s969 = sand.u32 %s184, 1
        %s970 = smul.addr %s969, 16
        %s971 = scalar_lea.vmem [#allocation13], %s970
        // Predicated region
        $region121: #{decoder_forward.1} parent=95 // pred_check
          %p972 = pneg %p197
        $region122: #{decoder_forward.1} parent=95 // pred_check_branch
          %974 = sbr.rel (%p972) target = $region124
        $region123: #{decoder_forward.1} parent=95 // pred_region
          %975 = dma.done %s968, 256
        $region124: #{decoder_forward.1} parent=95 // pred_fallthru
          _
        %s976 = sand.u32 %s40, 1
        %s977 = scalar_lea.sflag [#allocation4], %s976
        %s978 = sand.u32 %s210, 1
        %s979 = scalar_lea.vmem [#allocation14], %s978
        // Predicated region
        $region125: #{decoder_forward.1} parent=95 // pred_check
          %p980 = pneg %p223
        $region126: #{decoder_forward.1} parent=95 // pred_check_branch
          %982 = sbr.rel (%p980) target = $region128
        $region127: #{decoder_forward.1} parent=95 // pred_region
          %983 = dma.done %s977, 16
        $region128: #{decoder_forward.1} parent=95 // pred_fallthru
          _
        %s984 = sand.u32 %s40, 1
        %s985 = scalar_lea.sflag [#allocation4], %s984
        %s986 = sand.u32 %s236, 1
        %s987 = smul.addr %s986, 16
        %s988 = scalar_lea.vmem [#allocation15], %s987
        // Predicated region
        $region129: #{decoder_forward.1} parent=95 // pred_check
          %p989 = pneg %p249
        $region130: #{decoder_forward.1} parent=95 // pred_check_branch
          %991 = sbr.rel (%p989) target = $region132
        $region131: #{decoder_forward.1} parent=95 // pred_region
          %992 = dma.done %s985, 256
        $region132: #{decoder_forward.1} parent=95 // pred_fallthru
          _
        %s993 = sand.u32 %s40, 1
        %s994 = scalar_lea.sflag [#allocation4], %s993
        %s995 = sand.u32 %s262, 1
        %s996 = scalar_lea.vmem [#allocation16], %s995
        // Predicated region
        $region133: #{decoder_forward.1} parent=95 // pred_check
          %p997 = pneg %p275
        $region134: #{decoder_forward.1} parent=95 // pred_check_branch
          %999 = sbr.rel (%p997) target = $region136
        $region135: #{decoder_forward.1} parent=95 // pred_region
          %1000 = dma.done %s994, 16
        $region136: #{decoder_forward.1} parent=95 // pred_fallthru
          _
        %s1001 = sand.u32 %s40, 1
        %s1002 = scalar_lea.sflag [#allocation4], %s1001
        %s1003 = sand.u32 %s288, 1
        %s1004 = smul.addr %s1003, 32
        %s1005 = scalar_lea.vmem [#allocation17], %s1004
        // Predicated region
        $region137: #{decoder_forward.1} parent=95 // pred_check
          %p1006 = pneg %p301
        $region138: #{decoder_forward.1} parent=95 // pred_check_branch
          %1008 = sbr.rel (%p1006) target = $region140
        $region139: #{decoder_forward.1} parent=95 // pred_region
          %1009 = dma.done %s1002, 512
        $region140: #{decoder_forward.1} parent=95 // pred_fallthru
          _
        %s1010 = sand.u32 %s40, 1
        %s1011 = scalar_lea.sflag [#allocation4], %s1010
        %s1012 = sand.u32 %s314, 1
        %s1013 = scalar_lea.vmem [#allocation18], %s1012
        // Predicated region
        $region141: #{decoder_forward.1} parent=95 // pred_check
          %p1014 = pneg %p327
        $region142: #{decoder_forward.1} parent=95 // pred_check_branch
          %1016 = sbr.rel (%p1014) target = $region144
        $region143: #{decoder_forward.1} parent=95 // pred_region
          %1017 = dma.done %s1011, 16
        $region144: #{decoder_forward.1} parent=95 // pred_fallthru
          _
        %s1018 = sand.u32 %s40, 1
        %s1019 = scalar_lea.sflag [#allocation4], %s1018
        %s1020 = sand.u32 %s340, 1
        %s1021 = smul.addr %s1020, 16
        %s1022 = scalar_lea.vmem [#allocation19], %s1021
        // Predicated region
        $region145: #{decoder_forward.1} parent=95 // pred_check
          %p1023 = pneg %p353
        $region146: #{decoder_forward.1} parent=95 // pred_check_branch
          %1025 = sbr.rel (%p1023) target = $region148
        $region147: #{decoder_forward.1} parent=95 // pred_region
          %1026 = dma.done %s1019, 256
        $region148: #{decoder_forward.1} parent=95 // pred_fallthru
          _
        %s1027 = sand.u32 %s40, 1
        %s1028 = scalar_lea.sflag [#allocation4], %s1027
        %s1029 = sand.u32 %s366, 1
        %s1030 = scalar_lea.vmem [#allocation20], %s1029
        // Predicated region
        $region149: #{decoder_forward.1} parent=95 // pred_check
          %p1031 = pneg %p379
        $region150: #{decoder_forward.1} parent=95 // pred_check_branch
          %1033 = sbr.rel (%p1031) target = $region152
        $region151: #{decoder_forward.1} parent=95 // pred_region
          %1034 = dma.done %s1028, 16
        $region152: #{decoder_forward.1} parent=95 // pred_fallthru
          _
        %s1035 = sand.u32 %s40, 1
        %s1036 = scalar_lea.sflag [#allocation4], %s1035
        %s1037 = sand.u32 %s392, 1
        %s1038 = smul.addr %s1037, 16
        %s1039 = scalar_lea.vmem [#allocation21], %s1038
        // Predicated region
        $region153: #{decoder_forward.1} parent=95 // pred_check
          %p1040 = pneg %p405
        $region154: #{decoder_forward.1} parent=95 // pred_check_branch
          %1042 = sbr.rel (%p1040) target = $region156
        $region155: #{decoder_forward.1} parent=95 // pred_region
          %1043 = dma.done %s1036, 256
        $region156: #{decoder_forward.1} parent=95 // pred_fallthru
          _
        %s1044 = sand.u32 %s40, 1
        %s1045 = scalar_lea.sflag [#allocation4], %s1044
        %s1046 = sand.u32 %s418, 1
        %s1047 = scalar_lea.vmem [#allocation22], %s1046
        // Predicated region
        $region157: #{decoder_forward.1} parent=95 // pred_check
          %p1048 = pneg %p431
        $region158: #{decoder_forward.1} parent=95 // pred_check_branch
          %1050 = sbr.rel (%p1048) target = $region160
        $region159: #{decoder_forward.1} parent=95 // pred_region
          %1051 = dma.done %s1045, 16
        $region160: #{decoder_forward.1} parent=95 // pred_fallthru
          _
        %s1052 = sand.u32 %s40, 1
        %s1053 = scalar_lea.sflag [#allocation4], %s1052
        %s1054 = sand.u32 %s444, 1
        %s1055 = smul.addr %s1054, 32
        %s1056 = scalar_lea.vmem [#allocation23], %s1055
        // Predicated region
        $region161: #{decoder_forward.1} parent=95 // pred_check
          %p1057 = pneg %p457
        $region162: #{decoder_forward.1} parent=95 // pred_check_branch
          %1059 = sbr.rel (%p1057) target = $region164
        $region163: #{decoder_forward.1} parent=95 // pred_region
          %1060 = dma.done %s1053, 512
        $region164: #{decoder_forward.1} parent=95 // pred_fallthru
          _
        %s1061 = sand.u32 %s40, 1
        %s1062 = scalar_lea.sflag [#allocation4], %s1061
        %s1063 = sand.u32 %s470, 1
        %s1064 = scalar_lea.vmem [#allocation24], %s1063
        // Predicated region
        $region165: #{decoder_forward.1} parent=95 // pred_check
          %p1065 = pneg %p483
        $region166: #{decoder_forward.1} parent=95 // pred_check_branch
          %1067 = sbr.rel (%p1065) target = $region168
        $region167: #{decoder_forward.1} parent=95 // pred_region
          %1068 = dma.done %s1062, 16
        $region168: #{decoder_forward.1} parent=95 // pred_fallthru
          _
        // Predicated region
        $region169: #{decoder_forward.1} parent=95 // pred_check
          %p1069 = pneg %p504
        $region170: #{decoder_forward.1} parent=95 // pred_check_branch
          %1071 = sbr.rel (%p1069) target = $region172
        $region171: #{decoder_forward.1} parent=95 // pred_region
          %1072 = dma.done [#allocation7], 256
        $region172: #{decoder_forward.1} parent=95 // pred_fallthru
          _
        %p1073 = pneg %p56
        %p1074 = pneg %p53
        %p1075 = pneg %p77
        %p1076 = pneg %p74
        %p1077 = pneg %p98
        %p1078 = pneg %p95
        %p1079 = pneg %p119
        %p1080 = pneg %p116
        %s1081 = sand.u32 %s40, 1
        %s1082 = scalar_lea.sflag [#allocation4], %s1081
        %s1083 = sand.u32 %s132, 1
        %s1084 = smul.addr %s1083, 16
        %s1085 = scalar_lea.vmem [#allocation11], %s1084
        %p1086 = pneg %p145
        %p1087 = pneg %p142
        %s1088 = sand.u32 %s40, 1
        %s1089 = scalar_lea.sflag [#allocation4], %s1088
        %s1090 = sand.u32 %s158, 1
        %s1091 = scalar_lea.vmem [#allocation12], %s1090
        %p1092 = pneg %p171
        %p1093 = pneg %p168
        %s1094 = sand.u32 %s40, 1
        %s1095 = scalar_lea.sflag [#allocation4], %s1094
        %s1096 = sand.u32 %s184, 1
        %s1097 = smul.addr %s1096, 16
        %s1098 = scalar_lea.vmem [#allocation13], %s1097
        %p1099 = pneg %p197
        %p1100 = pneg %p194
        %s1101 = sand.u32 %s40, 1
        %s1102 = scalar_lea.sflag [#allocation4], %s1101
        %s1103 = sand.u32 %s210, 1
        %s1104 = scalar_lea.vmem [#allocation14], %s1103
        %p1105 = pneg %p223
        %p1106 = pneg %p220
        %s1107 = sand.u32 %s40, 1
        %s1108 = scalar_lea.sflag [#allocation4], %s1107
        %s1109 = sand.u32 %s236, 1
        %s1110 = smul.addr %s1109, 16
        %s1111 = scalar_lea.vmem [#allocation15], %s1110
        %p1112 = pneg %p249
        %p1113 = pneg %p246
        %s1114 = sand.u32 %s40, 1
        %s1115 = scalar_lea.sflag [#allocation4], %s1114
        %s1116 = sand.u32 %s262, 1
        %s1117 = scalar_lea.vmem [#allocation16], %s1116
        %p1118 = pneg %p275
        %p1119 = pneg %p272
        %s1120 = sand.u32 %s40, 1
        %s1121 = scalar_lea.sflag [#allocation4], %s1120
        %s1122 = sand.u32 %s288, 1
        %s1123 = smul.addr %s1122, 32
        %s1124 = scalar_lea.vmem [#allocation17], %s1123
        %p1125 = pneg %p301
        %p1126 = pneg %p298
        %s1127 = sand.u32 %s40, 1
        %s1128 = scalar_lea.sflag [#allocation4], %s1127
        %s1129 = sand.u32 %s314, 1
        %s1130 = scalar_lea.vmem [#allocation18], %s1129
        %p1131 = pneg %p327
        %p1132 = pneg %p324
        %s1133 = sand.u32 %s40, 1
        %s1134 = scalar_lea.sflag [#allocation4], %s1133
        %s1135 = sand.u32 %s340, 1
        %s1136 = smul.addr %s1135, 16
        %s1137 = scalar_lea.vmem [#allocation19], %s1136
        %p1138 = pneg %p353
        %p1139 = pneg %p350
        %s1140 = sand.u32 %s40, 1
        %s1141 = scalar_lea.sflag [#allocation4], %s1140
        %s1142 = sand.u32 %s366, 1
        %s1143 = scalar_lea.vmem [#allocation20], %s1142
        %p1144 = pneg %p379
        %p1145 = pneg %p376
        %s1146 = sand.u32 %s40, 1
        %s1147 = scalar_lea.sflag [#allocation4], %s1146
        %s1148 = sand.u32 %s392, 1
        %s1149 = smul.addr %s1148, 16
        %s1150 = scalar_lea.vmem [#allocation21], %s1149
        %p1151 = pneg %p405
        %p1152 = pneg %p402
        %s1153 = sand.u32 %s40, 1
        %s1154 = scalar_lea.sflag [#allocation4], %s1153
        %s1155 = sand.u32 %s418, 1
        %s1156 = scalar_lea.vmem [#allocation22], %s1155
        %p1157 = pneg %p431
        %p1158 = pneg %p428
        %s1159 = sand.u32 %s40, 1
        %s1160 = scalar_lea.sflag [#allocation4], %s1159
        %s1161 = sand.u32 %s444, 1
        %s1162 = smul.addr %s1161, 32
        %s1163 = scalar_lea.vmem [#allocation23], %s1162
        %p1164 = pneg %p457
        %p1165 = pneg %p454
        %s1166 = sand.u32 %s40, 1
        %s1167 = scalar_lea.sflag [#allocation4], %s1166
        %s1168 = sand.u32 %s470, 1
        %s1169 = scalar_lea.vmem [#allocation24], %s1168
        %p1170 = pneg %p483
        %p1171 = pneg %p480
        %p1172 = pneg %p504
        %p1173 = pneg %p501
        %p1174 = pneg %p525
        %p1175 = pneg %p522
        %p1176 = pneg %p551
        %p1177 = pneg %p548
        %s1178 = sand.u32 %s40, 1
        %s1179 = scalar_lea.sflag [#allocation28], %s1178
        %s1180 = sand.u32 %s538, 1
        %s1181 = smul.addr %s1180, 32
        %s1182 = scalar_lea.vmem [#allocation27], %s1181
        %p1183 = pneg %p577
        %p1184 = pneg %p574
        %s1185 = sand.u32 %s40, 1
        %s1186 = scalar_lea.sflag [#allocation28], %s1185
        %s1187 = sand.u32 %s564, 1
        %s1188 = smul.addr %s1187, 32
        %s1189 = scalar_lea.vmem [#allocation29], %s1188
        %p1191 = scmp.eq.s32.totalorder %s40, 0
        // Predicated region
        $region173: #{decoder_forward.1} parent=95 // pred_check
          %p1192 = pneg %p1191
        $region174: #{decoder_forward.1} parent=95 // pred_check_branch
          %1194 = sbr.rel (%p1192) target = $region176
        $region175: #{decoder_forward.1} parent=95 // pred_region
          %v1195 = vld [vmem:[#allocation3] sm:$0xff]
          %v1196 = vld [vmem:[#allocation3 + $0x8] sm:$0xff]
          %vm1197 = vcmask 261120
          %1198 = vst.msk [vmem:[#allocation2] sm:$0xff] %vm1197, %v1195
          %1199 = vst.msk [vmem:[#allocation2 + $0x8] sm:$0xff] %vm1197, %v1196
        $region176: #{decoder_forward.1} parent=95 // pred_fallthru
          _
        %v1200 = vld [vmem:[#allocation2] sm:$0xff]
        %v1201 = vld [vmem:[#allocation2 + $0x8] sm:$0xff]
        %v1202 = vpack.c.bf16 %v1201, %v1200
        %v1203 = vld [vmem:[%s954] sm:$0xf]
        %v1204 = vld [vmem:[%s954 + $0x4] sm:$0xf]
        %v1205 = vld [vmem:[%s954 + $0x8] sm:$0xf]
        %v1206 = vld [vmem:[%s954 + $0xc] sm:$0xf]
        %v1207 = vld [vmem:[%s962] sm:$0x1]
        %v1209 = vlaneseq
        %v1210 = vshrl.u32 %v1209, 7
        %v1211 = vsub.s32 0, %v1210
        %v1212 = vrot.slane %v1207, %v1211
        %v1218 = vunpack.c.l.b16 %v1203
        %v1219 = vunpack.c.l.b16 %v1204
        %v1220 = vunpack.c.l.b16 %v1205
        %v1221 = vunpack.c.l.b16 %v1206
        %v1222 = vpack.c.b16 %v1219, %v1218
        %v1223 = vpack.c.b16 %v1221, %v1220
        %vm1226 = vcmask 261120
        %v1228 = vsel %vm1226, %v1202, 0
        %1230 = vmatprep.subr.bf16.mxu0 0
        %1231 = vmatpush1.bf16.msra.mxu0 %v1222
        %1232 = vmatprep.subr.bf16.mxu0 0
        %1233 = vmatpush1.bf16.msra.mxu0 %v1223
        %1234 = vmatprep.subr.bf16.mxu0 0
        %1235 = vmatpush1.bf16.msra.mxu0 0
        %1236 = vmatprep.subr.bf16.mxu0 0
        %1237 = vmatpush1.bf16.msra.mxu0 0
        %1238 = vmatprep.subr.bf16.mxu0 0
        %1239 = vmatpush1.bf16.msra.mxu0 0
        %1240 = vmatprep.subr.bf16.mxu0 0
        %1241 = vmatpush1.bf16.msra.mxu0 0
        %1242 = vmatprep.subr.bf16.mxu0 0
        %1243 = vmatpush1.bf16.msra.mxu0 0
        %1244 = vmatprep.subr.bf16.mxu0 0
        %1245 = vmatpush1.bf16.msra.mxu0 0
        %1246 = vmatprep.subr.bf16.mxu0 0
        %1247 = vmatpush1.bf16.msra.mxu0 0
        %1248 = vmatprep.subr.bf16.mxu0 0
        %1249 = vmatpush1.bf16.msra.mxu0 0
        %1250 = vmatprep.subr.bf16.mxu0 0
        %1251 = vmatpush1.bf16.msra.mxu0 0
        %1252 = vmatprep.subr.bf16.mxu0 0
        %1253 = vmatpush1.bf16.msra.mxu0 0
        %1254 = vmatprep.subr.bf16.mxu0 0
        %1255 = vmatpush1.bf16.msra.mxu0 0
        %1256 = vmatprep.subr.bf16.mxu0 0
        %1257 = vmatpush1.bf16.msra.mxu0 0
        %1258 = vmatprep.subr.bf16.mxu0 0
        %1259 = vmatpush1.bf16.msra.mxu0 0
        %1260 = vmatprep.subr.bf16.mxu0 0
        %1261 = vmatpush1.bf16.msra.mxu0 0
        %1262 = vmatprep.mubr.bf16.mxu0 0
        %1263 = vmatmul.mubr.bf16.gmra.mrb[0].mxu0 %v1228
        %v1264 = vpop.f32.mrb[0].mxu0
        %v1265 = vadd.f32 %v1212, %v1264
        %v1266 = vpop.f32.mrb[0].mxu0
        %v1267 = vpop.f32.mrb[0].mxu0
        %v1268 = vadd.f32 %v1212, %v1267
        %v1269 = vpop.f32.mrb[0].mxu0
        %1270 = vdwg.mxu0
        %v1271 = vld [vmem:[%s971] sm:$0xf]
        %v1272 = vld [vmem:[%s971 + $0x4] sm:$0xf]
        %v1273 = vld [vmem:[%s971 + $0x8] sm:$0xf]
        %v1274 = vld [vmem:[%s971 + $0xc] sm:$0xf]
        %v1275 = vld [vmem:[%s979] sm:$0x1]
        %v1276 = vld [vmem:[#allocation6] sm:$0xff]
        %v1277 = vld [vmem:[#allocation6 + $0x8] sm:$0xff]
        %vm1278 = vcmp.gt.f32.partialorder %v1276, 0.5
        %vm1279 = vcmp.gt.f32.partialorder %v1277, 0.5
        %v1280 = vpack.c.bf16 %v1268, %v1265
        %1282 = vrot.lane.b32.xlu0 %v1280, 96
        %v1283 = vpop.permute.xlu0 %1282
        %vm1284 = vcmask 130048
        %v1286 = vsel %vm1284, %v1280, 0
        %v1289 = vsel %vm1284, %v1283, 0
        %1291 = vmatprep.subr.bf16.mxu0 0
        %1292 = vmatpush1.bf16.xpose.msra.mxu0 %v1289
        %1293 = vmatprep.subr.bf16.mxu0 0
        %1294 = vmatpush1.bf16.xpose.msra.mxu0 0
        %1295 = vmatprep.subr.bf16.mxu0 0
        %1296 = vmatpush1.bf16.xpose.msra.mxu0 0
        %1297 = vmatprep.subr.bf16.mxu0 0
        %1298 = vmatpush1.bf16.xpose.msra.mxu0 0
        %1299 = vmatprep.subr.bf16.mxu0 0
        %1300 = vmatpush1.bf16.xpose.msra.mxu0 0
        %1301 = vmatprep.subr.bf16.mxu0 0
        %1302 = vmatpush1.bf16.xpose.msra.mxu0 0
        %1303 = vmatprep.subr.bf16.mxu0 0
        %1304 = vmatpush1.bf16.xpose.msra.mxu0 0
        %1305 = vmatprep.subr.bf16.mxu0 0
        %1306 = vmatpush1.bf16.xpose.msra.mxu0 0
        %1307 = vmatprep.subr.bf16.mxu0 0
        %1308 = vmatpush1.bf16.xpose.msra.mxu0 0
        %1309 = vmatprep.subr.bf16.mxu0 0
        %1310 = vmatpush1.bf16.xpose.msra.mxu0 0
        %1311 = vmatprep.subr.bf16.mxu0 0
        %1312 = vmatpush1.bf16.xpose.msra.mxu0 0
        %1313 = vmatprep.subr.bf16.mxu0 0
        %1314 = vmatpush1.bf16.xpose.msra.mxu0 0
        %1315 = vmatprep.subr.bf16.mxu0 0
        %1316 = vmatpush1.bf16.xpose.msra.mxu0 0
        %1317 = vmatprep.subr.bf16.mxu0 0
        %1318 = vmatpush1.bf16.xpose.msra.mxu0 0
        %1319 = vmatprep.subr.bf16.mxu0 0
        %1320 = vmatpush1.bf16.xpose.msra.mxu0 0
        %1321 = vmatprep.subr.bf16.mxu0 0
        %1322 = vmatpush1.bf16.xpose.msra.mxu0 0
        %1323 = vmatprep.mubr.bf16.mxu0 0
        %1324 = vmatmul.mubr.bf16.gmra.mrb[0].mxu0 %v1286
        %v1325 = vpop.f32.mrb[0].mxu0
        %v1326 = vadd.f32 0.0, %v1325
        %v1327 = vpop.f32.mrb[0].mxu0
        %v1328 = vpop.f32.mrb[0].mxu0
        %v1329 = vadd.f32 0.0, %v1328
        %v1330 = vpop.f32.mrb[0].mxu0
        %1331 = vdwg.mxu0
        %v1332 = vmul.f32 %v1326, 0.25
        %v1333 = vmul.f32 %v1329, 0.25
        %v1334 = vsel %vm1278, -1e+09, %v1332
        %v1335 = vsel %vm1279, -1e+09, %v1333
        %v1336 = vsel %vm1284, %v1334, -inf
        %1337 = vmax.xlane.f32.xlu0 %v1336
        %v1338 = vpop.xlane.xlu0 %1337
        %v1339 = vsel %vm1284, %v1335, -inf
        %1340 = vmax.xlane.f32.xlu0 %v1339
        %v1341 = vpop.xlane.xlu0 %1340
        %v1342 = vsub.f32 %v1334, %v1338
        %v1343 = vsub.f32 %v1335, %v1341
        %v1344 = vmul.f32 %v1342, 1.442695
        %v1345 = vpow.pop %v1344
        %v1346 = vmul.f32 %v1343, 1.442695
        %v1347 = vpow.pop %v1346
        %v1348 = vsel %vm1284, %v1345, 0.0
        %1349 = vadd.xlane.f32.xlu0 %v1348
        %v1350 = vpop.xlane.xlu0 %1349
        %v1351 = vsel %vm1284, %v1347, 0.0
        %1352 = vadd.xlane.f32.xlu0 %v1351
        %v1353 = vpop.xlane.xlu0 %1352
        %v1354 = vrcp.pop %v1350
        %v1355 = vrcp.pop %v1353
        %v1356 = vmul.f32 %v1345, %v1354
        %v1357 = vmul.f32 %v1347, %v1355
        %v1358 = vpack.c.bf16 %v1357, %v1356
        %1359 = vrot.lane.b32.xlu0 %v1280, 64
        %v1360 = vpop.permute.xlu0 %1359
        %v1363 = vsel %vm1284, %v1358, 0
        %1365 = vmatprep.subr.bf16.mxu0 0
        %1366 = vmatpush1.bf16.msra.mxu0 %v1360
        %1367 = vmatprep.subr.bf16.mxu0 0
        %1368 = vmatpush1.bf16.msra.mxu0 0
        %1369 = vmatprep.subr.bf16.mxu0 0
        %1370 = vmatpush1.bf16.msra.mxu0 0
        %1371 = vmatprep.subr.bf16.mxu0 0
        %1372 = vmatpush1.bf16.msra.mxu0 0
        %1373 = vmatprep.subr.bf16.mxu0 0
        %1374 = vmatpush1.bf16.msra.mxu0 0
        %1375 = vmatprep.subr.bf16.mxu0 0
        %1376 = vmatpush1.bf16.msra.mxu0 0
        %1377 = vmatprep.subr.bf16.mxu0 0
        %1378 = vmatpush1.bf16.msra.mxu0 0
        %1379 = vmatprep.subr.bf16.mxu0 0
        %1380 = vmatpush1.bf16.msra.mxu0 0
        %1381 = vmatprep.subr.bf16.mxu0 0
        %1382 = vmatpush1.bf16.msra.mxu0 0
        %1383 = vmatprep.subr.bf16.mxu0 0
        %1384 = vmatpush1.bf16.msra.mxu0 0
        %1385 = vmatprep.subr.bf16.mxu0 0
        %1386 = vmatpush1.bf16.msra.mxu0 0
        %1387 = vmatprep.subr.bf16.mxu0 0
        %1388 = vmatpush1.bf16.msra.mxu0 0
        %1389 = vmatprep.subr.bf16.mxu0 0
        %1390 = vmatpush1.bf16.msra.mxu0 0
        %1391 = vmatprep.subr.bf16.mxu0 0
        %1392 = vmatpush1.bf16.msra.mxu0 0
        %1393 = vmatprep.subr.bf16.mxu0 0
        %1394 = vmatpush1.bf16.msra.mxu0 0
        %1395 = vmatprep.subr.bf16.mxu0 0
        %1396 = vmatpush1.bf16.msra.mxu0 0
        %1397 = vmatprep.mubr.bf16.mxu0 0
        %1398 = vmatmul.mubr.bf16.gmra.mrb[0].mxu0 %v1363
        %v1399 = vpop.f32.mrb[0].mxu0
        %v1400 = vadd.f32 0.0, %v1399
        %v1401 = vpop.f32.mrb[0].mxu0
        %v1402 = vpop.f32.mrb[0].mxu0
        %v1403 = vadd.f32 0.0, %v1402
        %v1404 = vpop.f32.mrb[0].mxu0
        %1405 = vdwg.mxu0
        %1406 = vrot.lane.b32.xlu0 %v1280, 112
        %v1407 = vpop.permute.xlu0 %1406
        %1408 = vrot.lane.b32.xlu0 %v1280, 80
        %v1409 = vpop.permute.xlu0 %1408
        %v1411 = vsel %vm1284, %v1407, 0
        %v1414 = vsel %vm1284, %v1409, 0
        %1416 = vmatprep.subr.bf16.mxu0 0
        %1417 = vmatpush1.bf16.xpose.msra.mxu0 %v1414
        %1418 = vmatprep.subr.bf16.mxu0 0
        %1419 = vmatpush1.bf16.xpose.msra.mxu0 0
        %1420 = vmatprep.subr.bf16.mxu0 0
        %1421 = vmatpush1.bf16.xpose.msra.mxu0 0
        %1422 = vmatprep.subr.bf16.mxu0 0
        %1423 = vmatpush1.bf16.xpose.msra.mxu0 0
        %1424 = vmatprep.subr.bf16.mxu0 0
        %1425 = vmatpush1.bf16.xpose.msra.mxu0 0
        %1426 = vmatprep.subr.bf16.mxu0 0
        %1427 = vmatpush1.bf16.xpose.msra.mxu0 0
        %1428 = vmatprep.subr.bf16.mxu0 0
        %1429 = vmatpush1.bf16.xpose.msra.mxu0 0
        %1430 = vmatprep.subr.bf16.mxu0 0
        %1431 = vmatpush1.bf16.xpose.msra.mxu0 0
        %1432 = vmatprep.subr.bf16.mxu0 0
        %1433 = vmatpush1.bf16.xpose.msra.mxu0 0
        %1434 = vmatprep.subr.bf16.mxu0 0
        %1435 = vmatpush1.bf16.xpose.msra.mxu0 0
        %1436 = vmatprep.subr.bf16.mxu0 0
        %1437 = vmatpush1.bf16.xpose.msra.mxu0 0
        %1438 = vmatprep.subr.bf16.mxu0 0
        %1439 = vmatpush1.bf16.xpose.msra.mxu0 0
        %1440 = vmatprep.subr.bf16.mxu0 0
        %1441 = vmatpush1.bf16.xpose.msra.mxu0 0
        %1442 = vmatprep.subr.bf16.mxu0 0
        %1443 = vmatpush1.bf16.xpose.msra.mxu0 0
        %1444 = vmatprep.subr.bf16.mxu0 0
        %1445 = vmatpush1.bf16.xpose.msra.mxu0 0
        %1446 = vmatprep.subr.bf16.mxu0 0
        %1447 = vmatpush1.bf16.xpose.msra.mxu0 0
        %1448 = vmatprep.mubr.bf16.mxu0 0
        %1449 = vmatmul.mubr.bf16.gmra.mrb[0].mxu0 %v1411
        %v1450 = vpop.f32.mrb[0].mxu0
        %v1451 = vadd.f32 0.0, %v1450
        %v1452 = vpop.f32.mrb[0].mxu0
        %v1453 = vpop.f32.mrb[0].mxu0
        %v1454 = vadd.f32 0.0, %v1453
        %v1455 = vpop.f32.mrb[0].mxu0
        %1456 = vdwg.mxu0
        %v1457 = vmul.f32 %v1451, 0.25
        %v1458 = vmul.f32 %v1454, 0.25
        %v1459 = vsel %vm1278, -1e+09, %v1457
        %v1460 = vsel %vm1279, -1e+09, %v1458
        %v1461 = vsel %vm1284, %v1459, -inf
        %1462 = vmax.xlane.f32.xlu0 %v1461
        %v1463 = vpop.xlane.xlu0 %1462
        %v1464 = vsel %vm1284, %v1460, -inf
        %1465 = vmax.xlane.f32.xlu0 %v1464
        %v1466 = vpop.xlane.xlu0 %1465
        %v1467 = vsub.f32 %v1459, %v1463
        %v1468 = vsub.f32 %v1460, %v1466
        %v1469 = vmul.f32 %v1467, 1.442695
        %v1470 = vpow.pop %v1469
        %v1471 = vmul.f32 %v1468, 1.442695
        %v1472 = vpow.pop %v1471
        %v1473 = vsel %vm1284, %v1470, 0.0
        %1474 = vadd.xlane.f32.xlu0 %v1473
        %v1475 = vpop.xlane.xlu0 %1474
        %v1476 = vsel %vm1284, %v1472, 0.0
        %1477 = vadd.xlane.f32.xlu0 %v1476
        %v1478 = vpop.xlane.xlu0 %1477
        %v1479 = vrcp.pop %v1475
        %v1480 = vrcp.pop %v1478
        %v1481 = vmul.f32 %v1470, %v1479
        %v1482 = vmul.f32 %v1472, %v1480
        %v1483 = vpack.c.bf16 %v1482, %v1481
        %1484 = vrot.lane.b32.xlu0 %v1280, 48
        %v1485 = vpop.permute.xlu0 %1484
        %v1488 = vsel %vm1284, %v1483, 0
        %1490 = vmatprep.subr.bf16.mxu0 0
        %1491 = vmatpush1.bf16.msra.mxu0 %v1485
        %1492 = vmatprep.subr.bf16.mxu0 0
        %1493 = vmatpush1.bf16.msra.mxu0 0
        %1494 = vmatprep.subr.bf16.mxu0 0
        %1495 = vmatpush1.bf16.msra.mxu0 0
        %1496 = vmatprep.subr.bf16.mxu0 0
        %1497 = vmatpush1.bf16.msra.mxu0 0
        %1498 = vmatprep.subr.bf16.mxu0 0
        %1499 = vmatpush1.bf16.msra.mxu0 0
        %1500 = vmatprep.subr.bf16.mxu0 0
        %1501 = vmatpush1.bf16.msra.mxu0 0
        %1502 = vmatprep.subr.bf16.mxu0 0
        %1503 = vmatpush1.bf16.msra.mxu0 0
        %1504 = vmatprep.subr.bf16.mxu0 0
        %1505 = vmatpush1.bf16.msra.mxu0 0
        %1506 = vmatprep.subr.bf16.mxu0 0
        %1507 = vmatpush1.bf16.msra.mxu0 0
        %1508 = vmatprep.subr.bf16.mxu0 0
        %1509 = vmatpush1.bf16.msra.mxu0 0
        %1510 = vmatprep.subr.bf16.mxu0 0
        %1511 = vmatpush1.bf16.msra.mxu0 0
        %1512 = vmatprep.subr.bf16.mxu0 0
        %1513 = vmatpush1.bf16.msra.mxu0 0
        %1514 = vmatprep.subr.bf16.mxu0 0
        %1515 = vmatpush1.bf16.msra.mxu0 0
        %1516 = vmatprep.subr.bf16.mxu0 0
        %1517 = vmatpush1.bf16.msra.mxu0 0
        %1518 = vmatprep.subr.bf16.mxu0 0
        %1519 = vmatpush1.bf16.msra.mxu0 0
        %1520 = vmatprep.subr.bf16.mxu0 0
        %1521 = vmatpush1.bf16.msra.mxu0 0
        %1522 = vmatprep.mubr.bf16.mxu0 0
        %1523 = vmatmul.mubr.bf16.gmra.mrb[0].mxu0 %v1488
        %v1524 = vpop.f32.mrb[0].mxu0
        %v1525 = vadd.f32 0.0, %v1524
        %v1526 = vpop.f32.mrb[0].mxu0
        %v1527 = vpop.f32.mrb[0].mxu0
        %v1528 = vadd.f32 0.0, %v1527
        %v1529 = vpop.f32.mrb[0].mxu0
        %1530 = vdwg.mxu0
        %1532 = vrot.lane.b32.xlu0 %v1357, 120
        %v1533 = vpop.permute.xlu0 %1532
        %1536 = vrot.lane.b32.xlu0 %v1482, 120
        %v1537 = vpop.permute.xlu0 %1536
        %vm1539 = vcmask 64512
        %v1540 = vsel %vm1539, %v1356, 0.0
        %v1541 = vsel %vm1539, %v1481, 0.0
        %v1542 = vsel %vm1539, %v1533, 0.0
        %v1543 = vsel %vm1539, %v1537, 0.0
        %1544 = vst [vmem:[%s1182] sm:$0xff] %v1540
        %1545 = vst [vmem:[%s1182 + $0x8] sm:$0xff] %v1541
        %1546 = vst [vmem:[%s1182 + $0x10] sm:$0xff] %v1542
        %1547 = vst [vmem:[%s1182 + $0x18] sm:$0xff] %v1543
        %1550 = vrot.lane.b32.xlu0 %v1525, 16
        %v1551 = vpop.permute.xlu0 %1550
        %1552 = vrot.lane.b32.xlu0 %v1528, 16
        %v1553 = vpop.permute.xlu0 %1552
        %v1556 = vsel %vm1284, %v1400, %v1551
        %v1557 = vsel %vm1284, %v1403, %v1553
        %v1558 = vpack.c.bf16 %v1557, %v1556
        %v1560 = vlaneseq
        %v1561 = vshrl.u32 %v1560, 7
        %v1562 = vsub.s32 0, %v1561
        %v1563 = vrot.slane %v1275, %v1562
        %v1569 = vunpack.c.l.b16 %v1271
        %v1570 = vunpack.c.l.b16 %v1272
        %v1571 = vunpack.c.l.b16 %v1273
        %v1572 = vunpack.c.l.b16 %v1274
        %v1573 = vpack.c.b16 %v1570, %v1569
        %v1574 = vpack.c.b16 %v1572, %v1571
        %v1578 = vsel %vm1226, %v1558, 0
        %1580 = vmatprep.subr.bf16.mxu0 0
        %1581 = vmatpush1.bf16.msra.mxu0 %v1573
        %1582 = vmatprep.subr.bf16.mxu0 0
        %1583 = vmatpush1.bf16.msra.mxu0 %v1574
        %1584 = vmatprep.subr.bf16.mxu0 0
        %1585 = vmatpush1.bf16.msra.mxu0 0
        %1586 = vmatprep.subr.bf16.mxu0 0
        %1587 = vmatpush1.bf16.msra.mxu0 0
        %1588 = vmatprep.subr.bf16.mxu0 0
        %1589 = vmatpush1.bf16.msra.mxu0 0
        %1590 = vmatprep.subr.bf16.mxu0 0
        %1591 = vmatpush1.bf16.msra.mxu0 0
        %1592 = vmatprep.subr.bf16.mxu0 0
        %1593 = vmatpush1.bf16.msra.mxu0 0
        %1594 = vmatprep.subr.bf16.mxu0 0
        %1595 = vmatpush1.bf16.msra.mxu0 0
        %1596 = vmatprep.subr.bf16.mxu0 0
        %1597 = vmatpush1.bf16.msra.mxu0 0
        %1598 = vmatprep.subr.bf16.mxu0 0
        %1599 = vmatpush1.bf16.msra.mxu0 0
        %1600 = vmatprep.subr.bf16.mxu0 0
        %1601 = vmatpush1.bf16.msra.mxu0 0
        %1602 = vmatprep.subr.bf16.mxu0 0
        %1603 = vmatpush1.bf16.msra.mxu0 0
        %1604 = vmatprep.subr.bf16.mxu0 0
        %1605 = vmatpush1.bf16.msra.mxu0 0
        %1606 = vmatprep.subr.bf16.mxu0 0
        %1607 = vmatpush1.bf16.msra.mxu0 0
        %1608 = vmatprep.subr.bf16.mxu0 0
        %1609 = vmatpush1.bf16.msra.mxu0 0
        %1610 = vmatprep.subr.bf16.mxu0 0
        %1611 = vmatpush1.bf16.msra.mxu0 0
        %1612 = vmatprep.mubr.bf16.mxu0 0
        %1613 = vmatmul.mubr.bf16.gmra.mrb[0].mxu0 %v1578
        %v1614 = vpop.f32.mrb[0].mxu0
        %v1615 = vadd.f32 %v1563, %v1614
        %v1616 = vpop.f32.mrb[0].mxu0
        %v1617 = vpop.f32.mrb[0].mxu0
        %v1618 = vadd.f32 %v1563, %v1617
        %v1619 = vpop.f32.mrb[0].mxu0
        %1620 = vdwg.mxu0
        %v1621 = vadd.f32 %v1615, %v1200
        %v1622 = vadd.f32 %v1618, %v1201
        %v1623 = vsel %vm1226, %v1621, 0.0
        %1624 = vadd.xlane.f32.xlu0 %v1623
        %v1625 = vpop.xlane.xlu0 %1624
        %v1626 = vsel %vm1226, %v1622, 0.0
        %1627 = vadd.xlane.f32.xlu0 %v1626
        %v1628 = vpop.xlane.xlu0 %1627
        %v1629 = vrcp.pop 32.0
        %v1630 = vmul.f32 %v1625, %v1629
        %v1631 = vmul.f32 %v1628, %v1629
        %v1632 = vsub.f32 %v1621, %v1630
        %v1633 = vsub.f32 %v1622, %v1631
        %v1634 = vmul.f32 %v1632, %v1632
        %v1635 = vmul.f32 %v1633, %v1633
        %v1636 = vsel %vm1226, %v1634, 0.0
        %1637 = vadd.xlane.f32.xlu0 %v1636
        %v1638 = vpop.xlane.xlu0 %1637
        %v1639 = vsel %vm1226, %v1635, 0.0
        %1640 = vadd.xlane.f32.xlu0 %v1639
        %v1641 = vpop.xlane.xlu0 %1640
        %v1642 = vmul.f32 %v1638, %v1629
        %v1643 = vmul.f32 %v1641, %v1629
        %v1644 = vadd.f32 %v1642, 1e-05
        %v1645 = vadd.f32 %v1643, 1e-05
        %v1646 = vrsqrt.pop %v1644
        %v1647 = vrsqrt.pop %v1645
        %v1648 = vmul.f32 %v1632, %v1646
        %v1649 = vmul.f32 %v1633, %v1647
        %v1650 = vpack.c.bf16 %v1649, %v1648
        %v1651 = vld [vmem:[%s988] sm:$0xf]
        %v1652 = vld [vmem:[%s988 + $0x4] sm:$0xf]
        %v1653 = vld [vmem:[%s988 + $0x8] sm:$0xf]
        %v1654 = vld [vmem:[%s988 + $0xc] sm:$0xf]
        %v1655 = vld [vmem:[%s996] sm:$0x1]
        %v1657 = vlaneseq
        %v1658 = vshrl.u32 %v1657, 7
        %v1659 = vsub.s32 0, %v1658
        %v1660 = vrot.slane %v1655, %v1659
        %v1666 = vunpack.c.l.b16 %v1651
        %v1667 = vunpack.c.l.b16 %v1652
        %v1668 = vunpack.c.l.b16 %v1653
        %v1669 = vunpack.c.l.b16 %v1654
        %v1670 = vpack.c.b16 %v1667, %v1666
        %v1671 = vpack.c.b16 %v1669, %v1668
        %v1675 = vsel %vm1226, %v1650, 0
        %1677 = vmatprep.subr.bf16.mxu0 0
        %1678 = vmatpush1.bf16.msra.mxu0 %v1670
        %1679 = vmatprep.subr.bf16.mxu0 0
        %1680 = vmatpush1.bf16.msra.mxu0 %v1671
        %1681 = vmatprep.subr.bf16.mxu0 0
        %1682 = vmatpush1.bf16.msra.mxu0 0
        %1683 = vmatprep.subr.bf16.mxu0 0
        %1684 = vmatpush1.bf16.msra.mxu0 0
        %1685 = vmatprep.subr.bf16.mxu0 0
        %1686 = vmatpush1.bf16.msra.mxu0 0
        %1687 = vmatprep.subr.bf16.mxu0 0
        %1688 = vmatpush1.bf16.msra.mxu0 0
        %1689 = vmatprep.subr.bf16.mxu0 0
        %1690 = vmatpush1.bf16.msra.mxu0 0
        %1691 = vmatprep.subr.bf16.mxu0 0
        %1692 = vmatpush1.bf16.msra.mxu0 0
        %1693 = vmatprep.subr.bf16.mxu0 0
        %1694 = vmatpush1.bf16.msra.mxu0 0
        %1695 = vmatprep.subr.bf16.mxu0 0
        %1696 = vmatpush1.bf16.msra.mxu0 0
        %1697 = vmatprep.subr.bf16.mxu0 0
        %1698 = vmatpush1.bf16.msra.mxu0 0
        %1699 = vmatprep.subr.bf16.mxu0 0
        %1700 = vmatpush1.bf16.msra.mxu0 0
        %1701 = vmatprep.subr.bf16.mxu0 0
        %1702 = vmatpush1.bf16.msra.mxu0 0
        %1703 = vmatprep.subr.bf16.mxu0 0
        %1704 = vmatpush1.bf16.msra.mxu0 0
        %1705 = vmatprep.subr.bf16.mxu0 0
        %1706 = vmatpush1.bf16.msra.mxu0 0
        %1707 = vmatprep.subr.bf16.mxu0 0
        %1708 = vmatpush1.bf16.msra.mxu0 0
        %1709 = vmatprep.mubr.bf16.mxu0 0
        %1710 = vmatmul.mubr.bf16.gmra.mrb[0].mxu0 %v1675
        %v1711 = vpop.f32.mrb[0].mxu0
        %v1712 = vadd.f32 %v1660, %v1711
        %v1713 = vpop.f32.mrb[0].mxu0
        %v1714 = vpop.f32.mrb[0].mxu0
        %v1715 = vadd.f32 %v1660, %v1714
        %v1716 = vpop.f32.mrb[0].mxu0
        %1717 = vdwg.mxu0
        %v1718 = vld [vmem:[#allocation9] sm:$0xf]
        %v1719 = vld [vmem:[#allocation9 + $0x4] sm:$0xf]
        %v1720 = vld [vmem:[#allocation9 + $0x8] sm:$0xf]
        %v1721 = vld [vmem:[#allocation9 + $0xc] sm:$0xf]
        %v1722 = vld [vmem:[%s1005] sm:$0xf]
        %v1723 = vld [vmem:[%s1005 + $0x4] sm:$0xf]
        %v1724 = vld [vmem:[%s1005 + $0x8] sm:$0xf]
        %v1725 = vld [vmem:[%s1005 + $0xc] sm:$0xf]
        %v1726 = vld [vmem:[%s1005 + $0x10] sm:$0xf]
        %v1727 = vld [vmem:[%s1005 + $0x14] sm:$0xf]
        %v1728 = vld [vmem:[%s1005 + $0x18] sm:$0xf]
        %v1729 = vld [vmem:[%s1005 + $0x1c] sm:$0xf]
        %v1730 = vld [vmem:[%s1013] sm:$0x1]
        %v1732 = vlaneseq
        %v1733 = vshrl.u32 %v1732, 7
        %v1734 = vsub.s32 0, %v1733
        %v1735 = vrot.slane %v1730, %v1734
        %v1741 = vunpack.c.l.b16 %v1718
        %v1742 = vunpack.c.l.b16 %v1719
        %v1743 = vunpack.c.l.b16 %v1720
        %v1744 = vunpack.c.l.b16 %v1721
        %v1745 = vpack.c.b16 %v1742, %v1741
        %v1746 = vpack.c.b16 %v1744, %v1743
        %v1755 = vunpack.c.l.b16 %v1722
        %v1756 = vunpack.c.l.b16 %v1723
        %v1757 = vunpack.c.l.b16 %v1724
        %v1758 = vunpack.c.l.b16 %v1725
        %v1759 = vunpack.c.l.b16 %v1726
        %v1760 = vunpack.c.l.b16 %v1727
        %v1761 = vunpack.c.l.b16 %v1728
        %v1762 = vunpack.c.l.b16 %v1729
        %v1763 = vpack.c.b16 %v1756, %v1755
        %v1764 = vpack.c.b16 %v1758, %v1757
        %v1765 = vpack.c.b16 %v1760, %v1759
        %v1766 = vpack.c.b16 %v1762, %v1761
        %vm1771 = vcmask 523264
        %v1773 = vsel %vm1771, %v1745, 0
        %v1776 = vsel %vm1771, %v1746, 0
        %1778 = vmatprep.subr.bf16.mxu0 0
        %1779 = vmatpush1.bf16.msra.mxu0 %v1763
        %1780 = vmatprep.subr.bf16.mxu0 0
        %1781 = vmatpush1.bf16.msra.mxu0 %v1764
        %1782 = vmatprep.subr.bf16.mxu0 0
        %1783 = vmatpush1.bf16.msra.mxu0 %v1765
        %1784 = vmatprep.subr.bf16.mxu0 0
        %1785 = vmatpush1.bf16.msra.mxu0 %v1766
        %1786 = vmatprep.subr.bf16.mxu0 0
        %1787 = vmatpush1.bf16.msra.mxu0 0
        %1788 = vmatprep.subr.bf16.mxu0 0
        %1789 = vmatpush1.bf16.msra.mxu0 0
        %1790 = vmatprep.subr.bf16.mxu0 0
        %1791 = vmatpush1.bf16.msra.mxu0 0
        %1792 = vmatprep.subr.bf16.mxu0 0
        %1793 = vmatpush1.bf16.msra.mxu0 0
        %1794 = vmatprep.subr.bf16.mxu0 0
        %1795 = vmatpush1.bf16.msra.mxu0 0
        %1796 = vmatprep.subr.bf16.mxu0 0
        %1797 = vmatpush1.bf16.msra.mxu0 0
        %1798 = vmatprep.subr.bf16.mxu0 0
        %1799 = vmatpush1.bf16.msra.mxu0 0
        %1800 = vmatprep.subr.bf16.mxu0 0
        %1801 = vmatpush1.bf16.msra.mxu0 0
        %1802 = vmatprep.subr.bf16.mxu0 0
        %1803 = vmatpush1.bf16.msra.mxu0 0
        %1804 = vmatprep.subr.bf16.mxu0 0
        %1805 = vmatpush1.bf16.msra.mxu0 0
        %1806 = vmatprep.subr.bf16.mxu0 0
        %1807 = vmatpush1.bf16.msra.mxu0 0
        %1808 = vmatprep.subr.bf16.mxu0 0
        %1809 = vmatpush1.bf16.msra.mxu0 0
        %1810 = vmatprep.mubr.bf16.mxu0 0
        %1811 = vmatmul.mubr.bf16.gmra.mrb[0].mxu0 %v1773
        %v1812 = vpop.f32.mrb[0].mxu0
        %v1813 = vadd.f32 %v1735, %v1812
        %v1814 = vpop.f32.mrb[0].mxu0
        %v1815 = vpop.f32.mrb[0].mxu0
        %v1816 = vadd.f32 %v1735, %v1815
        %v1817 = vpop.f32.mrb[0].mxu0
        %1818 = vmatprep.mubr.bf16.mxu0 0
        %1819 = vmatmul.mubr.bf16.gmra.mrb[0].mxu0 %v1776
        %v1820 = vpop.f32.mrb[0].mxu0
        %v1821 = vadd.f32 %v1735, %v1820
        %v1822 = vpop.f32.mrb[0].mxu0
        %v1823 = vpop.f32.mrb[0].mxu0
        %v1824 = vadd.f32 %v1735, %v1823
        %v1825 = vpop.f32.mrb[0].mxu0
        %1826 = vdwg.mxu0
        %v1827 = vld [vmem:[%s1022] sm:$0xf]
        %v1828 = vld [vmem:[%s1022 + $0x4] sm:$0xf]
        %v1829 = vld [vmem:[%s1022 + $0x8] sm:$0xf]
        %v1830 = vld [vmem:[%s1022 + $0xc] sm:$0xf]
        %v1831 = vld [vmem:[%s1030] sm:$0x1]
        %v1832 = vld [vmem:[#allocation8] sm:$0xff]
        %v1833 = vld [vmem:[#allocation8 + $0x8] sm:$0xff]
        %vm1834 = vcmp.gt.f32.partialorder %v1832, 0.5
        %vm1835 = vcmp.gt.f32.partialorder %v1833, 0.5
        %v1836 = vpack.c.bf16 %v1715, %v1712
        %v1837 = vpack.c.bf16 %v1816, %v1813
        %v1838 = vpack.c.bf16 %v1824, %v1821
        %v1840 = vsel %vm1284, %v1836, 0
        %v1843 = vsel %vm1284, %v1837, 0
        %v1846 = vsel %vm1284, %v1838, 0
        %1848 = vmatprep.subr.bf16.mxu0 0
        %1849 = vmatpush1.bf16.xpose.msra.mxu0 %v1843
        %1850 = vmatprep.subr.bf16.mxu0 0
        %1851 = vmatpush1.bf16.xpose.msra.mxu0 %v1846
        %1852 = vmatprep.subr.bf16.mxu0 0
        %1853 = vmatpush1.bf16.xpose.msra.mxu0 0
        %1854 = vmatprep.subr.bf16.mxu0 0
        %1855 = vmatpush1.bf16.xpose.msra.mxu0 0
        %1856 = vmatprep.subr.bf16.mxu0 0
        %1857 = vmatpush1.bf16.xpose.msra.mxu0 0
        %1858 = vmatprep.subr.bf16.mxu0 0
        %1859 = vmatpush1.bf16.xpose.msra.mxu0 0
        %1860 = vmatprep.subr.bf16.mxu0 0
        %1861 = vmatpush1.bf16.xpose.msra.mxu0 0
        %1862 = vmatprep.subr.bf16.mxu0 0
        %1863 = vmatpush1.bf16.xpose.msra.mxu0 0
        %1864 = vmatprep.subr.bf16.mxu0 0
        %1865 = vmatpush1.bf16.xpose.msra.mxu0 0
        %1866 = vmatprep.subr.bf16.mxu0 0
        %1867 = vmatpush1.bf16.xpose.msra.mxu0 0
        %1868 = vmatprep.subr.bf16.mxu0 0
        %1869 = vmatpush1.bf16.xpose.msra.mxu0 0
        %1870 = vmatprep.subr.bf16.mxu0 0
        %1871 = vmatpush1.bf16.xpose.msra.mxu0 0
        %1872 = vmatprep.subr.bf16.mxu0 0
        %1873 = vmatpush1.bf16.xpose.msra.mxu0 0
        %1874 = vmatprep.subr.bf16.mxu0 0
        %1875 = vmatpush1.bf16.xpose.msra.mxu0 0
        %1876 = vmatprep.subr.bf16.mxu0 0
        %1877 = vmatpush1.bf16.xpose.msra.mxu0 0
        %1878 = vmatprep.subr.bf16.mxu0 0
        %1879 = vmatpush1.bf16.xpose.msra.mxu0 0
        %1880 = vmatprep.mubr.bf16.mxu0 0
        %1881 = vmatmul.mubr.bf16.gmra.mrb[0].mxu0 %v1840
        %v1882 = vpop.f32.mrb[0].mxu0
        %v1883 = vadd.f32 0.0, %v1882
        %v1884 = vpop.f32.mrb[0].mxu0
        %v1885 = vpop.f32.mrb[0].mxu0
        %v1886 = vadd.f32 0.0, %v1885
        %v1887 = vpop.f32.mrb[0].mxu0
        %1888 = vdwg.mxu0
        %v1889 = vmul.f32 %v1883, 0.25
        %v1890 = vmul.f32 %v1886, 0.25
        %v1891 = vsel %vm1834, -1e+09, %v1889
        %v1892 = vsel %vm1835, -1e+09, %v1890
        %v1893 = vsel %vm1226, %v1891, -inf
        %1894 = vmax.xlane.f32.xlu0 %v1893
        %v1895 = vpop.xlane.xlu0 %1894
        %v1896 = vsel %vm1226, %v1892, -inf
        %1897 = vmax.xlane.f32.xlu0 %v1896
        %v1898 = vpop.xlane.xlu0 %1897
        %v1899 = vsub.f32 %v1891, %v1895
        %v1900 = vsub.f32 %v1892, %v1898
        %v1901 = vmul.f32 %v1899, 1.442695
        %v1902 = vpow.pop %v1901
        %v1903 = vmul.f32 %v1900, 1.442695
        %v1904 = vpow.pop %v1903
        %v1905 = vsel %vm1226, %v1902, 0.0
        %1906 = vadd.xlane.f32.xlu0 %v1905
        %v1907 = vpop.xlane.xlu0 %1906
        %v1908 = vsel %vm1226, %v1904, 0.0
        %1909 = vadd.xlane.f32.xlu0 %v1908
        %v1910 = vpop.xlane.xlu0 %1909
        %v1911 = vrcp.pop %v1907
        %v1912 = vrcp.pop %v1910
        %v1913 = vmul.f32 %v1902, %v1911
        %v1914 = vmul.f32 %v1904, %v1912
        %v1915 = vpack.c.bf16 %v1914, %v1913
        %1918 = vrot.lane.b32.xlu0 %v1837, 96
        %v1919 = vpop.permute.xlu0 %1918
        %1920 = vrot.lane.b32.xlu0 %v1838, 96
        %v1921 = vpop.permute.xlu0 %1920
        %v1925 = vsel %vm1226, %v1915, 0
        %1927 = vmatprep.subr.bf16.mxu0 0
        %1928 = vmatpush1.bf16.msra.mxu0 %v1919
        %1929 = vmatprep.subr.bf16.mxu0 0
        %1930 = vmatpush1.bf16.msra.mxu0 %v1921
        %1931 = vmatprep.subr.bf16.mxu0 0
        %1932 = vmatpush1.bf16.msra.mxu0 0
        %1933 = vmatprep.subr.bf16.mxu0 0
        %1934 = vmatpush1.bf16.msra.mxu0 0
        %1935 = vmatprep.subr.bf16.mxu0 0
        %1936 = vmatpush1.bf16.msra.mxu0 0
        %1937 = vmatprep.subr.bf16.mxu0 0
        %1938 = vmatpush1.bf16.msra.mxu0 0
        %1939 = vmatprep.subr.bf16.mxu0 0
        %1940 = vmatpush1.bf16.msra.mxu0 0
        %1941 = vmatprep.subr.bf16.mxu0 0
        %1942 = vmatpush1.bf16.msra.mxu0 0
        %1943 = vmatprep.subr.bf16.mxu0 0
        %1944 = vmatpush1.bf16.msra.mxu0 0
        %1945 = vmatprep.subr.bf16.mxu0 0
        %1946 = vmatpush1.bf16.msra.mxu0 0
        %1947 = vmatprep.subr.bf16.mxu0 0
        %1948 = vmatpush1.bf16.msra.mxu0 0
        %1949 = vmatprep.subr.bf16.mxu0 0
        %1950 = vmatpush1.bf16.msra.mxu0 0
        %1951 = vmatprep.subr.bf16.mxu0 0
        %1952 = vmatpush1.bf16.msra.mxu0 0
        %1953 = vmatprep.subr.bf16.mxu0 0
        %1954 = vmatpush1.bf16.msra.mxu0 0
        %1955 = vmatprep.subr.bf16.mxu0 0
        %1956 = vmatpush1.bf16.msra.mxu0 0
        %1957 = vmatprep.subr.bf16.mxu0 0
        %1958 = vmatpush1.bf16.msra.mxu0 0
        %1959 = vmatprep.mubr.bf16.mxu0 0
        %1960 = vmatmul.mubr.bf16.gmra.mrb[0].mxu0 %v1925
        %v1961 = vpop.f32.mrb[0].mxu0
        %v1962 = vadd.f32 0.0, %v1961
        %v1963 = vpop.f32.mrb[0].mxu0
        %v1964 = vpop.f32.mrb[0].mxu0
        %v1965 = vadd.f32 0.0, %v1964
        %v1966 = vpop.f32.mrb[0].mxu0
        %1967 = vdwg.mxu0
        %1969 = vrot.lane.b32.xlu0 %v1836, 112
        %v1970 = vpop.permute.xlu0 %1969
        %1971 = vrot.lane.b32.xlu0 %v1837, 112
        %v1972 = vpop.permute.xlu0 %1971
        %1973 = vrot.lane.b32.xlu0 %v1838, 112
        %v1974 = vpop.permute.xlu0 %1973
        %v1976 = vsel %vm1284, %v1970, 0
        %v1979 = vsel %vm1284, %v1972, 0
        %v1982 = vsel %vm1284, %v1974, 0
        %1984 = vmatprep.subr.bf16.mxu0 0
        %1985 = vmatpush1.bf16.xpose.msra.mxu0 %v1979
        %1986 = vmatprep.subr.bf16.mxu0 0
        %1987 = vmatpush1.bf16.xpose.msra.mxu0 %v1982
        %1988 = vmatprep.subr.bf16.mxu0 0
        %1989 = vmatpush1.bf16.xpose.msra.mxu0 0
        %1990 = vmatprep.subr.bf16.mxu0 0
        %1991 = vmatpush1.bf16.xpose.msra.mxu0 0
        %1992 = vmatprep.subr.bf16.mxu0 0
        %1993 = vmatpush1.bf16.xpose.msra.mxu0 0
        %1994 = vmatprep.subr.bf16.mxu0 0
        %1995 = vmatpush1.bf16.xpose.msra.mxu0 0
        %1996 = vmatprep.subr.bf16.mxu0 0
        %1997 = vmatpush1.bf16.xpose.msra.mxu0 0
        %1998 = vmatprep.subr.bf16.mxu0 0
        %1999 = vmatpush1.bf16.xpose.msra.mxu0 0
        %2000 = vmatprep.subr.bf16.mxu0 0
        %2001 = vmatpush1.bf16.xpose.msra.mxu0 0
        %2002 = vmatprep.subr.bf16.mxu0 0
        %2003 = vmatpush1.bf16.xpose.msra.mxu0 0
        %2004 = vmatprep.subr.bf16.mxu0 0
        %2005 = vmatpush1.bf16.xpose.msra.mxu0 0
        %2006 = vmatprep.subr.bf16.mxu0 0
        %2007 = vmatpush1.bf16.xpose.msra.mxu0 0
        %2008 = vmatprep.subr.bf16.mxu0 0
        %2009 = vmatpush1.bf16.xpose.msra.mxu0 0
        %2010 = vmatprep.subr.bf16.mxu0 0
        %2011 = vmatpush1.bf16.xpose.msra.mxu0 0
        %2012 = vmatprep.subr.bf16.mxu0 0
        %2013 = vmatpush1.bf16.xpose.msra.mxu0 0
        %2014 = vmatprep.subr.bf16.mxu0 0
        %2015 = vmatpush1.bf16.xpose.msra.mxu0 0
        %2016 = vmatprep.mubr.bf16.mxu0 0
        %2017 = vmatmul.mubr.bf16.gmra.mrb[0].mxu0 %v1976
        %v2018 = vpop.f32.mrb[0].mxu0
        %v2019 = vadd.f32 0.0, %v2018
        %v2020 = vpop.f32.mrb[0].mxu0
        %v2021 = vpop.f32.mrb[0].mxu0
        %v2022 = vadd.f32 0.0, %v2021
        %v2023 = vpop.f32.mrb[0].mxu0
        %2024 = vdwg.mxu0
        %v2025 = vmul.f32 %v2019, 0.25
        %v2026 = vmul.f32 %v2022, 0.25
        %v2027 = vsel %vm1834, -1e+09, %v2025
        %v2028 = vsel %vm1835, -1e+09, %v2026
        %v2029 = vsel %vm1226, %v2027, -inf
        %2030 = vmax.xlane.f32.xlu0 %v2029
        %v2031 = vpop.xlane.xlu0 %2030
        %v2032 = vsel %vm1226, %v2028, -inf
        %2033 = vmax.xlane.f32.xlu0 %v2032
        %v2034 = vpop.xlane.xlu0 %2033
        %v2035 = vsub.f32 %v2027, %v2031
        %v2036 = vsub.f32 %v2028, %v2034
        %v2037 = vmul.f32 %v2035, 1.442695
        %v2038 = vpow.pop %v2037
        %v2039 = vmul.f32 %v2036, 1.442695
        %v2040 = vpow.pop %v2039
        %v2041 = vsel %vm1226, %v2038, 0.0
        %2042 = vadd.xlane.f32.xlu0 %v2041
        %v2043 = vpop.xlane.xlu0 %2042
        %v2044 = vsel %vm1226, %v2040, 0.0
        %2045 = vadd.xlane.f32.xlu0 %v2044
        %v2046 = vpop.xlane.xlu0 %2045
        %v2047 = vrcp.pop %v2043
        %v2048 = vrcp.pop %v2046
        %v2049 = vmul.f32 %v2038, %v2047
        %v2050 = vmul.f32 %v2040, %v2048
        %v2051 = vpack.c.bf16 %v2050, %v2049
        %2052 = vrot.lane.b32.xlu0 %v1837, 80
        %v2053 = vpop.permute.xlu0 %2052
        %2054 = vrot.lane.b32.xlu0 %v1838, 80
        %v2055 = vpop.permute.xlu0 %2054
        %v2059 = vsel %vm1226, %v2051, 0
        %2061 = vmatprep.subr.bf16.mxu0 0
        %2062 = vmatpush1.bf16.msra.mxu0 %v2053
        %2063 = vmatprep.subr.bf16.mxu0 0
        %2064 = vmatpush1.bf16.msra.mxu0 %v2055
        %2065 = vmatprep.subr.bf16.mxu0 0
        %2066 = vmatpush1.bf16.msra.mxu0 0
        %2067 = vmatprep.subr.bf16.mxu0 0
        %2068 = vmatpush1.bf16.msra.mxu0 0
        %2069 = vmatprep.subr.bf16.mxu0 0
        %2070 = vmatpush1.bf16.msra.mxu0 0
        %2071 = vmatprep.subr.bf16.mxu0 0
        %2072 = vmatpush1.bf16.msra.mxu0 0
        %2073 = vmatprep.subr.bf16.mxu0 0
        %2074 = vmatpush1.bf16.msra.mxu0 0
        %2075 = vmatprep.subr.bf16.mxu0 0
        %2076 = vmatpush1.bf16.msra.mxu0 0
        %2077 = vmatprep.subr.bf16.mxu0 0
        %2078 = vmatpush1.bf16.msra.mxu0 0
        %2079 = vmatprep.subr.bf16.mxu0 0
        %2080 = vmatpush1.bf16.msra.mxu0 0
        %2081 = vmatprep.subr.bf16.mxu0 0
        %2082 = vmatpush1.bf16.msra.mxu0 0
        %2083 = vmatprep.subr.bf16.mxu0 0
        %2084 = vmatpush1.bf16.msra.mxu0 0
        %2085 = vmatprep.subr.bf16.mxu0 0
        %2086 = vmatpush1.bf16.msra.mxu0 0
        %2087 = vmatprep.subr.bf16.mxu0 0
        %2088 = vmatpush1.bf16.msra.mxu0 0
        %2089 = vmatprep.subr.bf16.mxu0 0
        %2090 = vmatpush1.bf16.msra.mxu0 0
        %2091 = vmatprep.subr.bf16.mxu0 0
        %2092 = vmatpush1.bf16.msra.mxu0 0
        %2093 = vmatprep.mubr.bf16.mxu0 0
        %2094 = vmatmul.mubr.bf16.gmra.mrb[0].mxu0 %v2059
        %v2095 = vpop.f32.mrb[0].mxu0
        %v2096 = vadd.f32 0.0, %v2095
        %v2097 = vpop.f32.mrb[0].mxu0
        %v2098 = vpop.f32.mrb[0].mxu0
        %v2099 = vadd.f32 0.0, %v2098
        %v2100 = vpop.f32.mrb[0].mxu0
        %2101 = vdwg.mxu0
        %2103 = vrot.lane.b32.xlu0 %v1914, 112
        %v2104 = vpop.permute.xlu0 %2103
        %2107 = vrot.lane.b32.xlu0 %v2050, 112
        %v2108 = vpop.permute.xlu0 %2107
        %v2110 = vsel %vm1284, %v1913, 0.0
        %v2111 = vsel %vm1284, %v2049, 0.0
        %v2112 = vsel %vm1284, %v2104, 0.0
        %v2113 = vsel %vm1284, %v2108, 0.0
        %2114 = vst [vmem:[%s1189] sm:$0xff] %v2110
        %2115 = vst [vmem:[%s1189 + $0x8] sm:$0xff] %v2111
        %2116 = vst [vmem:[%s1189 + $0x10] sm:$0xff] %v2112
        %2117 = vst [vmem:[%s1189 + $0x18] sm:$0xff] %v2113
        %2120 = vrot.lane.b32.xlu0 %v2096, 16
        %v2121 = vpop.permute.xlu0 %2120
        %2122 = vrot.lane.b32.xlu0 %v2099, 16
        %v2123 = vpop.permute.xlu0 %2122
        %v2126 = vsel %vm1284, %v1962, %v2121
        %v2127 = vsel %vm1284, %v1965, %v2123
        %v2128 = vpack.c.bf16 %v2127, %v2126
        %v2130 = vlaneseq
        %v2131 = vshrl.u32 %v2130, 7
        %v2132 = vsub.s32 0, %v2131
        %v2133 = vrot.slane %v1831, %v2132
        %v2139 = vunpack.c.l.b16 %v1827
        %v2140 = vunpack.c.l.b16 %v1828
        %v2141 = vunpack.c.l.b16 %v1829
        %v2142 = vunpack.c.l.b16 %v1830
        %v2143 = vpack.c.b16 %v2140, %v2139
        %v2144 = vpack.c.b16 %v2142, %v2141
        %v2148 = vsel %vm1226, %v2128, 0
        %2150 = vmatprep.subr.bf16.mxu0 0
        %2151 = vmatpush1.bf16.msra.mxu0 %v2143
        %2152 = vmatprep.subr.bf16.mxu0 0
        %2153 = vmatpush1.bf16.msra.mxu0 %v2144
        %2154 = vmatprep.subr.bf16.mxu0 0
        %2155 = vmatpush1.bf16.msra.mxu0 0
        %2156 = vmatprep.subr.bf16.mxu0 0
        %2157 = vmatpush1.bf16.msra.mxu0 0
        %2158 = vmatprep.subr.bf16.mxu0 0
        %2159 = vmatpush1.bf16.msra.mxu0 0
        %2160 = vmatprep.subr.bf16.mxu0 0
        %2161 = vmatpush1.bf16.msra.mxu0 0
        %2162 = vmatprep.subr.bf16.mxu0 0
        %2163 = vmatpush1.bf16.msra.mxu0 0
        %2164 = vmatprep.subr.bf16.mxu0 0
        %2165 = vmatpush1.bf16.msra.mxu0 0
        %2166 = vmatprep.subr.bf16.mxu0 0
        %2167 = vmatpush1.bf16.msra.mxu0 0
        %2168 = vmatprep.subr.bf16.mxu0 0
        %2169 = vmatpush1.bf16.msra.mxu0 0
        %2170 = vmatprep.subr.bf16.mxu0 0
        %2171 = vmatpush1.bf16.msra.mxu0 0
        %2172 = vmatprep.subr.bf16.mxu0 0
        %2173 = vmatpush1.bf16.msra.mxu0 0
        %2174 = vmatprep.subr.bf16.mxu0 0
        %2175 = vmatpush1.bf16.msra.mxu0 0
        %2176 = vmatprep.subr.bf16.mxu0 0
        %2177 = vmatpush1.bf16.msra.mxu0 0
        %2178 = vmatprep.subr.bf16.mxu0 0
        %2179 = vmatpush1.bf16.msra.mxu0 0
        %2180 = vmatprep.subr.bf16.mxu0 0
        %2181 = vmatpush1.bf16.msra.mxu0 0
        %2182 = vmatprep.mubr.bf16.mxu0 0
        %2183 = vmatmul.mubr.bf16.gmra.mrb[0].mxu0 %v2148
        %v2184 = vpop.f32.mrb[0].mxu0
        %v2185 = vadd.f32 %v2133, %v2184
        %v2186 = vpop.f32.mrb[0].mxu0
        %v2187 = vpop.f32.mrb[0].mxu0
        %v2188 = vadd.f32 %v2133, %v2187
        %v2189 = vpop.f32.mrb[0].mxu0
        %2190 = vdwg.mxu0
        %v2191 = vadd.f32 %v2185, %v1648
        %v2192 = vadd.f32 %v2188, %v1649
        %v2193 = vsel %vm1226, %v2191, 0.0
        %2194 = vadd.xlane.f32.xlu0 %v2193
        %v2195 = vpop.xlane.xlu0 %2194
        %v2196 = vsel %vm1226, %v2192, 0.0
        %2197 = vadd.xlane.f32.xlu0 %v2196
        %v2198 = vpop.xlane.xlu0 %2197
        %v2199 = vmul.f32 %v2195, %v1629
        %v2200 = vmul.f32 %v2198, %v1629
        %v2201 = vsub.f32 %v2191, %v2199
        %v2202 = vsub.f32 %v2192, %v2200
        %v2203 = vmul.f32 %v2201, %v2201
        %v2204 = vmul.f32 %v2202, %v2202
        %v2205 = vsel %vm1226, %v2203, 0.0
        %2206 = vadd.xlane.f32.xlu0 %v2205
        %v2207 = vpop.xlane.xlu0 %2206
        %v2208 = vsel %vm1226, %v2204, 0.0
        %2209 = vadd.xlane.f32.xlu0 %v2208
        %v2210 = vpop.xlane.xlu0 %2209
        %v2211 = vmul.f32 %v2207, %v1629
        %v2212 = vmul.f32 %v2210, %v1629
        %v2213 = vadd.f32 %v2211, 1e-05
        %v2214 = vadd.f32 %v2212, 1e-05
        %v2215 = vrsqrt.pop %v2213
        %v2216 = vrsqrt.pop %v2214
        %v2217 = vmul.f32 %v2201, %v2215
        %v2218 = vmul.f32 %v2202, %v2216
        %v2219 = vpack.c.bf16 %v2218, %v2217
        %v2220 = vld [vmem:[%s1039] sm:$0xf]
        %v2221 = vld [vmem:[%s1039 + $0x4] sm:$0xf]
        %v2222 = vld [vmem:[%s1039 + $0x8] sm:$0xf]
        %v2223 = vld [vmem:[%s1039 + $0xc] sm:$0xf]
        %v2224 = vld [vmem:[%s1047] sm:$0x1]
        %v2226 = vlaneseq
        %v2227 = vshrl.u32 %v2226, 7
        %v2228 = vsub.s32 0, %v2227
        %v2229 = vrot.slane %v2224, %v2228
        %v2235 = vunpack.c.l.b16 %v2220
        %v2236 = vunpack.c.l.b16 %v2221
        %v2237 = vunpack.c.l.b16 %v2222
        %v2238 = vunpack.c.l.b16 %v2223
        %v2239 = vpack.c.b16 %v2236, %v2235
        %v2240 = vpack.c.b16 %v2238, %v2237
        %v2244 = vsel %vm1226, %v2219, 0
        %2246 = vmatprep.subr.bf16.mxu0 0
        %2247 = vmatpush1.bf16.msra.mxu0 %v2239
        %2248 = vmatprep.subr.bf16.mxu0 0
        %2249 = vmatpush1.bf16.msra.mxu0 %v2240
        %2250 = vmatprep.subr.bf16.mxu0 0
        %2251 = vmatpush1.bf16.msra.mxu0 0
        %2252 = vmatprep.subr.bf16.mxu0 0
        %2253 = vmatpush1.bf16.msra.mxu0 0
        %2254 = vmatprep.subr.bf16.mxu0 0
        %2255 = vmatpush1.bf16.msra.mxu0 0
        %2256 = vmatprep.subr.bf16.mxu0 0
        %2257 = vmatpush1.bf16.msra.mxu0 0
        %2258 = vmatprep.subr.bf16.mxu0 0
        %2259 = vmatpush1.bf16.msra.mxu0 0
        %2260 = vmatprep.subr.bf16.mxu0 0
        %2261 = vmatpush1.bf16.msra.mxu0 0
        %2262 = vmatprep.subr.bf16.mxu0 0
        %2263 = vmatpush1.bf16.msra.mxu0 0
        %2264 = vmatprep.subr.bf16.mxu0 0
        %2265 = vmatpush1.bf16.msra.mxu0 0
        %2266 = vmatprep.subr.bf16.mxu0 0
        %2267 = vmatpush1.bf16.msra.mxu0 0
        %2268 = vmatprep.subr.bf16.mxu0 0
        %2269 = vmatpush1.bf16.msra.mxu0 0
        %2270 = vmatprep.subr.bf16.mxu0 0
        %2271 = vmatpush1.bf16.msra.mxu0 0
        %2272 = vmatprep.subr.bf16.mxu0 0
        %2273 = vmatpush1.bf16.msra.mxu0 0
        %2274 = vmatprep.subr.bf16.mxu0 0
        %2275 = vmatpush1.bf16.msra.mxu0 0
        %2276 = vmatprep.subr.bf16.mxu0 0
        %2277 = vmatpush1.bf16.msra.mxu0 0
        %2278 = vmatprep.mubr.bf16.mxu0 0
        %2279 = vmatmul.mubr.bf16.gmra.mrb[0].mxu0 %v2244
        %v2280 = vpop.f32.mrb[0].mxu0
        %v2281 = vadd.f32 %v2229, %v2280
        %v2282 = vpop.f32.mrb[0].mxu0
        %v2283 = vpop.f32.mrb[0].mxu0
        %v2284 = vadd.f32 %v2229, %v2283
        %v2285 = vpop.f32.mrb[0].mxu0
        %2286 = vdwg.mxu0
        %v2287 = vmax.f32 %v2281, 0.0
        %v2288 = vmax.f32 %v2284, 0.0
        %v2289 = vpack.c.bf16 %v2288, %v2287
        %v2290 = vld [vmem:[%s1056] sm:$0xf]
        %v2291 = vld [vmem:[%s1056 + $0x4] sm:$0xf]
        %v2292 = vld [vmem:[%s1056 + $0x8] sm:$0xf]
        %v2293 = vld [vmem:[%s1056 + $0xc] sm:$0xf]
        %v2294 = vld [vmem:[%s1056 + $0x10] sm:$0xf]
        %v2295 = vld [vmem:[%s1056 + $0x14] sm:$0xf]
        %v2296 = vld [vmem:[%s1056 + $0x18] sm:$0xf]
        %v2297 = vld [vmem:[%s1056 + $0x1c] sm:$0xf]
        %v2298 = vld [vmem:[%s1064] sm:$0x1]
        %v2300 = vlaneseq
        %v2301 = vshrl.u32 %v2300, 7
        %v2302 = vsub.s32 0, %v2301
        %v2303 = vrot.slane %v2298, %v2302
        %v2313 = vunpack.c.l.b16 %v2290
        %v2314 = vunpack.c.l.b16 %v2291
        %v2315 = vunpack.c.l.b16 %v2292
        %v2316 = vunpack.c.l.b16 %v2293
        %v2317 = vunpack.c.l.b16 %v2294
        %v2318 = vunpack.c.l.b16 %v2295
        %v2319 = vunpack.c.l.b16 %v2296
        %v2320 = vunpack.c.l.b16 %v2297
        %v2321 = vpack.c.b16 %v2314, %v2313
        %v2322 = vpack.c.b16 %v2316, %v2315
        %v2323 = vpack.c.b16 %v2318, %v2317
        %v2324 = vpack.c.b16 %v2320, %v2319
        %v2330 = vsel %vm1771, %v2289, 0
        %2332 = vmatprep.subr.bf16.mxu0 0
        %2333 = vmatpush1.bf16.msra.mxu0 %v2321
        %2334 = vmatprep.subr.bf16.mxu0 0
        %2335 = vmatpush1.bf16.msra.mxu0 %v2322
        %2336 = vmatprep.subr.bf16.mxu0 0
        %2337 = vmatpush1.bf16.msra.mxu0 %v2323
        %2338 = vmatprep.subr.bf16.mxu0 0
        %2339 = vmatpush1.bf16.msra.mxu0 %v2324
        %2340 = vmatprep.subr.bf16.mxu0 0
        %2341 = vmatpush1.bf16.msra.mxu0 0
        %2342 = vmatprep.subr.bf16.mxu0 0
        %2343 = vmatpush1.bf16.msra.mxu0 0
        %2344 = vmatprep.subr.bf16.mxu0 0
        %2345 = vmatpush1.bf16.msra.mxu0 0
        %2346 = vmatprep.subr.bf16.mxu0 0
        %2347 = vmatpush1.bf16.msra.mxu0 0
        %2348 = vmatprep.subr.bf16.mxu0 0
        %2349 = vmatpush1.bf16.msra.mxu0 0
        %2350 = vmatprep.subr.bf16.mxu0 0
        %2351 = vmatpush1.bf16.msra.mxu0 0
        %2352 = vmatprep.subr.bf16.mxu0 0
        %2353 = vmatpush1.bf16.msra.mxu0 0
        %2354 = vmatprep.subr.bf16.mxu0 0
        %2355 = vmatpush1.bf16.msra.mxu0 0
        %2356 = vmatprep.subr.bf16.mxu0 0
        %2357 = vmatpush1.bf16.msra.mxu0 0
        %2358 = vmatprep.subr.bf16.mxu0 0
        %2359 = vmatpush1.bf16.msra.mxu0 0
        %2360 = vmatprep.subr.bf16.mxu0 0
        %2361 = vmatpush1.bf16.msra.mxu0 0
        %2362 = vmatprep.subr.bf16.mxu0 0
        %2363 = vmatpush1.bf16.msra.mxu0 0
        %2364 = vmatprep.mubr.bf16.mxu0 0
        %2365 = vmatmul.mubr.bf16.gmra.mrb[0].mxu0 %v2330
        %v2366 = vpop.f32.mrb[0].mxu0
        %v2367 = vadd.f32 %v2303, %v2366
        %v2368 = vpop.f32.mrb[0].mxu0
        %v2369 = vpop.f32.mrb[0].mxu0
        %v2370 = vadd.f32 %v2303, %v2369
        %v2371 = vpop.f32.mrb[0].mxu0
        %2372 = vdwg.mxu0
        %v2373 = vadd.f32 %v2367, %v2217
        %v2374 = vadd.f32 %v2370, %v2218
        %v2375 = vsel %vm1226, %v2373, 0.0
        %2376 = vadd.xlane.f32.xlu0 %v2375
        %v2377 = vpop.xlane.xlu0 %2376
        %v2378 = vsel %vm1226, %v2374, 0.0
        %2379 = vadd.xlane.f32.xlu0 %v2378
        %v2380 = vpop.xlane.xlu0 %2379
        %v2381 = vmul.f32 %v2377, %v1629
        %v2382 = vmul.f32 %v2380, %v1629
        %v2383 = vsub.f32 %v2373, %v2381
        %v2384 = vsub.f32 %v2374, %v2382
        %v2385 = vmul.f32 %v2383, %v2383
        %v2386 = vmul.f32 %v2384, %v2384
        %v2387 = vsel %vm1226, %v2385, 0.0
        %2388 = vadd.xlane.f32.xlu0 %v2387
        %v2389 = vpop.xlane.xlu0 %2388
        %v2390 = vsel %vm1226, %v2386, 0.0
        %2391 = vadd.xlane.f32.xlu0 %v2390
        %v2392 = vpop.xlane.xlu0 %2391
        %v2393 = vmul.f32 %v2389, %v1629
        %v2394 = vmul.f32 %v2392, %v1629
        %v2395 = vadd.f32 %v2393, 1e-05
        %v2396 = vadd.f32 %v2394, 1e-05
        %v2397 = vrsqrt.pop %v2395
        %v2398 = vrsqrt.pop %v2396
        %v2399 = vmul.f32 %v2383, %v2397
        %v2400 = vmul.f32 %v2384, %v2398
        %2401 = vst.msk [vmem:[#allocation2] sm:$0xff] %vm1226, %v2399
        %2402 = vst.msk [vmem:[#allocation2 + $0x8] sm:$0xff] %vm1226, %v2400
        %p2403 = scmp.eq.s32.totalorder %s40, 1
        // Predicated region
        $region177: #{decoder_forward.1} parent=95 // pred_check
          %p2404 = pneg %p2403
        $region178: #{decoder_forward.1} parent=95 // pred_check_branch
          %2406 = sbr.rel (%p2404) target = $region180
        $region179: #{decoder_forward.1} parent=95 // pred_region
          %v2407 = vpack.c.bf16 %v2400, %v2399
          %v2408 = vld [vmem:[#allocation25] sm:$0xf]
          %v2409 = vld [vmem:[#allocation25 + $0x4] sm:$0xf]
          %v2410 = vld [vmem:[#allocation25 + $0x8] sm:$0xf]
          %v2411 = vld [vmem:[#allocation25 + $0xc] sm:$0xf]
          %v2416 = vunpack.c.l.b16 %v2408
          %v2417 = vunpack.c.l.b16 %v2409
          %v2418 = vunpack.c.l.b16 %v2410
          %v2419 = vunpack.c.l.b16 %v2411
          %v2420 = vpack.c.b16 %v2417, %v2416
          %v2421 = vpack.c.b16 %v2419, %v2418
          %v2425 = vsel %vm1226, %v2407, 0
          %2427 = vmatprep.subr.bf16.mxu0 0
          %2428 = vmatpush1.bf16.msra.mxu0 %v2420
          %2429 = vmatprep.subr.bf16.mxu0 0
          %2430 = vmatpush1.bf16.msra.mxu0 %v2421
          %2431 = vmatprep.subr.bf16.mxu0 0
          %2432 = vmatpush1.bf16.msra.mxu0 0
          %2433 = vmatprep.subr.bf16.mxu0 0
          %2434 = vmatpush1.bf16.msra.mxu0 0
          %2435 = vmatprep.subr.bf16.mxu0 0
          %2436 = vmatpush1.bf16.msra.mxu0 0
          %2437 = vmatprep.subr.bf16.mxu0 0
          %2438 = vmatpush1.bf16.msra.mxu0 0
          %2439 = vmatprep.subr.bf16.mxu0 0
          %2440 = vmatpush1.bf16.msra.mxu0 0
          %2441 = vmatprep.subr.bf16.mxu0 0
          %2442 = vmatpush1.bf16.msra.mxu0 0
          %2443 = vmatprep.subr.bf16.mxu0 0
          %2444 = vmatpush1.bf16.msra.mxu0 0
          %2445 = vmatprep.subr.bf16.mxu0 0
          %2446 = vmatpush1.bf16.msra.mxu0 0
          %2447 = vmatprep.subr.bf16.mxu0 0
          %2448 = vmatpush1.bf16.msra.mxu0 0
          %2449 = vmatprep.subr.bf16.mxu0 0
          %2450 = vmatpush1.bf16.msra.mxu0 0
          %2451 = vmatprep.subr.bf16.mxu0 0
          %2452 = vmatpush1.bf16.msra.mxu0 0
          %2453 = vmatprep.subr.bf16.mxu0 0
          %2454 = vmatpush1.bf16.msra.mxu0 0
          %2455 = vmatprep.subr.bf16.mxu0 0
          %2456 = vmatpush1.bf16.msra.mxu0 0
          %2457 = vmatprep.subr.bf16.mxu0 0
          %2458 = vmatpush1.bf16.msra.mxu0 0
          %2459 = vmatprep.mubr.bf16.mxu0 0
          %2460 = vmatmul.mubr.bf16.gmra.mrb[0].mxu0 %v2425
          %v2461 = vpop.f32.mrb[0].mxu0
          %v2462 = vadd.f32 0.0, %v2461
          %v2463 = vpop.f32.mrb[0].mxu0
          %v2464 = vpop.f32.mrb[0].mxu0
          %v2465 = vadd.f32 0.0, %v2464
          %v2466 = vpop.f32.mrb[0].mxu0
          %2467 = vdwg.mxu0
          %2468 = vst [vmem:[#allocation26] sm:$0xff] %v2462
          %2469 = vst [vmem:[#allocation26 + $0x8] sm:$0xff] %v2465
        $region180: #{decoder_forward.1} parent=95 // pred_fallthru
          _
        %s2470 = sand.u32 %s40, 1
        %s2471 = scalar_lea.sflag [#allocation28], %s2470
        %s2472 = sand.u32 %s538, 1
        %s2473 = smul.addr %s2472, 32
        %s2474 = scalar_lea.vmem [#allocation27], %s2473
        %s2475 = sand.u32 %s40, 1
        %s2476 = scalar_lea.sflag [#allocation28], %s2475
        %s2477 = sand.u32 %s564, 1
        %s2478 = smul.addr %s2477, 32
        %s2479 = scalar_lea.vmem [#allocation29], %s2478
        // Predicated region
        $region181: #{decoder_forward.1} parent=95 // pred_check
          %p2480 = pneg %p522
        $region182: #{decoder_forward.1} parent=95 // pred_check_branch
          %2482 = sbr.rel (%p2480) target = $region184
        $region183: #{decoder_forward.1} parent=95 // pred_region
          %s2484 = ssub.s32 256, 256
          %2485 = vsyncadd [#allocation5], %s2484
          %s2486 = sshll.u32 [#allocation26], 4
          %s2487 = int_to_ptr.vmem [resolvable:$true] %s2486
          %2492 = dma.vmem_to_hbm [thread:$0]  %s2487, 256, %s19, [#allocation5], 128, 128, 8
        $region184: #{decoder_forward.1} parent=95 // pred_fallthru
          _
        // Predicated region
        $region185: #{decoder_forward.1} parent=95 // pred_check
          %p2493 = pneg %p548
        $region186: #{decoder_forward.1} parent=95 // pred_check_branch
          %2495 = sbr.rel (%p2493) target = $region188
        $region187: #{decoder_forward.1} parent=95 // pred_region
          %s2497 = ssub.s32 512, 512
          %2498 = vsyncadd %s2471, %s2497
          %s2499 = smul.addr %s40, 4
          %s2500 = smul.addr %s2499, 128
          %s2501 = scalar_lea.hbm %s20, %s2500
          %s2502 = sshll.u32 %s2474, 4
          %s2503 = int_to_ptr.vmem [resolvable:$true] %s2502
          %2508 = dma.vmem_to_hbm [thread:$0]  %s2503, 512, %s2501, %s2471, 128, 128, 8
        $region188: #{decoder_forward.1} parent=95 // pred_fallthru
          _
        // Predicated region
        $region189: #{decoder_forward.1} parent=95 // pred_check
          %p2509 = pneg %p574
        $region190: #{decoder_forward.1} parent=95 // pred_check_branch
          %2511 = sbr.rel (%p2509) target = $region192
        $region191: #{decoder_forward.1} parent=95 // pred_region
          %s2513 = ssub.s32 512, 512
          %2514 = vsyncadd %s2476, %s2513
          %s2515 = smul.addr %s40, 4
          %s2516 = smul.addr %s2515, 128
          %s2517 = scalar_lea.hbm %s21, %s2516
          %s2518 = sshll.u32 %s2479, 4
          %s2519 = int_to_ptr.vmem [resolvable:$true] %s2518
          %2524 = dma.vmem_to_hbm [thread:$0]  %s2519, 512, %s2517, %s2476, 128, 128, 8
        $region192: #{decoder_forward.1} parent=95 // pred_fallthru
          _
        // Predicated region
        $region193: #{decoder_forward.1} parent=95 // pred_check
          %p2525 = pneg %p522
        $region194: #{decoder_forward.1} parent=95 // pred_check_branch
          %2527 = sbr.rel (%p2525) target = $region196
        $region195: #{decoder_forward.1} parent=95 // pred_region
          %2528 = dma.done [#allocation5], 256
        $region196: #{decoder_forward.1} parent=95 // pred_fallthru
          _
      $region96: #{decoder_forward.1} parent=5 // pred_fallthru
        _
      %p2529 = scmp.le.s32.totalorder 2, %s35
      // Predicated region
      $region197: #{decoder_forward.1} parent=5 // pred_check
        %p2530 = pneg %p2529
      $region198: #{decoder_forward.1} parent=5 // pred_check_branch
        %2532 = sbr.rel (%p2530) target = $region200
      $region199: #{decoder_forward.1} parent=5 // pred_region
        %s2533 = ssub.s32 %s35, 2
        // Predicated region
        $region201: #{decoder_forward.1} parent=199 // pred_check
          %p2534 = pneg %p554
        $region202: #{decoder_forward.1} parent=199 // pred_check_branch
          %2536 = sbr.rel (%p2534) target = $region204
        $region203: #{decoder_forward.1} parent=199 // pred_region
          %s2537 = sand.u32 %s41, 1
          %s2538 = scalar_lea.sflag [#allocation28], %s2537
          %s2539 = sand.u32 %s539, 1
          %s2540 = smul.addr %s2539, 32
          %s2541 = scalar_lea.vmem [#allocation27], %s2540
          %2542 = dma.done %s2538, 512
        $region204: #{decoder_forward.1} parent=199 // pred_fallthru
          _
        // Predicated region
        $region205: #{decoder_forward.1} parent=199 // pred_check
          %p2543 = pneg %p580
        $region206: #{decoder_forward.1} parent=199 // pred_check_branch
          %2545 = sbr.rel (%p2543) target = $region208
        $region207: #{decoder_forward.1} parent=199 // pred_region
          %s2546 = sand.u32 %s41, 1
          %s2547 = scalar_lea.sflag [#allocation28], %s2546
          %s2548 = sand.u32 %s565, 1
          %s2549 = smul.addr %s2548, 32
          %s2550 = scalar_lea.vmem [#allocation29], %s2549
          %2551 = dma.done %s2547, 512
        $region208: #{decoder_forward.1} parent=199 // pred_fallthru
          _
      $region200: #{decoder_forward.1} parent=5 // pred_fallthru
        _
    $region6: #{decoder_forward.1} parent=1 // loop_footer
      %s39 = sadd.s32 1, %s35
    $region7: #{decoder_forward.1} parent=1 // loop_footer_branch
      %34 = sbr.rel target = $region3
    $region8: #{decoder_forward.1} parent=1 // loop_exit
      _
    %2552 = vsyncpa [#allocation4], 1
    %s2553 = scalar_lea.sflag [#allocation4], 1
    %2554 = vsyncpa %s2553, 1
    %2555 = vsyncpa [#allocation7], 1
    %2556 = vsyncpa [#allocation10], 1
    %2557 = vsyncpa [#allocation5], 1
    %s2558 = scalar_lea.sflag [#allocation5], 1
    %2559 = vsyncpa %s2558, 1
    %2560 = vsyncpa [#allocation28], 1
    %s2561 = scalar_lea.sflag [#allocation28], 1
    %2562 = vsyncpa %s2561, 1

</llo_original>
